<compile_context>
chip_gen: v7x
topology: tpu7x:2x2x1
jax: 0.10.0
libtpu: 0.0.40
codegen_flags: <defaults>
</compile_context>

<pallas_src>
import functools

import jax
import jax.numpy as jnp
from jax import lax
from jax.experimental import pallas as pl
from jax.experimental.pallas import tpu as pltpu


# GEMM-operand dtype.  f32 keeps exact parity with PyTorch; flip to
# jnp.bfloat16 on v6e/v7x for ~2-3x MXU throughput (accumulation stays f32 via
# preferred_element_type; gather / symmetric functions / InstanceNorm stay f32
# regardless, so only matmul rounding changes).
MATMUL_DTYPE = jnp.float32
_EPS = 1e-5
# Raise the scoped-VMEM limit above the 16 MiB (v5e) / 32 MiB (v6e/v7x)
# defaults while keeping headroom under v7x's 64 MiB physical VMEM.
_VMEM_LIMIT_BYTES = 48 * 1024 * 1024


# ------------------------------ row gathers ---------------------------------

def _take_row_gather(x, idx_col):
    """Vectorized row gather.  x: (E_src, C) f32, idx_col: (R, 1) int32.
    Rows with idx < 0 (MeshCNN's missing-neighbor padding) become zeros."""
    rows = idx_col.shape[0]
    cols = x.shape[1]
    safe = jnp.maximum(idx_col, 0)                      # indices always valid
    g = jnp.take_along_axis(
        x, jnp.broadcast_to(safe, (rows, cols)), axis=0, mode="clip")
    return jnp.where(idx_col >= 0, g, jnp.zeros_like(g))


def _onehot_row_gather(x, idx_col):
    """Fallback row gather via one-hot matmul (exact, but O(R*E_src));
    only used when the vectorized gather does not lower on this jax/TPU."""
    rows = idx_col.shape[0]
    src = x.shape[0]
    cols = lax.broadcasted_iota(jnp.int32, (rows, src), 1)
    oh = jnp.where(idx_col == cols, 1.0, 0.0).astype(x.dtype)
    return jnp.dot(oh, x, preferred_element_type=jnp.float32)


# ------------------------------ MeshConv ------------------------------------

def _mesh_conv_fused(x, gemm, w_ref, b_ref):
    """MeshConv: row gather + symmetric functions (f32) + ONE packed MXU GEMM.

    x     : (E, Cin) f32 edge features (VMEM resident)
    gemm  : (E, 4) int32 neighbor ids (-1 => missing neighbor => zero feature)
    w_ref : Ref (5*Cin, Cout) packed weight, already MATMUL_DTYPE
    b_ref : Ref (1, Cout) f32 bias
    """
    n1 = _take_row_gather(x, gemm[:, 0:1])
    n2 = _take_row_gather(x, gemm[:, 1:2])
    n3 = _take_row_gather(x, gemm[:, 2:3])
    n4 = _take_row_gather(x, gemm[:, 3:4])
    feats = jnp.concatenate(
        [x, n1 + n3, n2 + n4, jnp.abs(n1 - n3), jnp.abs(n2 - n4)], axis=1)
    acc = jnp.dot(feats.astype(MATMUL_DTYPE), w_ref[...],
                  preferred_element_type=jnp.float32)
    return acc + b_ref[...]


def _mesh_conv_onehot(x, gemm, w_ref, b_ref):
    """Fallback MeshConv: one-hot gathers + 5 accumulated matmuls against row
    slices of the packed weight.  Numerically identical to the fused path."""
    cin = x.shape[1]
    n1 = _onehot_row_gather(x, gemm[:, 0:1])
    n2 = _onehot_row_gather(x, gemm[:, 1:2])
    n3 = _onehot_row_gather(x, gemm[:, 2:3])
    n4 = _onehot_row_gather(x, gemm[:, 3:4])
    cols = [x, n1 + n3, n2 + n4, jnp.abs(n1 - n3), jnp.abs(n2 - n4)]
    acc = None
    for k, col in enumerate(cols):
        w_k = w_ref[k * cin:(k + 1) * cin, :]
        part = jnp.dot(col.astype(MATMUL_DTYPE), w_k,
                       preferred_element_type=jnp.float32)
        acc = part if acc is None else acc + part
    return acc + b_ref[...]


def _instance_norm(x):
    # torch InstanceNorm2d(affine=False, eps=1e-5): per-(batch, channel) over
    # the edge axis, biased variance.  Kept in f32 (v5e VPU/EUP have no bf16);
    # rsqrt goes to the otherwise-idle EUP slot.
    mean = jnp.mean(x, axis=0, keepdims=True)
    cent = x - mean
    var = jnp.mean(cent * cent, axis=0, keepdims=True)
    return cent * lax.rsqrt(var + _EPS)


# ----------------------- compile probes (fast-path gate) --------------------

@functools.lru_cache(maxsize=None)
def _fused_conv_supported(e, cin, cout):
    """Probe the take-gather + unaligned-concat + packed-GEMM MeshConv once
    per static shape; fall back to the one-hot path if it does not lower."""
    def probe(x_ref, g_ref, w_ref, b_ref, o_ref):
        o_ref[...] = _mesh_conv_fused(x_ref[...], g_ref[...], w_ref, b_ref)
    try:
        out = pl.pallas_call(
            probe, out_shape=jax.ShapeDtypeStruct((e, cout), jnp.float32),
        )(jnp.zeros((e, cin), jnp.float32),
          jnp.zeros((e, 4), jnp.int32),
          jnp.zeros((5 * cin, cout), MATMUL_DTYPE),
          jnp.zeros((1, cout), jnp.float32))
        jax.block_until_ready(out)
        return True
    except Exception:
        return False


@functools.lru_cache(maxsize=None)
def _take_gather_supported(rows, src, cols):
    """Probe the plain vectorized row gather (used by MeshUnpool)."""
    def probe(x_ref, i_ref, o_ref):
        o_ref[...] = _take_row_gather(x_ref[...], i_ref[...])
    try:
        out = pl.pallas_call(
            probe, out_shape=jax.ShapeDtypeStruct((rows, cols), jnp.float32),
        )(jnp.zeros((src, cols), jnp.float32),
          jnp.zeros((rows, 1), jnp.int32))
        jax.block_until_ready(out)
        return True
    except Exception:
        return False


# --------------------------- fused UpConv kernel ----------------------------

def _make_upconv_kernel(*, unroll, transfer, blocks,
                        conv_in_fused, conv_out_fused, unpool_take):
    """Builds one fused UpConv kernel (all flags are static)."""
    conv_in = _mesh_conv_fused if conv_in_fused else _mesh_conv_onehot
    conv_out = _mesh_conv_fused if conv_out_fused else _mesh_conv_onehot
    unpool_gather = _take_row_gather if unpool_take else _onehot_row_gather

    def kernel(*refs):
        i = 0
        fe_ref = refs[i]; i += 1
        gemm_in_ref = refs[i]; i += 1
        gemm_out_ref = refs[i]; i += 1
        if unroll:
            up_idx_ref = refs[i]; i += 1
        if transfer:
            down_ref = refs[i]; i += 1
        wup_ref, bup_ref = refs[i], refs[i + 1]; i += 2
        w1_ref, b1_ref = refs[i], refs[i + 1]; i += 2
        blk_refs = refs[i:i + 2 * blocks]; i += 2 * blocks
        out_ref = refs[i]

        # up_conv (MeshConv Cin -> Cout) at the input resolution.
        x = fe_ref[0]                                        # (E_in, Cin) f32
        y = conv_in(x, gemm_in_ref[0], wup_ref, bup_ref)     # (E_in, Cout) f32

        # MeshUnpool: each fine edge copies one coarse edge (row gather).
        if unroll:
            y = unpool_gather(y, up_idx_ref[0])              # (E_out, Cout)

        # Skip connection from the encoder (transfer_data).
        if transfer:
            y = y + down_ref[0]

        # conv1 -> InstanceNorm -> ReLU.
        z = conv_out(y, gemm_out_ref[0], w1_ref, b1_ref)
        x1 = jnp.maximum(_instance_norm(z), 0.0)

        # Residual blocks fused into the same kernel.
        # TODO(synk): for many blocks, stack conv2 weights into one operand and
        # iterate with lax.fori_loop to bound vreg live ranges.
        for b in range(blocks):
            w2_ref, b2_ref = blk_refs[2 * b], blk_refs[2 * b + 1]
            z = conv_out(x1, gemm_out_ref[0], w2_ref, b2_ref)
            x1 = jnp.maximum(_instance_norm(z) + x1, 0.0)

        out_ref[0] = x1        # single HBM writeback per UpConv stage

    return kernel


def _pack_conv_params(cp):
    """(5, Cin, Cout) conv weight -> packed (5*Cin, Cout) in MATMUL_DTYPE."""
    k, cin, cout = cp["w"].shape
    w = cp["w"].reshape(k * cin, cout).astype(MATMUL_DTYPE)
    b = cp["b"].astype(jnp.float32)
    return w, b


def up_conv_forward(p, fe, gemm_in, gemm_out, *, unroll_idx=None,
                    from_down=None, blocks=0):
    """One fused UpConv stage as a single pallas_call, grid over the batch."""
    B, E_in, Cin = fe.shape
    Cout = p["up_conv"]["w"].shape[-1]
    unroll = unroll_idx is not None
    transfer = from_down is not None
    E_out = unroll_idx.shape[1] if unroll else E_in

    operands = [fe, gemm_in, gemm_out]
    # TODO(synk): block several batch elements per grid step and use a
    # lane-dense (C, E) activation layout for production meshes (E >= 128).
    in_specs = [
        pl.BlockSpec((1, E_in, Cin), lambda i: (i, 0, 0)),
        # Index tiles stay in VMEM because the vectorized gather consumes them
        # as vectors; they are tiny relative to the activations.
        pl.BlockSpec((1, E_in, 4), lambda i: (i, 0, 0)),
        pl.BlockSpec((1, E_out, 4), lambda i: (i, 0, 0)),
    ]
    if unroll:
        operands.append(unroll_idx)
        in_specs.append(pl.BlockSpec((1, E_out, 1), lambda i: (i, 0, 0)))
    if transfer:
        operands.append(from_down)
        in_specs.append(pl.BlockSpec((1, E_out, Cout), lambda i: (i, 0, 0)))

    def add_conv(cp):
        w, b = _pack_conv_params(cp)
        operands.extend([w, b])
        # Constant index_maps: weights stay VMEM-resident across grid steps.
        in_specs.extend([pl.BlockSpec(w.shape, lambda i: (0, 0)),
                         pl.BlockSpec(b.shape, lambda i: (0, 0))])

    add_conv(p["up_conv"])
    add_conv(p["conv1"])
    for bp in p["conv2"][:blocks]:
        add_conv(bp)

    # Select fast (take-gather / fused-GEMM) vs fallback paths per static shape.
    conv_in_fused = _fused_conv_supported(E_in, Cin, Cout)
    conv_out_fused = _fused_conv_supported(E_out, Cout, Cout)
    unpool_take = _take_gather_supported(E_out, E_in, Cout) if unroll else True

    kernel = _make_upconv_kernel(unroll=unroll, transfer=transfer,
                                 blocks=blocks,
                                 conv_in_fused=conv_in_fused,
                                 conv_out_fused=conv_out_fused,
                                 unpool_take=unpool_take)
    return pl.pallas_call(
        kernel,
        out_shape=jax.ShapeDtypeStruct((B, E_out, Cout), jnp.float32),
        grid=(B,),
        in_specs=in_specs,
        out_specs=pl.BlockSpec((1, E_out, Cout), lambda i: (i, 0, 0)),
        compiler_params=pltpu.CompilerParams(
            dimension_semantics=("parallel",),   # batch steps shard across TCs
            vmem_limit_bytes=_VMEM_LIMIT_BYTES),
    )(*operands)


# ------------------------------ decoder driver ------------------------------

def mesh_decoder_forward(params, fe, meshes, encoder_outs, convs, unrolls,
                         blocks=0):
    # TODO(synk): when per-stage activations fit VMEM, fuse consecutive UpConv
    # stages into one pallas_call to remove the inter-stage HBM round trip.
    n_up = len(convs) - 2
    for i in range(n_up):
        before_pool = None
        if encoder_outs is not None:
            before_pool = encoder_outs[-(i + 2)]
        unroll = unrolls[i] if i < len(unrolls) else 0
        E_in = fe.shape[1]
        gemm_in = meshes["gemm"][E_in]
        if unroll:
            unroll_idx = meshes["unroll_idx"][unroll]
            E_out = unroll
        else:
            unroll_idx = None
            E_out = E_in
        gemm_out = meshes["gemm"][E_out]
        fe = up_conv_forward(params["up_convs"][i], fe, gemm_in, gemm_out,
                             unroll_idx=unroll_idx, from_down=before_pool,
                             blocks=blocks)
    E = fe.shape[1]
    gemm = meshes["gemm"][E]
    fe = up_conv_forward(params["final_conv"], fe, gemm, gemm,
                         unroll_idx=None, from_down=None, blocks=blocks)
    return fe


# ----------------------------- parameter init -------------------------------

def init_meshconv_params(key, cin, cout, k=5):
    # xavier_normal_ on the (Cout, Cin, 1, k) conv weight, bias = 0.
    fan_in, fan_out = cin * k, cout * k
    std = (2.0 / (fan_in + fan_out)) ** 0.5
    w = std * jax.random.normal(key, (k, cin, cout), jnp.float32)
    b = jnp.zeros((1, cout), jnp.float32)
    return {"w": w, "b": b}


def init_decoder_params(key, convs, blocks):
    keys = iter(jax.random.split(key, 128))
    up_convs = []
    for i in range(len(convs) - 2):
        up_convs.append({
            "up_conv": init_meshconv_params(next(keys), convs[i], convs[i + 1]),
            "conv1": init_meshconv_params(next(keys), convs[i + 1], convs[i + 1]),
            "conv2": [init_meshconv_params(next(keys), convs[i + 1], convs[i + 1])
                      for _ in range(blocks)],
        })
    final_conv = {
        "up_conv": init_meshconv_params(next(keys), convs[-2], convs[-1]),
        "conv1": init_meshconv_params(next(keys), convs[-1], convs[-1]),
        "conv2": [init_meshconv_params(next(keys), convs[-1], convs[-1])
                  for _ in range(blocks)],
    }
    return {"up_convs": up_convs, "final_conv": final_conv}


# ---------------------------------- main -------------------------------------

if __name__ == "__main__":
    key = jax.random.PRNGKey(0)
    k_param, k_fe, k_enc, k_g8, k_g16 = jax.random.split(key, 5)

    B = 2
    convs = [32, 16, 8]     # MeshDecoder(convs): UpConv(32->16) + final UpConv(16->8)
    unrolls = [16]          # first UpConv unpools 8 -> 16 edges
    blocks = 1
    E0, E1 = 8, 16          # coarse / fine edge counts

    params = init_decoder_params(k_param, convs, blocks)

    # Synthetic mesh connectivity: 4 neighbor edge ids per edge, -1 = missing
    # neighbor (real MeshCNN pads with -1; the in-kernel gather turns those
    # into zero contributions, matching the zero-padded GeMM).
    gemm8 = jax.random.randint(k_g8, (B, E0, 4), -1, E0, dtype=jnp.int32)
    gemm16 = jax.random.randint(k_g16, (B, E1, 4), -1, E1, dtype=jnp.int32)

    # Synthetic MeshUnpool: each fine edge copies one coarse edge (index, not a
    # dense matrix).
    unroll_idx16 = jnp.tile((jnp.arange(E1, dtype=jnp.int32) % E0)[None, :, None],
                            (B, 1, 1))                        # (B, E1, 1)

    meshes = {"gemm": {E0: gemm8, E1: gemm16},
              "unroll_idx": {E1: unroll_idx16}}

    # Decoder input: PyTorch layout (B, 32, 8) kept channel-last as (B, 8, 32).
    fe = jax.random.normal(k_fe, (B, E0, convs[0]), jnp.float32)

    # Encoder skips; only encoder_outs[-2] (channel-last (B, 16 edges, 16 ch))
    # is consumed by the single transfer_data UpConv.
    before_pool = jax.random.normal(k_enc, (B, E1, convs[1]), jnp.float32)
    encoder_outs = [jnp.zeros((B, E0, convs[0]), jnp.float32),   # unused
                    before_pool,
                    jnp.zeros((B, E1, convs[2]), jnp.float32)]   # unused

    out = mesh_decoder_forward(params, fe, meshes, encoder_outs, convs,
                               unrolls, blocks=blocks)
    out = jax.block_until_ready(out)

    # channel-last (B, E1, convs[-1]) == PyTorch (B, convs[-1], E1) transposed
    assert out.shape == (B, E1, convs[-1]), out.shape
    assert bool(jnp.all(jnp.isfinite(out)))
    print("KERNEL_OK")
</pallas_src>

<mosaic_0001>
module attributes {stable_mosaic.version = 11 : i64} {
  func.func @kernel(%arg0: i32, %arg1: memref<1x8x32xf32, #tpu.memory_space<vmem>>, %arg2: memref<1x8x4xi32, #tpu.memory_space<vmem>>, %arg3: memref<1x16x4xi32, #tpu.memory_space<vmem>>, %arg4: memref<1x16x1xi32, #tpu.memory_space<vmem>>, %arg5: memref<1x16x16xf32, #tpu.memory_space<vmem>>, %arg6: memref<160x16xf32, #tpu.memory_space<vmem>>, %arg7: memref<1x16xf32, #tpu.memory_space<vmem>>, %arg8: memref<80x16xf32, #tpu.memory_space<vmem>>, %arg9: memref<1x16xf32, #tpu.memory_space<vmem>>, %arg10: memref<80x16xf32, #tpu.memory_space<vmem>>, %arg11: memref<1x16xf32, #tpu.memory_space<vmem>>, %arg12: memref<1x16x16xf32, #tpu.memory_space<vmem>>) attributes {dimension_semantics = [#tpu.dimension_semantics<parallel>], iteration_bounds = array<i64: 2>, scalar_prefetch = 0 : i64, scratch_operands = 0 : i64, tpu.core_type = #tpu.core_type<tc>, window_params = [{transform_indices = @transform_0, window_bounds = array<i64: 1, 8, 32>}, {transform_indices = @transform_1, window_bounds = array<i64: 1, 8, 4>}, {transform_indices = @transform_2, window_bounds = array<i64: 1, 16, 4>}, {transform_indices = @transform_3, window_bounds = array<i64: 1, 16, 1>}, {transform_indices = @transform_4, window_bounds = array<i64: 1, 16, 16>}, {pipeline_mode = #tpu.pipeline_mode<synchronous>, transform_indices = @transform_5, window_bounds = array<i64: 160, 16>}, {pipeline_mode = #tpu.pipeline_mode<synchronous>, transform_indices = @transform_6, window_bounds = array<i64: 1, 16>}, {pipeline_mode = #tpu.pipeline_mode<synchronous>, transform_indices = @transform_7, window_bounds = array<i64: 80, 16>}, {pipeline_mode = #tpu.pipeline_mode<synchronous>, transform_indices = @transform_8, window_bounds = array<i64: 1, 16>}, {pipeline_mode = #tpu.pipeline_mode<synchronous>, transform_indices = @transform_9, window_bounds = array<i64: 80, 16>}, {pipeline_mode = #tpu.pipeline_mode<synchronous>, transform_indices = @transform_10, window_bounds = array<i64: 1, 16>}, {transform_indices = @transform_11, window_bounds = array<i64: 1, 16, 16>}]} {
    %c0 = arith.constant 0 : index
    %c0_0 = arith.constant 0 : index
    %c0_1 = arith.constant 0 : index
    %0 = vector.load %arg1[%c0, %c0_0, %c0_1] : memref<1x8x32xf32, #tpu.memory_space<vmem>>, vector<1x8x32xf32>
    %1 = vector.shape_cast %0 : vector<1x8x32xf32> to vector<8x32xf32>
    %c0_2 = arith.constant 0 : index
    %c0_3 = arith.constant 0 : index
    %c0_4 = arith.constant 0 : index
    %2 = vector.load %arg2[%c0_2, %c0_3, %c0_4] : memref<1x8x4xi32, #tpu.memory_space<vmem>>, vector<1x8x4xi32>
    %3 = vector.shape_cast %2 : vector<1x8x4xi32> to vector<8x4xi32>
    %4 = vector.extract_strided_slice %3 {offsets = [0, 0], sizes = [8, 1], strides = [1, 1]} : vector<8x4xi32> to vector<8x1xi32>
    %5 = tpu.iota {dimensions = array<i32: 1>} : vector<8x8xi32>
    %6 = vector.broadcast %4 : vector<8x1xi32> to vector<8x8xi32>
    %7 = arith.cmpi eq, %6, %5 : vector<8x8xi32>
    %cst = arith.constant 1.000000e+00 : f32
    %cst_5 = arith.constant 0.000000e+00 : f32
    %8 = vector.broadcast %cst : f32 to vector<8x8xf32>
    %9 = vector.broadcast %cst_5 : f32 to vector<8x8xf32>
    %10 = arith.select %7, %8, %9 : vector<8x8xi1>, vector<8x8xf32>
    %cst_6 = arith.constant dense<0.000000e+00> : vector<8x32xf32>
    %11 = tpu.matmul %10, %1, %cst_6 {dimension_numbers = #tpu.dot_dimension_numbers<[1], [0], [0], [1], [0, 0, 1, 1], [], []>} : vector<8x8xf32>, vector<8x32xf32>, vector<8x32xf32> -> vector<8x32xf32>
    %12 = vector.extract_strided_slice %3 {offsets = [0, 1], sizes = [8, 1], strides = [1, 1]} : vector<8x4xi32> to vector<8x1xi32>
    %13 = tpu.iota {dimensions = array<i32: 1>} : vector<8x8xi32>
    %14 = vector.broadcast %12 : vector<8x1xi32> to vector<8x8xi32>
    %15 = arith.cmpi eq, %14, %13 : vector<8x8xi32>
    %cst_7 = arith.constant 1.000000e+00 : f32
    %cst_8 = arith.constant 0.000000e+00 : f32
    %16 = vector.broadcast %cst_7 : f32 to vector<8x8xf32>
    %17 = vector.broadcast %cst_8 : f32 to vector<8x8xf32>
    %18 = arith.select %15, %16, %17 : vector<8x8xi1>, vector<8x8xf32>
    %cst_9 = arith.constant dense<0.000000e+00> : vector<8x32xf32>
    %19 = tpu.matmul %18, %1, %cst_9 {dimension_numbers = #tpu.dot_dimension_numbers<[1], [0], [0], [1], [0, 0, 1, 1], [], []>} : vector<8x8xf32>, vector<8x32xf32>, vector<8x32xf32> -> vector<8x32xf32>
    %20 = vector.extract_strided_slice %3 {offsets = [0, 2], sizes = [8, 1], strides = [1, 1]} : vector<8x4xi32> to vector<8x1xi32>
    %21 = tpu.iota {dimensions = array<i32: 1>} : vector<8x8xi32>
    %22 = vector.broadcast %20 : vector<8x1xi32> to vector<8x8xi32>
    %23 = arith.cmpi eq, %22, %21 : vector<8x8xi32>
    %cst_10 = arith.constant 1.000000e+00 : f32
    %cst_11 = arith.constant 0.000000e+00 : f32
    %24 = vector.broadcast %cst_10 : f32 to vector<8x8xf32>
    %25 = vector.broadcast %cst_11 : f32 to vector<8x8xf32>
    %26 = arith.select %23, %24, %25 : vector<8x8xi1>, vector<8x8xf32>
    %cst_12 = arith.constant dense<0.000000e+00> : vector<8x32xf32>
    %27 = tpu.matmul %26, %1, %cst_12 {dimension_numbers = #tpu.dot_dimension_numbers<[1], [0], [0], [1], [0, 0, 1, 1], [], []>} : vector<8x8xf32>, vector<8x32xf32>, vector<8x32xf32> -> vector<8x32xf32>
    %28 = vector.extract_strided_slice %3 {offsets = [0, 3], sizes = [8, 1], strides = [1, 1]} : vector<8x4xi32> to vector<8x1xi32>
    %29 = tpu.iota {dimensions = array<i32: 1>} : vector<8x8xi32>
    %30 = vector.broadcast %28 : vector<8x1xi32> to vector<8x8xi32>
    %31 = arith.cmpi eq, %30, %29 : vector<8x8xi32>
    %cst_13 = arith.constant 1.000000e+00 : f32
    %cst_14 = arith.constant 0.000000e+00 : f32
    %32 = vector.broadcast %cst_13 : f32 to vector<8x8xf32>
    %33 = vector.broadcast %cst_14 : f32 to vector<8x8xf32>
    %34 = arith.select %31, %32, %33 : vector<8x8xi1>, vector<8x8xf32>
    %cst_15 = arith.constant dense<0.000000e+00> : vector<8x32xf32>
    %35 = tpu.matmul %34, %1, %cst_15 {dimension_numbers = #tpu.dot_dimension_numbers<[1], [0], [0], [1], [0, 0, 1, 1], [], []>} : vector<8x8xf32>, vector<8x32xf32>, vector<8x32xf32> -> vector<8x32xf32>
    %36 = arith.addf %11, %27 : vector<8x32xf32>
    %37 = arith.addf %19, %35 : vector<8x32xf32>
    %38 = arith.subf %11, %27 : vector<8x32xf32>
    %39 = math.absf %38 : vector<8x32xf32>
    %40 = arith.subf %19, %35 : vector<8x32xf32>
    %41 = math.absf %40 : vector<8x32xf32>
    %c0_16 = arith.constant 0 : index
    %c0_17 = arith.constant 0 : index
    %42 = vector.load %arg6[%c0_16, %c0_17] : memref<160x16xf32, #tpu.memory_space<vmem>>, vector<32x16xf32>
    %cst_18 = arith.constant dense<0.000000e+00> : vector<8x16xf32>
    %43 = tpu.matmul %1, %42, %cst_18 {dimension_numbers = #tpu.dot_dimension_numbers<[1], [0], [0], [1], [0, 0, 1, 1], [], []>} : vector<8x32xf32>, vector<32x16xf32>, vector<8x16xf32> -> vector<8x16xf32>
    %c32 = arith.constant 32 : index
    %c0_19 = arith.constant 0 : index
    %44 = vector.load %arg6[%c32, %c0_19] : memref<160x16xf32, #tpu.memory_space<vmem>>, vector<32x16xf32>
    %cst_20 = arith.constant dense<0.000000e+00> : vector<8x16xf32>
    %45 = tpu.matmul %36, %44, %cst_20 {dimension_numbers = #tpu.dot_dimension_numbers<[1], [0], [0], [1], [0, 0, 1, 1], [], []>} : vector<8x32xf32>, vector<32x16xf32>, vector<8x16xf32> -> vector<8x16xf32>
    %46 = arith.addf %43, %45 : vector<8x16xf32>
    %c64 = arith.constant 64 : index
    %c0_21 = arith.constant 0 : index
    %47 = vector.load %arg6[%c64, %c0_21] : memref<160x16xf32, #tpu.memory_space<vmem>>, vector<32x16xf32>
    %cst_22 = arith.constant dense<0.000000e+00> : vector<8x16xf32>
    %48 = tpu.matmul %37, %47, %cst_22 {dimension_numbers = #tpu.dot_dimension_numbers<[1], [0], [0], [1], [0, 0, 1, 1], [], []>} : vector<8x32xf32>, vector<32x16xf32>, vector<8x16xf32> -> vector<8x16xf32>
    %49 = arith.addf %46, %48 : vector<8x16xf32>
    %c96 = arith.constant 96 : index
    %c0_23 = arith.constant 0 : index
    %50 = vector.load %arg6[%c96, %c0_23] : memref<160x16xf32, #tpu.memory_space<vmem>>, vector<32x16xf32>
    %cst_24 = arith.constant dense<0.000000e+00> : vector<8x16xf32>
    %51 = tpu.matmul %39, %50, %cst_24 {dimension_numbers = #tpu.dot_dimension_numbers<[1], [0], [0], [1], [0, 0, 1, 1], [], []>} : vector<8x32xf32>, vector<32x16xf32>, vector<8x16xf32> -> vector<8x16xf32>
    %52 = arith.addf %49, %51 : vector<8x16xf32>
    %c128 = arith.constant 128 : index
    %c0_25 = arith.constant 0 : index
    %53 = vector.load %arg6[%c128, %c0_25] : memref<160x16xf32, #tpu.memory_space<vmem>>, vector<32x16xf32>
    %cst_26 = arith.constant dense<0.000000e+00> : vector<8x16xf32>
    %54 = tpu.matmul %41, %53, %cst_26 {dimension_numbers = #tpu.dot_dimension_numbers<[1], [0], [0], [1], [0, 0, 1, 1], [], []>} : vector<8x32xf32>, vector<32x16xf32>, vector<8x16xf32> -> vector<8x16xf32>
    %55 = arith.addf %52, %54 : vector<8x16xf32>
    %c0_27 = arith.constant 0 : index
    %c0_28 = arith.constant 0 : index
    %56 = vector.load %arg7[%c0_27, %c0_28] : memref<1x16xf32, #tpu.memory_space<vmem>>, vector<1x16xf32>
    %57 = vector.broadcast %56 : vector<1x16xf32> to vector<8x16xf32>
    %58 = arith.addf %55, %57 : vector<8x16xf32>
    %c0_29 = arith.constant 0 : index
    %c0_30 = arith.constant 0 : index
    %c0_31 = arith.constant 0 : index
    %59 = vector.load %arg4[%c0_29, %c0_30, %c0_31] : memref<1x16x1xi32, #tpu.memory_space<vmem>>, vector<1x16x1xi32>
    %60 = vector.shape_cast %59 : vector<1x16x1xi32> to vector<16x1xi32>
    %61 = tpu.iota {dimensions = array<i32: 1>} : vector<16x8xi32>
    %62 = vector.broadcast %60 : vector<16x1xi32> to vector<16x8xi32>
    %63 = arith.cmpi eq, %62, %61 : vector<16x8xi32>
    %cst_32 = arith.constant 1.000000e+00 : f32
    %cst_33 = arith.constant 0.000000e+00 : f32
    %64 = vector.broadcast %cst_32 : f32 to vector<16x8xf32>
    %65 = vector.broadcast %cst_33 : f32 to vector<16x8xf32>
    %66 = arith.select %63, %64, %65 : vector<16x8xi1>, vector<16x8xf32>
    %cst_34 = arith.constant dense<0.000000e+00> : vector<16x16xf32>
    %67 = tpu.matmul %66, %58, %cst_34 {dimension_numbers = #tpu.dot_dimension_numbers<[1], [0], [0], [1], [0, 0, 1, 1], [], []>} : vector<16x8xf32>, vector<8x16xf32>, vector<16x16xf32> -> vector<16x16xf32>
    %c0_35 = arith.constant 0 : index
    %c0_36 = arith.constant 0 : index
    %c0_37 = arith.constant 0 : index
    %68 = vector.load %arg5[%c0_35, %c0_36, %c0_37] : memref<1x16x16xf32, #tpu.memory_space<vmem>>, vector<1x16x16xf32>
    %69 = vector.shape_cast %68 : vector<1x16x16xf32> to vector<16x16xf32>
    %70 = arith.addf %67, %69 : vector<16x16xf32>
    %c0_38 = arith.constant 0 : index
    %c0_39 = arith.constant 0 : index
    %c0_40 = arith.constant 0 : index
    %71 = vector.load %arg3[%c0_38, %c0_39, %c0_40] : memref<1x16x4xi32, #tpu.memory_space<vmem>>, vector<1x16x4xi32>
    %72 = vector.shape_cast %71 : vector<1x16x4xi32> to vector<16x4xi32>
    %73 = vector.extract_strided_slice %72 {offsets = [0, 0], sizes = [16, 1], strides = [1, 1]} : vector<16x4xi32> to vector<16x1xi32>
    %74 = tpu.iota {dimensions = array<i32: 1>} : vector<16x16xi32>
    %75 = vector.broadcast %73 : vector<16x1xi32> to vector<16x16xi32>
    %76 = arith.cmpi eq, %75, %74 : vector<16x16xi32>
    %cst_41 = arith.constant 1.000000e+00 : f32
    %cst_42 = arith.constant 0.000000e+00 : f32
    %77 = vector.broadcast %cst_41 : f32 to vector<16x16xf32>
    %78 = vector.broadcast %cst_42 : f32 to vector<16x16xf32>
    %79 = arith.select %76, %77, %78 : vector<16x16xi1>, vector<16x16xf32>
    %cst_43 = arith.constant dense<0.000000e+00> : vector<16x16xf32>
    %80 = tpu.matmul %79, %70, %cst_43 {dimension_numbers = #tpu.dot_dimension_numbers<[1], [0], [0], [1], [0, 0, 1, 1], [], []>} : vector<16x16xf32>, vector<16x16xf32>, vector<16x16xf32> -> vector<16x16xf32>
    %81 = vector.extract_strided_slice %72 {offsets = [0, 1], sizes = [16, 1], strides = [1, 1]} : vector<16x4xi32> to vector<16x1xi32>
    %82 = tpu.iota {dimensions = array<i32: 1>} : vector<16x16xi32>
    %83 = vector.broadcast %81 : vector<16x1xi32> to vector<16x16xi32>
    %84 = arith.cmpi eq, %83, %82 : vector<16x16xi32>
    %cst_44 = arith.constant 1.000000e+00 : f32
    %cst_45 = arith.constant 0.000000e+00 : f32
    %85 = vector.broadcast %cst_44 : f32 to vector<16x16xf32>
    %86 = vector.broadcast %cst_45 : f32 to vector<16x16xf32>
    %87 = arith.select %84, %85, %86 : vector<16x16xi1>, vector<16x16xf32>
    %cst_46 = arith.constant dense<0.000000e+00> : vector<16x16xf32>
    %88 = tpu.matmul %87, %70, %cst_46 {dimension_numbers = #tpu.dot_dimension_numbers<[1], [0], [0], [1], [0, 0, 1, 1], [], []>} : vector<16x16xf32>, vector<16x16xf32>, vector<16x16xf32> -> vector<16x16xf32>
    %89 = vector.extract_strided_slice %72 {offsets = [0, 2], sizes = [16, 1], strides = [1, 1]} : vector<16x4xi32> to vector<16x1xi32>
    %90 = tpu.iota {dimensions = array<i32: 1>} : vector<16x16xi32>
    %91 = vector.broadcast %89 : vector<16x1xi32> to vector<16x16xi32>
    %92 = arith.cmpi eq, %91, %90 : vector<16x16xi32>
    %cst_47 = arith.constant 1.000000e+00 : f32
    %cst_48 = arith.constant 0.000000e+00 : f32
    %93 = vector.broadcast %cst_47 : f32 to vector<16x16xf32>
    %94 = vector.broadcast %cst_48 : f32 to vector<16x16xf32>
    %95 = arith.select %92, %93, %94 : vector<16x16xi1>, vector<16x16xf32>
    %cst_49 = arith.constant dense<0.000000e+00> : vector<16x16xf32>
    %96 = tpu.matmul %95, %70, %cst_49 {dimension_numbers = #tpu.dot_dimension_numbers<[1], [0], [0], [1], [0, 0, 1, 1], [], []>} : vector<16x16xf32>, vector<16x16xf32>, vector<16x16xf32> -> vector<16x16xf32>
    %97 = vector.extract_strided_slice %72 {offsets = [0, 3], sizes = [16, 1], strides = [1, 1]} : vector<16x4xi32> to vector<16x1xi32>
    %98 = tpu.iota {dimensions = array<i32: 1>} : vector<16x16xi32>
    %99 = vector.broadcast %97 : vector<16x1xi32> to vector<16x16xi32>
    %100 = arith.cmpi eq, %99, %98 : vector<16x16xi32>
    %cst_50 = arith.constant 1.000000e+00 : f32
    %cst_51 = arith.constant 0.000000e+00 : f32
    %101 = vector.broadcast %cst_50 : f32 to vector<16x16xf32>
    %102 = vector.broadcast %cst_51 : f32 to vector<16x16xf32>
    %103 = arith.select %100, %101, %102 : vector<16x16xi1>, vector<16x16xf32>
    %cst_52 = arith.constant dense<0.000000e+00> : vector<16x16xf32>
    %104 = tpu.matmul %103, %70, %cst_52 {dimension_numbers = #tpu.dot_dimension_numbers<[1], [0], [0], [1], [0, 0, 1, 1], [], []>} : vector<16x16xf32>, vector<16x16xf32>, vector<16x16xf32> -> vector<16x16xf32>
    %105 = arith.addf %80, %96 : vector<16x16xf32>
    %106 = arith.addf %88, %104 : vector<16x16xf32>
    %107 = arith.subf %80, %96 : vector<16x16xf32>
    %108 = math.absf %107 : vector<16x16xf32>
    %109 = arith.subf %88, %104 : vector<16x16xf32>
    %110 = math.absf %109 : vector<16x16xf32>
    %c0_53 = arith.constant 0 : index
    %c0_54 = arith.constant 0 : index
    %111 = vector.load %arg8[%c0_53, %c0_54] : memref<80x16xf32, #tpu.memory_space<vmem>>, vector<16x16xf32>
    %cst_55 = arith.constant dense<0.000000e+00> : vector<16x16xf32>
    %112 = tpu.matmul %70, %111, %cst_55 {dimension_numbers = #tpu.dot_dimension_numbers<[1], [0], [0], [1], [0, 0, 1, 1], [], []>} : vector<16x16xf32>, vector<16x16xf32>, vector<16x16xf32> -> vector<16x16xf32>
    %c16 = arith.constant 16 : index
    %c0_56 = arith.constant 0 : index
    %113 = vector.load %arg8[%c16, %c0_56] : memref<80x16xf32, #tpu.memory_space<vmem>>, vector<16x16xf32>
    %cst_57 = arith.constant dense<0.000000e+00> : vector<16x16xf32>
    %114 = tpu.matmul %105, %113, %cst_57 {dimension_numbers = #tpu.dot_dimension_numbers<[1], [0], [0], [1], [0, 0, 1, 1], [], []>} : vector<16x16xf32>, vector<16x16xf32>, vector<16x16xf32> -> vector<16x16xf32>
    %115 = arith.addf %112, %114 : vector<16x16xf32>
    %c32_58 = arith.constant 32 : index
    %c0_59 = arith.constant 0 : index
    %116 = vector.load %arg8[%c32_58, %c0_59] : memref<80x16xf32, #tpu.memory_space<vmem>>, vector<16x16xf32>
    %cst_60 = arith.constant dense<0.000000e+00> : vector<16x16xf32>
    %117 = tpu.matmul %106, %116, %cst_60 {dimension_numbers = #tpu.dot_dimension_numbers<[1], [0], [0], [1], [0, 0, 1, 1], [], []>} : vector<16x16xf32>, vector<16x16xf32>, vector<16x16xf32> -> vector<16x16xf32>
    %118 = arith.addf %115, %117 : vector<16x16xf32>
    %c48 = arith.constant 48 : index
    %c0_61 = arith.constant 0 : index
    %119 = vector.load %arg8[%c48, %c0_61] : memref<80x16xf32, #tpu.memory_space<vmem>>, vector<16x16xf32>
    %cst_62 = arith.constant dense<0.000000e+00> : vector<16x16xf32>
    %120 = tpu.matmul %108, %119, %cst_62 {dimension_numbers = #tpu.dot_dimension_numbers<[1], [0], [0], [1], [0, 0, 1, 1], [], []>} : vector<16x16xf32>, vector<16x16xf32>, vector<16x16xf32> -> vector<16x16xf32>
    %121 = arith.addf %118, %120 : vector<16x16xf32>
    %c64_63 = arith.constant 64 : index
    %c0_64 = arith.constant 0 : index
    %122 = vector.load %arg8[%c64_63, %c0_64] : memref<80x16xf32, #tpu.memory_space<vmem>>, vector<16x16xf32>
    %cst_65 = arith.constant dense<0.000000e+00> : vector<16x16xf32>
    %123 = tpu.matmul %110, %122, %cst_65 {dimension_numbers = #tpu.dot_dimension_numbers<[1], [0], [0], [1], [0, 0, 1, 1], [], []>} : vector<16x16xf32>, vector<16x16xf32>, vector<16x16xf32> -> vector<16x16xf32>
    %124 = arith.addf %121, %123 : vector<16x16xf32>
    %c0_66 = arith.constant 0 : index
    %c0_67 = arith.constant 0 : index
    %125 = vector.load %arg9[%c0_66, %c0_67] : memref<1x16xf32, #tpu.memory_space<vmem>>, vector<1x16xf32>
    %126 = vector.broadcast %125 : vector<1x16xf32> to vector<16x16xf32>
    %127 = arith.addf %124, %126 : vector<16x16xf32>
    %cst_68 = arith.constant dense<0.000000e+00> : vector<16xf32>
    %128 = vector.multi_reduction <add>, %127, %cst_68 [0] : vector<16x16xf32> to vector<16xf32>
    %129 = vector.shape_cast %128 : vector<16xf32> to vector<1x16xf32>
    %cst_69 = arith.constant 1.600000e+01 : f32
    %130 = vector.broadcast %cst_69 : f32 to vector<1x16xf32>
    %131 = arith.divf %129, %130 : vector<1x16xf32>
    %132 = vector.broadcast %131 : vector<1x16xf32> to vector<16x16xf32>
    %133 = arith.subf %127, %132 : vector<16x16xf32>
    %134 = arith.mulf %133, %133 : vector<16x16xf32>
    %cst_70 = arith.constant dense<0.000000e+00> : vector<16xf32>
    %135 = vector.multi_reduction <add>, %134, %cst_70 [0] : vector<16x16xf32> to vector<16xf32>
    %136 = vector.shape_cast %135 : vector<16xf32> to vector<1x16xf32>
    %cst_71 = arith.constant 1.600000e+01 : f32
    %137 = vector.broadcast %cst_71 : f32 to vector<1x16xf32>
    %138 = arith.divf %136, %137 : vector<1x16xf32>
    %cst_72 = arith.constant 9.99999974E-6 : f32
    %139 = vector.broadcast %cst_72 : f32 to vector<1x16xf32>
    %140 = arith.addf %138, %139 : vector<1x16xf32>
    %141 = math.rsqrt %140 : vector<1x16xf32>
    %142 = vector.broadcast %141 : vector<1x16xf32> to vector<16x16xf32>
    %143 = arith.mulf %133, %142 : vector<16x16xf32>
    %cst_73 = arith.constant 0.000000e+00 : f32
    %144 = vector.broadcast %cst_73 : f32 to vector<16x16xf32>
    %145 = arith.maximumf %143, %144 : vector<16x16xf32>
    %c0_74 = arith.constant 0 : index
    %c0_75 = arith.constant 0 : index
    %c0_76 = arith.constant 0 : index
    %146 = vector.load %arg3[%c0_74, %c0_75, %c0_76] : memref<1x16x4xi32, #tpu.memory_space<vmem>>, vector<1x16x4xi32>
    %147 = vector.shape_cast %146 : vector<1x16x4xi32> to vector<16x4xi32>
    %148 = vector.extract_strided_slice %147 {offsets = [0, 0], sizes = [16, 1], strides = [1, 1]} : vector<16x4xi32> to vector<16x1xi32>
    %149 = tpu.iota {dimensions = array<i32: 1>} : vector<16x16xi32>
    %150 = vector.broadcast %148 : vector<16x1xi32> to vector<16x16xi32>
    %151 = arith.cmpi eq, %150, %149 : vector<16x16xi32>
    %cst_77 = arith.constant 1.000000e+00 : f32
    %cst_78 = arith.constant 0.000000e+00 : f32
    %152 = vector.broadcast %cst_77 : f32 to vector<16x16xf32>
    %153 = vector.broadcast %cst_78 : f32 to vector<16x16xf32>
    %154 = arith.select %151, %152, %153 : vector<16x16xi1>, vector<16x16xf32>
    %cst_79 = arith.constant dense<0.000000e+00> : vector<16x16xf32>
    %155 = tpu.matmul %154, %145, %cst_79 {dimension_numbers = #tpu.dot_dimension_numbers<[1], [0], [0], [1], [0, 0, 1, 1], [], []>} : vector<16x16xf32>, vector<16x16xf32>, vector<16x16xf32> -> vector<16x16xf32>
    %156 = vector.extract_strided_slice %147 {offsets = [0, 1], sizes = [16, 1], strides = [1, 1]} : vector<16x4xi32> to vector<16x1xi32>
    %157 = tpu.iota {dimensions = array<i32: 1>} : vector<16x16xi32>
    %158 = vector.broadcast %156 : vector<16x1xi32> to vector<16x16xi32>
    %159 = arith.cmpi eq, %158, %157 : vector<16x16xi32>
    %cst_80 = arith.constant 1.000000e+00 : f32
    %cst_81 = arith.constant 0.000000e+00 : f32
    %160 = vector.broadcast %cst_80 : f32 to vector<16x16xf32>
    %161 = vector.broadcast %cst_81 : f32 to vector<16x16xf32>
    %162 = arith.select %159, %160, %161 : vector<16x16xi1>, vector<16x16xf32>
    %cst_82 = arith.constant dense<0.000000e+00> : vector<16x16xf32>
    %163 = tpu.matmul %162, %145, %cst_82 {dimension_numbers = #tpu.dot_dimension_numbers<[1], [0], [0], [1], [0, 0, 1, 1], [], []>} : vector<16x16xf32>, vector<16x16xf32>, vector<16x16xf32> -> vector<16x16xf32>
    %164 = vector.extract_strided_slice %147 {offsets = [0, 2], sizes = [16, 1], strides = [1, 1]} : vector<16x4xi32> to vector<16x1xi32>
    %165 = tpu.iota {dimensions = array<i32: 1>} : vector<16x16xi32>
    %166 = vector.broadcast %164 : vector<16x1xi32> to vector<16x16xi32>
    %167 = arith.cmpi eq, %166, %165 : vector<16x16xi32>
    %cst_83 = arith.constant 1.000000e+00 : f32
    %cst_84 = arith.constant 0.000000e+00 : f32
    %168 = vector.broadcast %cst_83 : f32 to vector<16x16xf32>
    %169 = vector.broadcast %cst_84 : f32 to vector<16x16xf32>
    %170 = arith.select %167, %168, %169 : vector<16x16xi1>, vector<16x16xf32>
    %cst_85 = arith.constant dense<0.000000e+00> : vector<16x16xf32>
    %171 = tpu.matmul %170, %145, %cst_85 {dimension_numbers = #tpu.dot_dimension_numbers<[1], [0], [0], [1], [0, 0, 1, 1], [], []>} : vector<16x16xf32>, vector<16x16xf32>, vector<16x16xf32> -> vector<16x16xf32>
    %172 = vector.extract_strided_slice %147 {offsets = [0, 3], sizes = [16, 1], strides = [1, 1]} : vector<16x4xi32> to vector<16x1xi32>
    %173 = tpu.iota {dimensions = array<i32: 1>} : vector<16x16xi32>
    %174 = vector.broadcast %172 : vector<16x1xi32> to vector<16x16xi32>
    %175 = arith.cmpi eq, %174, %173 : vector<16x16xi32>
    %cst_86 = arith.constant 1.000000e+00 : f32
    %cst_87 = arith.constant 0.000000e+00 : f32
    %176 = vector.broadcast %cst_86 : f32 to vector<16x16xf32>
    %177 = vector.broadcast %cst_87 : f32 to vector<16x16xf32>
    %178 = arith.select %175, %176, %177 : vector<16x16xi1>, vector<16x16xf32>
    %cst_88 = arith.constant dense<0.000000e+00> : vector<16x16xf32>
    %179 = tpu.matmul %178, %145, %cst_88 {dimension_numbers = #tpu.dot_dimension_numbers<[1], [0], [0], [1], [0, 0, 1, 1], [], []>} : vector<16x16xf32>, vector<16x16xf32>, vector<16x16xf32> -> vector<16x16xf32>
    %180 = arith.addf %155, %171 : vector<16x16xf32>
    %181 = arith.addf %163, %179 : vector<16x16xf32>
    %182 = arith.subf %155, %171 : vector<16x16xf32>
    %183 = math.absf %182 : vector<16x16xf32>
    %184 = arith.subf %163, %179 : vector<16x16xf32>
    %185 = math.absf %184 : vector<16x16xf32>
    %c0_89 = arith.constant 0 : index
    %c0_90 = arith.constant 0 : index
    %186 = vector.load %arg10[%c0_89, %c0_90] : memref<80x16xf32, #tpu.memory_space<vmem>>, vector<16x16xf32>
    %cst_91 = arith.constant dense<0.000000e+00> : vector<16x16xf32>
    %187 = tpu.matmul %145, %186, %cst_91 {dimension_numbers = #tpu.dot_dimension_numbers<[1], [0], [0], [1], [0, 0, 1, 1], [], []>} : vector<16x16xf32>, vector<16x16xf32>, vector<16x16xf32> -> vector<16x16xf32>
    %c16_92 = arith.constant 16 : index
    %c0_93 = arith.constant 0 : index
    %188 = vector.load %arg10[%c16_92, %c0_93] : memref<80x16xf32, #tpu.memory_space<vmem>>, vector<16x16xf32>
    %cst_94 = arith.constant dense<0.000000e+00> : vector<16x16xf32>
    %189 = tpu.matmul %180, %188, %cst_94 {dimension_numbers = #tpu.dot_dimension_numbers<[1], [0], [0], [1], [0, 0, 1, 1], [], []>} : vector<16x16xf32>, vector<16x16xf32>, vector<16x16xf32> -> vector<16x16xf32>
    %190 = arith.addf %187, %189 : vector<16x16xf32>
    %c32_95 = arith.constant 32 : index
    %c0_96 = arith.constant 0 : index
    %191 = vector.load %arg10[%c32_95, %c0_96] : memref<80x16xf32, #tpu.memory_space<vmem>>, vector<16x16xf32>
    %cst_97 = arith.constant dense<0.000000e+00> : vector<16x16xf32>
    %192 = tpu.matmul %181, %191, %cst_97 {dimension_numbers = #tpu.dot_dimension_numbers<[1], [0], [0], [1], [0, 0, 1, 1], [], []>} : vector<16x16xf32>, vector<16x16xf32>, vector<16x16xf32> -> vector<16x16xf32>
    %193 = arith.addf %190, %192 : vector<16x16xf32>
    %c48_98 = arith.constant 48 : index
    %c0_99 = arith.constant 0 : index
    %194 = vector.load %arg10[%c48_98, %c0_99] : memref<80x16xf32, #tpu.memory_space<vmem>>, vector<16x16xf32>
    %cst_100 = arith.constant dense<0.000000e+00> : vector<16x16xf32>
    %195 = tpu.matmul %183, %194, %cst_100 {dimension_numbers = #tpu.dot_dimension_numbers<[1], [0], [0], [1], [0, 0, 1, 1], [], []>} : vector<16x16xf32>, vector<16x16xf32>, vector<16x16xf32> -> vector<16x16xf32>
    %196 = arith.addf %193, %195 : vector<16x16xf32>
    %c64_101 = arith.constant 64 : index
    %c0_102 = arith.constant 0 : index
    %197 = vector.load %arg10[%c64_101, %c0_102] : memref<80x16xf32, #tpu.memory_space<vmem>>, vector<16x16xf32>
    %cst_103 = arith.constant dense<0.000000e+00> : vector<16x16xf32>
    %198 = tpu.matmul %185, %197, %cst_103 {dimension_numbers = #tpu.dot_dimension_numbers<[1], [0], [0], [1], [0, 0, 1, 1], [], []>} : vector<16x16xf32>, vector<16x16xf32>, vector<16x16xf32> -> vector<16x16xf32>
    %199 = arith.addf %196, %198 : vector<16x16xf32>
    %c0_104 = arith.constant 0 : index
    %c0_105 = arith.constant 0 : index
    %200 = vector.load %arg11[%c0_104, %c0_105] : memref<1x16xf32, #tpu.memory_space<vmem>>, vector<1x16xf32>
    %201 = vector.broadcast %200 : vector<1x16xf32> to vector<16x16xf32>
    %202 = arith.addf %199, %201 : vector<16x16xf32>
    %cst_106 = arith.constant dense<0.000000e+00> : vector<16xf32>
    %203 = vector.multi_reduction <add>, %202, %cst_106 [0] : vector<16x16xf32> to vector<16xf32>
    %204 = vector.shape_cast %203 : vector<16xf32> to vector<1x16xf32>
    %cst_107 = arith.constant 1.600000e+01 : f32
    %205 = vector.broadcast %cst_107 : f32 to vector<1x16xf32>
    %206 = arith.divf %204, %205 : vector<1x16xf32>
    %207 = vector.broadcast %206 : vector<1x16xf32> to vector<16x16xf32>
    %208 = arith.subf %202, %207 : vector<16x16xf32>
    %209 = arith.mulf %208, %208 : vector<16x16xf32>
    %cst_108 = arith.constant dense<0.000000e+00> : vector<16xf32>
    %210 = vector.multi_reduction <add>, %209, %cst_108 [0] : vector<16x16xf32> to vector<16xf32>
    %211 = vector.shape_cast %210 : vector<16xf32> to vector<1x16xf32>
    %cst_109 = arith.constant 1.600000e+01 : f32
    %212 = vector.broadcast %cst_109 : f32 to vector<1x16xf32>
    %213 = arith.divf %211, %212 : vector<1x16xf32>
    %cst_110 = arith.constant 9.99999974E-6 : f32
    %214 = vector.broadcast %cst_110 : f32 to vector<1x16xf32>
    %215 = arith.addf %213, %214 : vector<1x16xf32>
    %216 = math.rsqrt %215 : vector<1x16xf32>
    %217 = vector.broadcast %216 : vector<1x16xf32> to vector<16x16xf32>
    %218 = arith.mulf %208, %217 : vector<16x16xf32>
    %219 = arith.addf %218, %145 : vector<16x16xf32>
    %cst_111 = arith.constant 0.000000e+00 : f32
    %220 = vector.broadcast %cst_111 : f32 to vector<16x16xf32>
    %221 = arith.maximumf %219, %220 : vector<16x16xf32>
    %c0_112 = arith.constant 0 : index
    %c0_113 = arith.constant 0 : index
    %c0_114 = arith.constant 0 : index
    %222 = vector.load %arg12[%c0_112, %c0_113, %c0_114] : memref<1x16x16xf32, #tpu.memory_space<vmem>>, vector<1x16x16xf32>
    %223 = vector.shape_cast %222 : vector<1x16x16xf32> to vector<16x16xf32>
    %224 = vector.shape_cast %221 : vector<16x16xf32> to vector<1x16x16xf32>
    tpu.vector_store %arg12[%c0_112, %c0_113, %c0_114], %224 {strides = array<i32>} : memref<1x16x16xf32, #tpu.memory_space<vmem>>, vector<1x16x16xf32>,
    return
  }
  func.func @transform_0(%arg0: i32) -> (i32, i32, i32) {
    %c0_i32 = arith.constant 0 : i32
    %c0_i32_0 = arith.constant 0 : i32
    %c0_i32_1 = arith.constant 0 : i32
    return %arg0, %c0_i32, %c0_i32_0 : i32, i32, i32
  }
  func.func @transform_1(%arg0: i32) -> (i32, i32, i32) {
    %c0_i32 = arith.constant 0 : i32
    %c0_i32_0 = arith.constant 0 : i32
    %c0_i32_1 = arith.constant 0 : i32
    return %arg0, %c0_i32, %c0_i32_0 : i32, i32, i32
  }
  func.func @transform_2(%arg0: i32) -> (i32, i32, i32) {
    %c0_i32 = arith.constant 0 : i32
    %c0_i32_0 = arith.constant 0 : i32
    %c0_i32_1 = arith.constant 0 : i32
    return %arg0, %c0_i32, %c0_i32_0 : i32, i32, i32
  }
  func.func @transform_3(%arg0: i32) -> (i32, i32, i32) {
    %c0_i32 = arith.constant 0 : i32
    %c0_i32_0 = arith.constant 0 : i32
    %c0_i32_1 = arith.constant 0 : i32
    return %arg0, %c0_i32, %c0_i32_0 : i32, i32, i32
  }
  func.func @transform_4(%arg0: i32) -> (i32, i32, i32) {
    %c0_i32 = arith.constant 0 : i32
    %c0_i32_0 = arith.constant 0 : i32
    %c0_i32_1 = arith.constant 0 : i32
    return %arg0, %c0_i32, %c0_i32_0 : i32, i32, i32
  }
  func.func @transform_5(%arg0: i32) -> (i32, i32) {
    %c0_i32 = arith.constant 0 : i32
    %c0_i32_0 = arith.constant 0 : i32
    %c0_i32_1 = arith.constant 0 : i32
    return %c0_i32, %c0_i32_0 : i32, i32
  }
  func.func @transform_6(%arg0: i32) -> (i32, i32) {
    %c0_i32 = arith.constant 0 : i32
    %c0_i32_0 = arith.constant 0 : i32
    %c0_i32_1 = arith.constant 0 : i32
    return %c0_i32, %c0_i32_0 : i32, i32
  }
  func.func @transform_7(%arg0: i32) -> (i32, i32) {
    %c0_i32 = arith.constant 0 : i32
    %c0_i32_0 = arith.constant 0 : i32
    %c0_i32_1 = arith.constant 0 : i32
    return %c0_i32, %c0_i32_0 : i32, i32
  }
  func.func @transform_8(%arg0: i32) -> (i32, i32) {
    %c0_i32 = arith.constant 0 : i32
    %c0_i32_0 = arith.constant 0 : i32
    %c0_i32_1 = arith.constant 0 : i32
    return %c0_i32, %c0_i32_0 : i32, i32
  }
  func.func @transform_9(%arg0: i32) -> (i32, i32) {
    %c0_i32 = arith.constant 0 : i32
    %c0_i32_0 = arith.constant 0 : i32
    %c0_i32_1 = arith.constant 0 : i32
    return %c0_i32, %c0_i32_0 : i32, i32
  }
  func.func @transform_10(%arg0: i32) -> (i32, i32) {
    %c0_i32 = arith.constant 0 : i32
    %c0_i32_0 = arith.constant 0 : i32
    %c0_i32_1 = arith.constant 0 : i32
    return %c0_i32, %c0_i32_0 : i32, i32
  }
  func.func @transform_11(%arg0: i32) -> (i32, i32, i32) {
    %c0_i32 = arith.constant 0 : i32
    %c0_i32_0 = arith.constant 0 : i32
    %c0_i32_1 = arith.constant 0 : i32
    return %arg0, %c0_i32, %c0_i32_0 : i32, i32, i32
  }
}

</mosaic_0001>

<llo_original>
// kernel: tpu_custom_call.1
$region0: #{tpu_custom_call.1}
  #allocation0 [shape = 'u32[]', space=smem, size = 0x4, offset = 0x4, fixed_abs, tag = 'smem constant byte address 0x4 - core index']
  #allocation1 [shape = 'u32[144,128]{1,0:T(1,128)}', space=vmem, size = 0x12000, scoped, tag = 'internal scratch']
  %s0 = inlined_call_operand.vmem [shape: f32[2,8,32], index: 0, kind: input, shape index: {}]
  %s1 = inlined_call_operand.vmem [shape: s32[2,8,4], index: 1, kind: input, shape index: {}]
  %s2 = inlined_call_operand.vmem [shape: s32[2,16,4], index: 2, kind: input, shape index: {}]
  %s3 = inlined_call_operand.vmem [shape: s32[2,16,1], index: 3, kind: input, shape index: {}]
  %s4 = inlined_call_operand.vmem [shape: f32[2,16,16], index: 4, kind: input, shape index: {}]
  %s5 = inlined_call_operand.vmem [shape: f32[160,16], index: 5, kind: input, shape index: {}]
  %s6 = inlined_call_operand.vmem [shape: f32[1,16], index: 6, kind: input, shape index: {}]
  %s7 = inlined_call_operand.vmem [shape: f32[80,16], index: 7, kind: input, shape index: {}]
  %s8 = inlined_call_operand.vmem [shape: f32[1,16], index: 8, kind: input, shape index: {}]
  %s9 = inlined_call_operand.vmem [shape: f32[80,16], index: 9, kind: input, shape index: {}]
  %s10 = inlined_call_operand.vmem [shape: f32[1,16], index: 10, kind: input, shape index: {}]
  %s11 = inlined_call_operand.hbm [shape: f32[2,16,16], index: 11, kind: output, shape index: {}]
  %s12 = sld [smem:[#allocation0]]
  $region77: #{tpu_custom_call.1} parent=0
    _
  %s14 = ssub.s32 1, %s12
  %s15 = scalar_select 0, %s14, %s12
  $region1: #{tpu_custom_call.1} parent=0
    #allocation2 [shape = 'u8[16384]{0}', space=vmem, size = 0x4000, scoped, tag = 'output window, operand 0']
    #allocation3 [shape = 's32[2]{0}', space=sflag, size = 0x8, scoped, tag = 'scoped memory for tpu_custom_call.1']
    %16 = vsyncpa [#allocation3], 0
    %s17 = scalar_lea.sflag [#allocation3], 1
    %18 = vsyncpa %s17, 0
    loop: start=0, step=1, limit=4
    $region2: #{tpu_custom_call.1} parent=1 // loop_pre_header
      _
    $region3: #{tpu_custom_call.1} parent=1 // loop_header
      %s20 = sphi 0, %s24
      %p21 = scmp.ge.s32.totalorder %s20, 4
      %s30 = sphi 0, %s32
      %s33 = sphi 0, %s30
      %s34 = sphi 0, %s33
      %s50 = sphi 0, %s34
      %s56 = sphi 0, %s58
      %s59 = sphi 0, %s56
      %s60 = sphi 0, %s59
      %s76 = sphi 0, %s60
      %s82 = sphi 0, %s84
      %s85 = sphi 0, %s82
      %s86 = sphi 0, %s85
      %s102 = sphi 0, %s86
      %s108 = sphi 0, %s110
      %s111 = sphi 0, %s108
      %s112 = sphi 0, %s111
      %s128 = sphi 0, %s112
      %s134 = sphi 0, %s136
      %s137 = sphi 0, %s134
      %s138 = sphi 0, %s137
      %s154 = sphi 0, %s138
      %s158 = sphi 0, %s158
      %s160 = sphi 0, %s158
      %s161 = sphi 0, %s160
      %s175 = sphi 0, %s161
      %s179 = sphi 0, %s179
      %s181 = sphi 0, %s179
      %s182 = sphi 0, %s181
      %s196 = sphi 0, %s182
      %s200 = sphi 0, %s200
      %s202 = sphi 0, %s200
      %s203 = sphi 0, %s202
      %s217 = sphi 0, %s203
      %s221 = sphi 0, %s221
      %s223 = sphi 0, %s221
      %s224 = sphi 0, %s223
      %s238 = sphi 0, %s224
      %s242 = sphi 0, %s242
      %s244 = sphi 0, %s242
      %s245 = sphi 0, %s244
      %s259 = sphi 0, %s245
      %s263 = sphi 0, %s263
      %s265 = sphi 0, %s263
      %s266 = sphi 0, %s265
      %s280 = sphi 0, %s266
      %s286 = sphi 0, %s288
      %s289 = sphi 0, %s286
      %s290 = sphi 0, %s289
      %s306 = sphi 0, %s290
    $region4: #{tpu_custom_call.1} parent=1 // loop_header_branch
      %23 = sbr.rel (%p21) target = $region8
    $region5: #{tpu_custom_call.1} parent=1 // loop_body
      %s25 = ssub.s32 %s20, 1
      %s26 = ssub.s32 %s20, 2
      %s27 = sadd.s32 %s20, 1
      %s28 = ssub.s32 %s20, %s27
      %p29 = scmp.eq.s32.totalorder %s28, 0
      %s31 = sadd.s32 %s30, 1
      %s32 = scalar_select %p29, %s30, %s31
      %p35 = pneg %p29
      %p36 = scmp.eq.s32.totalorder %s20, 1
      %p37 = por %p35, %p36
      %p38 = scmp.ne.s32.totalorder %s30, %s33
      %p39 = scmp.eq.s32.totalorder %s20, 0
      %p40 = por %p38, %p39
      %p41 = scmp.ne.s32.totalorder %s30, %s33
      %p42 = scmp.eq.s32.totalorder %s25, 1
      %p43 = por %p41, %p42
      %p44 = scmp.ne.s32.totalorder %s33, %s34
      %p45 = scmp.eq.s32.totalorder %s25, 0
      %p46 = por %p44, %p45
      %p47 = scmp.ne.s32.totalorder %s33, %s34
      %p48 = scmp.eq.s32.totalorder %s26, 1
      %p49 = por %p47, %p48
      %p51 = scmp.ne.s32.totalorder %s34, %s50
      %p52 = scmp.eq.s32.totalorder %s26, 0
      %p53 = por %p51, %p52
      %s54 = ssub.s32 %s20, %s27
      %p55 = scmp.eq.s32.totalorder %s54, 0
      %s57 = sadd.s32 %s56, 1
      %s58 = scalar_select %p55, %s56, %s57
      %p61 = pneg %p55
      %p62 = scmp.eq.s32.totalorder %s20, 1
      %p63 = por %p61, %p62
      %p64 = scmp.ne.s32.totalorder %s56, %s59
      %p65 = scmp.eq.s32.totalorder %s20, 0
      %p66 = por %p64, %p65
      %p67 = scmp.ne.s32.totalorder %s56, %s59
      %p68 = scmp.eq.s32.totalorder %s25, 1
      %p69 = por %p67, %p68
      %p70 = scmp.ne.s32.totalorder %s59, %s60
      %p71 = scmp.eq.s32.totalorder %s25, 0
      %p72 = por %p70, %p71
      %p73 = scmp.ne.s32.totalorder %s59, %s60
      %p74 = scmp.eq.s32.totalorder %s26, 1
      %p75 = por %p73, %p74
      %p77 = scmp.ne.s32.totalorder %s60, %s76
      %p78 = scmp.eq.s32.totalorder %s26, 0
      %p79 = por %p77, %p78
      %s80 = ssub.s32 %s20, %s27
      %p81 = scmp.eq.s32.totalorder %s80, 0
      %s83 = sadd.s32 %s82, 1
      %s84 = scalar_select %p81, %s82, %s83
      %p87 = pneg %p81
      %p88 = scmp.eq.s32.totalorder %s20, 1
      %p89 = por %p87, %p88
      %p90 = scmp.ne.s32.totalorder %s82, %s85
      %p91 = scmp.eq.s32.totalorder %s20, 0
      %p92 = por %p90, %p91
      %p93 = scmp.ne.s32.totalorder %s82, %s85
      %p94 = scmp.eq.s32.totalorder %s25, 1
      %p95 = por %p93, %p94
      %p96 = scmp.ne.s32.totalorder %s85, %s86
      %p97 = scmp.eq.s32.totalorder %s25, 0
      %p98 = por %p96, %p97
      %p99 = scmp.ne.s32.totalorder %s85, %s86
      %p100 = scmp.eq.s32.totalorder %s26, 1
      %p101 = por %p99, %p100
      %p103 = scmp.ne.s32.totalorder %s86, %s102
      %p104 = scmp.eq.s32.totalorder %s26, 0
      %p105 = por %p103, %p104
      %s106 = ssub.s32 %s20, %s27
      %p107 = scmp.eq.s32.totalorder %s106, 0
      %s109 = sadd.s32 %s108, 1
      %s110 = scalar_select %p107, %s108, %s109
      %p113 = pneg %p107
      %p114 = scmp.eq.s32.totalorder %s20, 1
      %p115 = por %p113, %p114
      %p116 = scmp.ne.s32.totalorder %s108, %s111
      %p117 = scmp.eq.s32.totalorder %s20, 0
      %p118 = por %p116, %p117
      %p119 = scmp.ne.s32.totalorder %s108, %s111
      %p120 = scmp.eq.s32.totalorder %s25, 1
      %p121 = por %p119, %p120
      %p122 = scmp.ne.s32.totalorder %s111, %s112
      %p123 = scmp.eq.s32.totalorder %s25, 0
      %p124 = por %p122, %p123
      %p125 = scmp.ne.s32.totalorder %s111, %s112
      %p126 = scmp.eq.s32.totalorder %s26, 1
      %p127 = por %p125, %p126
      %p129 = scmp.ne.s32.totalorder %s112, %s128
      %p130 = scmp.eq.s32.totalorder %s26, 0
      %p131 = por %p129, %p130
      %s132 = ssub.s32 %s20, %s27
      %p133 = scmp.eq.s32.totalorder %s132, 0
      %s135 = sadd.s32 %s134, 1
      %s136 = scalar_select %p133, %s134, %s135
      %p139 = pneg %p133
      %p140 = scmp.eq.s32.totalorder %s20, 1
      %p141 = por %p139, %p140
      %p142 = scmp.ne.s32.totalorder %s134, %s137
      %p143 = scmp.eq.s32.totalorder %s20, 0
      %p144 = por %p142, %p143
      %p145 = scmp.ne.s32.totalorder %s134, %s137
      %p146 = scmp.eq.s32.totalorder %s25, 1
      %p147 = por %p145, %p146
      %p148 = scmp.ne.s32.totalorder %s137, %s138
      %p149 = scmp.eq.s32.totalorder %s25, 0
      %p150 = por %p148, %p149
      %p151 = scmp.ne.s32.totalorder %s137, %s138
      %p152 = scmp.eq.s32.totalorder %s26, 1
      %p153 = por %p151, %p152
      %p155 = scmp.ne.s32.totalorder %s138, %s154
      %p156 = scmp.eq.s32.totalorder %s26, 0
      %p157 = por %p155, %p156
      %s159 = sadd.s32 %s158, 1
      %p162 = scmp.eq.s32.totalorder %s20, 1
      %p163 = scmp.ne.s32.totalorder %s158, %s160
      %p164 = scmp.eq.s32.totalorder %s20, 0
      %p165 = por %p163, %p164
      %p166 = scmp.ne.s32.totalorder %s158, %s160
      %p167 = scmp.eq.s32.totalorder %s25, 1
      %p168 = por %p166, %p167
      %p169 = scmp.ne.s32.totalorder %s160, %s161
      %p170 = scmp.eq.s32.totalorder %s25, 0
      %p171 = por %p169, %p170
      %p172 = scmp.ne.s32.totalorder %s160, %s161
      %p173 = scmp.eq.s32.totalorder %s26, 1
      %p174 = por %p172, %p173
      %p176 = scmp.ne.s32.totalorder %s161, %s175
      %p177 = scmp.eq.s32.totalorder %s26, 0
      %p178 = por %p176, %p177
      %s180 = sadd.s32 %s179, 1
      %p183 = scmp.eq.s32.totalorder %s20, 1
      %p184 = scmp.ne.s32.totalorder %s179, %s181
      %p185 = scmp.eq.s32.totalorder %s20, 0
      %p186 = por %p184, %p185
      %p187 = scmp.ne.s32.totalorder %s179, %s181
      %p188 = scmp.eq.s32.totalorder %s25, 1
      %p189 = por %p187, %p188
      %p190 = scmp.ne.s32.totalorder %s181, %s182
      %p191 = scmp.eq.s32.totalorder %s25, 0
      %p192 = por %p190, %p191
      %p193 = scmp.ne.s32.totalorder %s181, %s182
      %p194 = scmp.eq.s32.totalorder %s26, 1
      %p195 = por %p193, %p194
      %p197 = scmp.ne.s32.totalorder %s182, %s196
      %p198 = scmp.eq.s32.totalorder %s26, 0
      %p199 = por %p197, %p198
      %s201 = sadd.s32 %s200, 1
      %p204 = scmp.eq.s32.totalorder %s20, 1
      %p205 = scmp.ne.s32.totalorder %s200, %s202
      %p206 = scmp.eq.s32.totalorder %s20, 0
      %p207 = por %p205, %p206
      %p208 = scmp.ne.s32.totalorder %s200, %s202
      %p209 = scmp.eq.s32.totalorder %s25, 1
      %p210 = por %p208, %p209
      %p211 = scmp.ne.s32.totalorder %s202, %s203
      %p212 = scmp.eq.s32.totalorder %s25, 0
      %p213 = por %p211, %p212
      %p214 = scmp.ne.s32.totalorder %s202, %s203
      %p215 = scmp.eq.s32.totalorder %s26, 1
      %p216 = por %p214, %p215
      %p218 = scmp.ne.s32.totalorder %s203, %s217
      %p219 = scmp.eq.s32.totalorder %s26, 0
      %p220 = por %p218, %p219
      %s222 = sadd.s32 %s221, 1
      %p225 = scmp.eq.s32.totalorder %s20, 1
      %p226 = scmp.ne.s32.totalorder %s221, %s223
      %p227 = scmp.eq.s32.totalorder %s20, 0
      %p228 = por %p226, %p227
      %p229 = scmp.ne.s32.totalorder %s221, %s223
      %p230 = scmp.eq.s32.totalorder %s25, 1
      %p231 = por %p229, %p230
      %p232 = scmp.ne.s32.totalorder %s223, %s224
      %p233 = scmp.eq.s32.totalorder %s25, 0
      %p234 = por %p232, %p233
      %p235 = scmp.ne.s32.totalorder %s223, %s224
      %p236 = scmp.eq.s32.totalorder %s26, 1
      %p237 = por %p235, %p236
      %p239 = scmp.ne.s32.totalorder %s224, %s238
      %p240 = scmp.eq.s32.totalorder %s26, 0
      %p241 = por %p239, %p240
      %s243 = sadd.s32 %s242, 1
      %p246 = scmp.eq.s32.totalorder %s20, 1
      %p247 = scmp.ne.s32.totalorder %s242, %s244
      %p248 = scmp.eq.s32.totalorder %s20, 0
      %p249 = por %p247, %p248
      %p250 = scmp.ne.s32.totalorder %s242, %s244
      %p251 = scmp.eq.s32.totalorder %s25, 1
      %p252 = por %p250, %p251
      %p253 = scmp.ne.s32.totalorder %s244, %s245
      %p254 = scmp.eq.s32.totalorder %s25, 0
      %p255 = por %p253, %p254
      %p256 = scmp.ne.s32.totalorder %s244, %s245
      %p257 = scmp.eq.s32.totalorder %s26, 1
      %p258 = por %p256, %p257
      %p260 = scmp.ne.s32.totalorder %s245, %s259
      %p261 = scmp.eq.s32.totalorder %s26, 0
      %p262 = por %p260, %p261
      %s264 = sadd.s32 %s263, 1
      %p267 = scmp.eq.s32.totalorder %s20, 1
      %p268 = scmp.ne.s32.totalorder %s263, %s265
      %p269 = scmp.eq.s32.totalorder %s20, 0
      %p270 = por %p268, %p269
      %p271 = scmp.ne.s32.totalorder %s263, %s265
      %p272 = scmp.eq.s32.totalorder %s25, 1
      %p273 = por %p271, %p272
      %p274 = scmp.ne.s32.totalorder %s265, %s266
      %p275 = scmp.eq.s32.totalorder %s25, 0
      %p276 = por %p274, %p275
      %p277 = scmp.ne.s32.totalorder %s265, %s266
      %p278 = scmp.eq.s32.totalorder %s26, 1
      %p279 = por %p277, %p278
      %p281 = scmp.ne.s32.totalorder %s266, %s280
      %p282 = scmp.eq.s32.totalorder %s26, 0
      %p283 = por %p281, %p282
      %s284 = ssub.s32 %s20, %s27
      %p285 = scmp.eq.s32.totalorder %s284, 0
      %s287 = sadd.s32 %s286, 1
      %s288 = scalar_select %p285, %s286, %s287
      %p291 = pneg %p285
      %p292 = scmp.eq.s32.totalorder %s20, 1
      %p293 = por %p291, %p292
      %p294 = scmp.ne.s32.totalorder %s286, %s289
      %p295 = scmp.eq.s32.totalorder %s20, 0
      %p296 = por %p294, %p295
      %p297 = scmp.ne.s32.totalorder %s286, %s289
      %p298 = scmp.eq.s32.totalorder %s25, 1
      %p299 = por %p297, %p298
      %p300 = scmp.ne.s32.totalorder %s289, %s290
      %p301 = scmp.eq.s32.totalorder %s25, 0
      %p302 = por %p300, %p301
      %p303 = scmp.ne.s32.totalorder %s289, %s290
      %p304 = scmp.eq.s32.totalorder %s26, 1
      %p305 = por %p303, %p304
      %p307 = scmp.ne.s32.totalorder %s290, %s306
      %p308 = scmp.eq.s32.totalorder %s26, 0
      %p309 = por %p307, %p308
      %p310 = scmp.le.s32.totalorder 1, %s20
      %p311 = scmp.lt.s32.totalorder %s20, 3
      %p312 = pnand %p310, %p311
      %p313 = pneg %p312
      // Predicated region
      $region9: #{tpu_custom_call.1} parent=5 // pred_check
        _
      $region10: #{tpu_custom_call.1} parent=5 // pred_check_branch
        %315 = sbr.rel (%p312) target = $region12
      $region11: #{tpu_custom_call.1} parent=5 // pred_region
        %s316 = ssub.s32 %s20, 1
        // Predicated region
        $region13: #{tpu_custom_call.1} parent=11 // pred_check
          %p317 = pneg %p171
        $region14: #{tpu_custom_call.1} parent=11 // pred_check_branch
          %319 = sbr.rel (%p317) target = $region16
        $region15: #{tpu_custom_call.1} parent=11 // pred_region
          _
        $region16: #{tpu_custom_call.1} parent=11 // pred_fallthru
          _
        // Predicated region
        $region17: #{tpu_custom_call.1} parent=11 // pred_check
          %p320 = pneg %p192
        $region18: #{tpu_custom_call.1} parent=11 // pred_check_branch
          %322 = sbr.rel (%p320) target = $region20
        $region19: #{tpu_custom_call.1} parent=11 // pred_region
          _
        $region20: #{tpu_custom_call.1} parent=11 // pred_fallthru
          _
        // Predicated region
        $region21: #{tpu_custom_call.1} parent=11 // pred_check
          %p323 = pneg %p213
        $region22: #{tpu_custom_call.1} parent=11 // pred_check_branch
          %325 = sbr.rel (%p323) target = $region24
        $region23: #{tpu_custom_call.1} parent=11 // pred_region
          _
        $region24: #{tpu_custom_call.1} parent=11 // pred_fallthru
          _
        // Predicated region
        $region25: #{tpu_custom_call.1} parent=11 // pred_check
          %p326 = pneg %p234
        $region26: #{tpu_custom_call.1} parent=11 // pred_check_branch
          %328 = sbr.rel (%p326) target = $region28
        $region27: #{tpu_custom_call.1} parent=11 // pred_region
          _
        $region28: #{tpu_custom_call.1} parent=11 // pred_fallthru
          _
        // Predicated region
        $region29: #{tpu_custom_call.1} parent=11 // pred_check
          %p329 = pneg %p255
        $region30: #{tpu_custom_call.1} parent=11 // pred_check_branch
          %331 = sbr.rel (%p329) target = $region32
        $region31: #{tpu_custom_call.1} parent=11 // pred_region
          _
        $region32: #{tpu_custom_call.1} parent=11 // pred_fallthru
          _
        // Predicated region
        $region33: #{tpu_custom_call.1} parent=11 // pred_check
          %p332 = pneg %p276
        $region34: #{tpu_custom_call.1} parent=11 // pred_check_branch
          %334 = sbr.rel (%p332) target = $region36
        $region35: #{tpu_custom_call.1} parent=11 // pred_region
          _
        $region36: #{tpu_custom_call.1} parent=11 // pred_fallthru
          _
      $region12: #{tpu_custom_call.1} parent=5 // pred_fallthru
        _
      %p335 = scmp.lt.s32.totalorder %s20, 2
      // Predicated region
      $region37: #{tpu_custom_call.1} parent=5 // pred_check
        %p336 = pneg %p335
      $region38: #{tpu_custom_call.1} parent=5 // pred_check_branch
        %338 = sbr.rel (%p336) target = $region40
      $region39: #{tpu_custom_call.1} parent=5 // pred_region
        // Predicated region
        $region41: #{tpu_custom_call.1} parent=39 // pred_check
          %p339 = pneg %p40
        $region42: #{tpu_custom_call.1} parent=39 // pred_check_branch
          %341 = sbr.rel (%p339) target = $region44
        $region43: #{tpu_custom_call.1} parent=39 // pred_region
          %p342 = scmp.lt.s32.totalorder %s20, 1
          %s343 = scalar_select %p342, %s20, 1
          %s344 = smul.addr %s343, 8
          %s345 = scalar_lea.vmem %s0, %s344
        $region44: #{tpu_custom_call.1} parent=39 // pred_fallthru
          _
        // Predicated region
        $region45: #{tpu_custom_call.1} parent=39 // pred_check
          %p346 = pneg %p66
        $region46: #{tpu_custom_call.1} parent=39 // pred_check_branch
          %348 = sbr.rel (%p346) target = $region48
        $region47: #{tpu_custom_call.1} parent=39 // pred_region
          %p349 = scmp.lt.s32.totalorder %s20, 1
          %s350 = scalar_select %p349, %s20, 1
          %s351 = smul.addr %s350, 8
          %s352 = scalar_lea.vmem %s1, %s351
        $region48: #{tpu_custom_call.1} parent=39 // pred_fallthru
          _
        // Predicated region
        $region49: #{tpu_custom_call.1} parent=39 // pred_check
          %p353 = pneg %p92
        $region50: #{tpu_custom_call.1} parent=39 // pred_check_branch
          %355 = sbr.rel (%p353) target = $region52
        $region51: #{tpu_custom_call.1} parent=39 // pred_region
          %p356 = scmp.lt.s32.totalorder %s20, 1
          %s357 = scalar_select %p356, %s20, 1
          %s358 = smul.addr %s357, 2
          %s359 = smul.addr %s358, 8
          %s360 = scalar_lea.vmem %s2, %s359
        $region52: #{tpu_custom_call.1} parent=39 // pred_fallthru
          _
        // Predicated region
        $region53: #{tpu_custom_call.1} parent=39 // pred_check
          %p361 = pneg %p118
        $region54: #{tpu_custom_call.1} parent=39 // pred_check_branch
          %363 = sbr.rel (%p361) target = $region56
        $region55: #{tpu_custom_call.1} parent=39 // pred_region
          %p364 = scmp.lt.s32.totalorder %s20, 1
          %s365 = scalar_select %p364, %s20, 1
          %s366 = smul.addr %s365, 2
          %s367 = smul.addr %s366, 8
          %s368 = scalar_lea.vmem %s3, %s367
        $region56: #{tpu_custom_call.1} parent=39 // pred_fallthru
          _
        // Predicated region
        $region57: #{tpu_custom_call.1} parent=39 // pred_check
          %p369 = pneg %p144
        $region58: #{tpu_custom_call.1} parent=39 // pred_check_branch
          %371 = sbr.rel (%p369) target = $region60
        $region59: #{tpu_custom_call.1} parent=39 // pred_region
          %p372 = scmp.lt.s32.totalorder %s20, 1
          %s373 = scalar_select %p372, %s20, 1
          %s374 = smul.addr %s373, 2
          %s375 = smul.addr %s374, 8
          %s376 = scalar_lea.vmem %s4, %s375
        $region60: #{tpu_custom_call.1} parent=39 // pred_fallthru
          _
      $region40: #{tpu_custom_call.1} parent=5 // pred_fallthru
        _
      %p377 = scmp.le.s32.totalorder 1, %s20
      %p378 = scmp.lt.s32.totalorder %s20, 3
      %p379 = pnand %p377, %p378
      %p380 = pneg %p379
      // Predicated region
      $region61: #{tpu_custom_call.1} parent=5 // pred_check
        _
      $region62: #{tpu_custom_call.1} parent=5 // pred_check_branch
        %382 = sbr.rel (%p379) target = $region64
      $region63: #{tpu_custom_call.1} parent=5 // pred_region
        %s383 = ssub.s32 %s20, 1
        %p384 = scmp.lt.s32.totalorder %s25, 1
        %s385 = scalar_select %p384, %s25, 1
        %s386 = smul.addr %s385, 8
        %s387 = scalar_lea.vmem %s0, %s386
        %p388 = pneg %p46
        %p389 = pneg %p43
        %p390 = scmp.lt.s32.totalorder %s25, 1
        %s391 = scalar_select %p390, %s25, 1
        %s392 = smul.addr %s391, 8
        %s393 = scalar_lea.vmem %s1, %s392
        %p394 = pneg %p72
        %p395 = pneg %p69
        %p396 = scmp.lt.s32.totalorder %s25, 1
        %s397 = scalar_select %p396, %s25, 1
        %s398 = smul.addr %s397, 2
        %s399 = smul.addr %s398, 8
        %s400 = scalar_lea.vmem %s2, %s399
        %p401 = pneg %p98
        %p402 = pneg %p95
        %p403 = scmp.lt.s32.totalorder %s25, 1
        %s404 = scalar_select %p403, %s25, 1
        %s405 = smul.addr %s404, 2
        %s406 = smul.addr %s405, 8
        %s407 = scalar_lea.vmem %s3, %s406
        %p408 = pneg %p124
        %p409 = pneg %p121
        %p410 = scmp.lt.s32.totalorder %s25, 1
        %s411 = scalar_select %p410, %s25, 1
        %s412 = smul.addr %s411, 2
        %s413 = smul.addr %s412, 8
        %s414 = scalar_lea.vmem %s4, %s413
        %p415 = pneg %p150
        %p416 = pneg %p147
        %p417 = pneg %p171
        %p418 = pneg %p168
        %p419 = pneg %p192
        %p420 = pneg %p189
        %p421 = pneg %p213
        %p422 = pneg %p210
        %p423 = pneg %p234
        %p424 = pneg %p231
        %p425 = pneg %p255
        %p426 = pneg %p252
        %p427 = pneg %p276
        %p428 = pneg %p273
        %p429 = pneg %p302
        %p430 = pneg %p299
        %s431 = sand.u32 %s289, 1
        %s432 = scalar_lea.sflag [#allocation3], %s431
        %s433 = sand.u32 %s289, 1
        %s434 = smul.addr %s433, 16
        %s435 = scalar_lea.vmem [#allocation2], %s434
        %p436 = scmp.lt.s32.totalorder %s25, 1
        %s437 = scalar_select %p436, %s25, 1
        %s438 = smul.addr %s437, 8
        %s439 = scalar_lea.vmem %s0, %s438
        %p440 = scmp.lt.s32.totalorder %s25, 1
        %s441 = scalar_select %p440, %s25, 1
        %s442 = smul.addr %s441, 8
        %s443 = scalar_lea.vmem %s1, %s442
        %p444 = scmp.lt.s32.totalorder %s25, 1
        %s445 = scalar_select %p444, %s25, 1
        %s446 = smul.addr %s445, 2
        %s447 = smul.addr %s446, 8
        %s448 = scalar_lea.vmem %s2, %s447
        %p449 = scmp.lt.s32.totalorder %s25, 1
        %s450 = scalar_select %p449, %s25, 1
        %s451 = smul.addr %s450, 2
        %s452 = smul.addr %s451, 8
        %s453 = scalar_lea.vmem %s3, %s452
        %p454 = scmp.lt.s32.totalorder %s25, 1
        %s455 = scalar_select %p454, %s25, 1
        %s456 = smul.addr %s455, 2
        %s457 = smul.addr %s456, 8
        %s458 = scalar_lea.vmem %s4, %s457
        %v459 = vld [vmem:[%s439] sm:$0xff]
        %v460 = vld [vmem:[%s443] sm:$0xff]
        %v461 = vlaneseq
        %v462 = vand.u32 %v461, 127
        %463 = vset.pattern.permute.xlu0 0
        %464 = vperm.xlu0 %463, %v460
        %v465 = vpop.permute.xlu0 %464
        %vm466 = vcmp.eq.s32.totalorder %v465, %v462
        %v467 = vsel %vm466, 1.0, 0.0
        %vm468 = vcmask 64512
        %v470 = vsel %vm468, %v467, 0
        %472 = vmatprep.subr.mxu0 0.0
        %473 = vmatpush1.msra.mxu0 %v459
        %474 = vmatprep.subr.mxu0 0.0
        %475 = vmatpush1.msra.mxu0 0.0
        %476 = vmatprep.subr.mxu0 0.0
        %477 = vmatpush1.msra.mxu0 0.0
        %478 = vmatprep.subr.mxu0 0.0
        %479 = vmatpush1.msra.mxu0 0.0
        %480 = vmatprep.subr.mxu0 0.0
        %481 = vmatpush1.msra.mxu0 0.0
        %482 = vmatprep.subr.mxu0 0.0
        %483 = vmatpush1.msra.mxu0 0.0
        %484 = vmatprep.subr.mxu0 0.0
        %485 = vmatpush1.msra.mxu0 0.0
        %486 = vmatprep.subr.mxu0 0.0
        %487 = vmatpush1.msra.mxu0 0.0
        %488 = vmatprep.subr.mxu0 0.0
        %489 = vmatpush1.msra.mxu0 0.0
        %490 = vmatprep.subr.mxu0 0.0
        %491 = vmatpush1.msra.mxu0 0.0
        %492 = vmatprep.subr.mxu0 0.0
        %493 = vmatpush1.msra.mxu0 0.0
        %494 = vmatprep.subr.mxu0 0.0
        %495 = vmatpush1.msra.mxu0 0.0
        %496 = vmatprep.subr.mxu0 0.0
        %497 = vmatpush1.msra.mxu0 0.0
        %498 = vmatprep.subr.mxu0 0.0
        %499 = vmatpush1.msra.mxu0 0.0
        %500 = vmatprep.subr.mxu0 0.0
        %501 = vmatpush1.msra.mxu0 0.0
        %502 = vmatprep.subr.mxu0 0.0
        %503 = vmatpush1.msra.mxu0 0.0
        %504 = vmatprep.subr.mxu0 0.0
        %505 = vmatpush1.msra.mxu0 0.0
        %506 = vmatprep.subr.mxu0 0.0
        %507 = vmatpush1.msra.mxu0 0.0
        %508 = vmatprep.subr.mxu0 0.0
        %509 = vmatpush1.msra.mxu0 0.0
        %510 = vmatprep.subr.mxu0 0.0
        %511 = vmatpush1.msra.mxu0 0.0
        %512 = vmatprep.subr.mxu0 0.0
        %513 = vmatpush1.msra.mxu0 0.0
        %514 = vmatprep.subr.mxu0 0.0
        %515 = vmatpush1.msra.mxu0 0.0
        %516 = vmatprep.subr.mxu0 0.0
        %517 = vmatpush1.msra.mxu0 0.0
        %518 = vmatprep.subr.mxu0 0.0
        %519 = vmatpush1.msra.mxu0 0.0
        %520 = vmatprep.subr.mxu0 0.0
        %521 = vmatpush1.msra.mxu0 0.0
        %522 = vmatprep.subr.mxu0 0.0
        %523 = vmatpush1.msra.mxu0 0.0
        %524 = vmatprep.subr.mxu0 0.0
        %525 = vmatpush1.msra.mxu0 0.0
        %526 = vmatprep.subr.mxu0 0.0
        %527 = vmatpush1.msra.mxu0 0.0
        %528 = vmatprep.subr.mxu0 0.0
        %529 = vmatpush1.msra.mxu0 0.0
        %530 = vmatprep.subr.mxu0 0.0
        %531 = vmatpush1.msra.mxu0 0.0
        %532 = vmatprep.subr.mxu0 0.0
        %533 = vmatpush1.msra.mxu0 0.0
        %534 = vmatprep.subr.mxu0 0.0
        %535 = vmatpush1.msra.mxu0 0.0
        %536 = vmatprep.mubr.f32.mxu0 0.0
        %537 = vmatmul.mubr.f32.gmra.mrb[0].mxu0 %v470
        %v538 = vpop.f32.mrb[0].mxu0
        %v539 = vadd.f32 0.0, %v538
        %v540 = vpop.f32.mrb[0].mxu0
        %541 = vdwg.mxu0
        %542 = vset.pattern.permute.xlu0 1
        %543 = vperm.xlu0 %542, %v460
        %v544 = vpop.permute.xlu0 %543
        %vm545 = vcmp.eq.s32.totalorder %v544, %v462
        %v546 = vsel %vm545, 1.0, 0.0
        %v548 = vsel %vm468, %v546, 0
        %550 = vmatprep.subr.mxu0 0.0
        %551 = vmatpush1.msra.mxu0 %v459
        %552 = vmatprep.subr.mxu0 0.0
        %553 = vmatpush1.msra.mxu0 0.0
        %554 = vmatprep.subr.mxu0 0.0
        %555 = vmatpush1.msra.mxu0 0.0
        %556 = vmatprep.subr.mxu0 0.0
        %557 = vmatpush1.msra.mxu0 0.0
        %558 = vmatprep.subr.mxu0 0.0
        %559 = vmatpush1.msra.mxu0 0.0
        %560 = vmatprep.subr.mxu0 0.0
        %561 = vmatpush1.msra.mxu0 0.0
        %562 = vmatprep.subr.mxu0 0.0
        %563 = vmatpush1.msra.mxu0 0.0
        %564 = vmatprep.subr.mxu0 0.0
        %565 = vmatpush1.msra.mxu0 0.0
        %566 = vmatprep.subr.mxu0 0.0
        %567 = vmatpush1.msra.mxu0 0.0
        %568 = vmatprep.subr.mxu0 0.0
        %569 = vmatpush1.msra.mxu0 0.0
        %570 = vmatprep.subr.mxu0 0.0
        %571 = vmatpush1.msra.mxu0 0.0
        %572 = vmatprep.subr.mxu0 0.0
        %573 = vmatpush1.msra.mxu0 0.0
        %574 = vmatprep.subr.mxu0 0.0
        %575 = vmatpush1.msra.mxu0 0.0
        %576 = vmatprep.subr.mxu0 0.0
        %577 = vmatpush1.msra.mxu0 0.0
        %578 = vmatprep.subr.mxu0 0.0
        %579 = vmatpush1.msra.mxu0 0.0
        %580 = vmatprep.subr.mxu0 0.0
        %581 = vmatpush1.msra.mxu0 0.0
        %582 = vmatprep.subr.mxu0 0.0
        %583 = vmatpush1.msra.mxu0 0.0
        %584 = vmatprep.subr.mxu0 0.0
        %585 = vmatpush1.msra.mxu0 0.0
        %586 = vmatprep.subr.mxu0 0.0
        %587 = vmatpush1.msra.mxu0 0.0
        %588 = vmatprep.subr.mxu0 0.0
        %589 = vmatpush1.msra.mxu0 0.0
        %590 = vmatprep.subr.mxu0 0.0
        %591 = vmatpush1.msra.mxu0 0.0
        %592 = vmatprep.subr.mxu0 0.0
        %593 = vmatpush1.msra.mxu0 0.0
        %594 = vmatprep.subr.mxu0 0.0
        %595 = vmatpush1.msra.mxu0 0.0
        %596 = vmatprep.subr.mxu0 0.0
        %597 = vmatpush1.msra.mxu0 0.0
        %598 = vmatprep.subr.mxu0 0.0
        %599 = vmatpush1.msra.mxu0 0.0
        %600 = vmatprep.subr.mxu0 0.0
        %601 = vmatpush1.msra.mxu0 0.0
        %602 = vmatprep.subr.mxu0 0.0
        %603 = vmatpush1.msra.mxu0 0.0
        %604 = vmatprep.subr.mxu0 0.0
        %605 = vmatpush1.msra.mxu0 0.0
        %606 = vmatprep.subr.mxu0 0.0
        %607 = vmatpush1.msra.mxu0 0.0
        %608 = vmatprep.subr.mxu0 0.0
        %609 = vmatpush1.msra.mxu0 0.0
        %610 = vmatprep.subr.mxu0 0.0
        %611 = vmatpush1.msra.mxu0 0.0
        %612 = vmatprep.subr.mxu0 0.0
        %613 = vmatpush1.msra.mxu0 0.0
        %614 = vmatprep.mubr.f32.mxu0 0.0
        %615 = vmatmul.mubr.f32.gmra.mrb[0].mxu0 %v548
        %v616 = vpop.f32.mrb[0].mxu0
        %v617 = vadd.f32 0.0, %v616
        %v618 = vpop.f32.mrb[0].mxu0
        %619 = vdwg.mxu0
        %620 = vset.pattern.permute.xlu0 2
        %621 = vperm.xlu0 %620, %v460
        %v622 = vpop.permute.xlu0 %621
        %vm623 = vcmp.eq.s32.totalorder %v622, %v462
        %v624 = vsel %vm623, 1.0, 0.0
        %v626 = vsel %vm468, %v624, 0
        %628 = vmatprep.subr.mxu0 0.0
        %629 = vmatpush1.msra.mxu0 %v459
        %630 = vmatprep.subr.mxu0 0.0
        %631 = vmatpush1.msra.mxu0 0.0
        %632 = vmatprep.subr.mxu0 0.0
        %633 = vmatpush1.msra.mxu0 0.0
        %634 = vmatprep.subr.mxu0 0.0
        %635 = vmatpush1.msra.mxu0 0.0
        %636 = vmatprep.subr.mxu0 0.0
        %637 = vmatpush1.msra.mxu0 0.0
        %638 = vmatprep.subr.mxu0 0.0
        %639 = vmatpush1.msra.mxu0 0.0
        %640 = vmatprep.subr.mxu0 0.0
        %641 = vmatpush1.msra.mxu0 0.0
        %642 = vmatprep.subr.mxu0 0.0
        %643 = vmatpush1.msra.mxu0 0.0
        %644 = vmatprep.subr.mxu0 0.0
        %645 = vmatpush1.msra.mxu0 0.0
        %646 = vmatprep.subr.mxu0 0.0
        %647 = vmatpush1.msra.mxu0 0.0
        %648 = vmatprep.subr.mxu0 0.0
        %649 = vmatpush1.msra.mxu0 0.0
        %650 = vmatprep.subr.mxu0 0.0
        %651 = vmatpush1.msra.mxu0 0.0
        %652 = vmatprep.subr.mxu0 0.0
        %653 = vmatpush1.msra.mxu0 0.0
        %654 = vmatprep.subr.mxu0 0.0
        %655 = vmatpush1.msra.mxu0 0.0
        %656 = vmatprep.subr.mxu0 0.0
        %657 = vmatpush1.msra.mxu0 0.0
        %658 = vmatprep.subr.mxu0 0.0
        %659 = vmatpush1.msra.mxu0 0.0
        %660 = vmatprep.subr.mxu0 0.0
        %661 = vmatpush1.msra.mxu0 0.0
        %662 = vmatprep.subr.mxu0 0.0
        %663 = vmatpush1.msra.mxu0 0.0
        %664 = vmatprep.subr.mxu0 0.0
        %665 = vmatpush1.msra.mxu0 0.0
        %666 = vmatprep.subr.mxu0 0.0
        %667 = vmatpush1.msra.mxu0 0.0
        %668 = vmatprep.subr.mxu0 0.0
        %669 = vmatpush1.msra.mxu0 0.0
        %670 = vmatprep.subr.mxu0 0.0
        %671 = vmatpush1.msra.mxu0 0.0
        %672 = vmatprep.subr.mxu0 0.0
        %673 = vmatpush1.msra.mxu0 0.0
        %674 = vmatprep.subr.mxu0 0.0
        %675 = vmatpush1.msra.mxu0 0.0
        %676 = vmatprep.subr.mxu0 0.0
        %677 = vmatpush1.msra.mxu0 0.0
        %678 = vmatprep.subr.mxu0 0.0
        %679 = vmatpush1.msra.mxu0 0.0
        %680 = vmatprep.subr.mxu0 0.0
        %681 = vmatpush1.msra.mxu0 0.0
        %682 = vmatprep.subr.mxu0 0.0
        %683 = vmatpush1.msra.mxu0 0.0
        %684 = vmatprep.subr.mxu0 0.0
        %685 = vmatpush1.msra.mxu0 0.0
        %686 = vmatprep.subr.mxu0 0.0
        %687 = vmatpush1.msra.mxu0 0.0
        %688 = vmatprep.subr.mxu0 0.0
        %689 = vmatpush1.msra.mxu0 0.0
        %690 = vmatprep.subr.mxu0 0.0
        %691 = vmatpush1.msra.mxu0 0.0
        %692 = vmatprep.mubr.f32.mxu0 0.0
        %693 = vmatmul.mubr.f32.gmra.mrb[0].mxu0 %v626
        %v694 = vpop.f32.mrb[0].mxu0
        %v695 = vadd.f32 0.0, %v694
        %v696 = vpop.f32.mrb[0].mxu0
        %697 = vdwg.mxu0
        %698 = vset.pattern.permute.xlu0 3
        %699 = vperm.xlu0 %698, %v460
        %v700 = vpop.permute.xlu0 %699
        %vm701 = vcmp.eq.s32.totalorder %v700, %v462
        %v702 = vsel %vm701, 1.0, 0.0
        %v704 = vsel %vm468, %v702, 0
        %706 = vmatprep.subr.mxu0 0.0
        %707 = vmatpush1.msra.mxu0 %v459
        %708 = vmatprep.subr.mxu0 0.0
        %709 = vmatpush1.msra.mxu0 0.0
        %710 = vmatprep.subr.mxu0 0.0
        %711 = vmatpush1.msra.mxu0 0.0
        %712 = vmatprep.subr.mxu0 0.0
        %713 = vmatpush1.msra.mxu0 0.0
        %714 = vmatprep.subr.mxu0 0.0
        %715 = vmatpush1.msra.mxu0 0.0
        %716 = vmatprep.subr.mxu0 0.0
        %717 = vmatpush1.msra.mxu0 0.0
        %718 = vmatprep.subr.mxu0 0.0
        %719 = vmatpush1.msra.mxu0 0.0
        %720 = vmatprep.subr.mxu0 0.0
        %721 = vmatpush1.msra.mxu0 0.0
        %722 = vmatprep.subr.mxu0 0.0
        %723 = vmatpush1.msra.mxu0 0.0
        %724 = vmatprep.subr.mxu0 0.0
        %725 = vmatpush1.msra.mxu0 0.0
        %726 = vmatprep.subr.mxu0 0.0
        %727 = vmatpush1.msra.mxu0 0.0
        %728 = vmatprep.subr.mxu0 0.0
        %729 = vmatpush1.msra.mxu0 0.0
        %730 = vmatprep.subr.mxu0 0.0
        %731 = vmatpush1.msra.mxu0 0.0
        %732 = vmatprep.subr.mxu0 0.0
        %733 = vmatpush1.msra.mxu0 0.0
        %734 = vmatprep.subr.mxu0 0.0
        %735 = vmatpush1.msra.mxu0 0.0
        %736 = vmatprep.subr.mxu0 0.0
        %737 = vmatpush1.msra.mxu0 0.0
        %738 = vmatprep.subr.mxu0 0.0
        %739 = vmatpush1.msra.mxu0 0.0
        %740 = vmatprep.subr.mxu0 0.0
        %741 = vmatpush1.msra.mxu0 0.0
        %742 = vmatprep.subr.mxu0 0.0
        %743 = vmatpush1.msra.mxu0 0.0
        %744 = vmatprep.subr.mxu0 0.0
        %745 = vmatpush1.msra.mxu0 0.0
        %746 = vmatprep.subr.mxu0 0.0
        %747 = vmatpush1.msra.mxu0 0.0
        %748 = vmatprep.subr.mxu0 0.0
        %749 = vmatpush1.msra.mxu0 0.0
        %750 = vmatprep.subr.mxu0 0.0
        %751 = vmatpush1.msra.mxu0 0.0
        %752 = vmatprep.subr.mxu0 0.0
        %753 = vmatpush1.msra.mxu0 0.0
        %754 = vmatprep.subr.mxu0 0.0
        %755 = vmatpush1.msra.mxu0 0.0
        %756 = vmatprep.subr.mxu0 0.0
        %757 = vmatpush1.msra.mxu0 0.0
        %758 = vmatprep.subr.mxu0 0.0
        %759 = vmatpush1.msra.mxu0 0.0
        %760 = vmatprep.subr.mxu0 0.0
        %761 = vmatpush1.msra.mxu0 0.0
        %762 = vmatprep.subr.mxu0 0.0
        %763 = vmatpush1.msra.mxu0 0.0
        %764 = vmatprep.subr.mxu0 0.0
        %765 = vmatpush1.msra.mxu0 0.0
        %766 = vmatprep.subr.mxu0 0.0
        %767 = vmatpush1.msra.mxu0 0.0
        %768 = vmatprep.subr.mxu0 0.0
        %769 = vmatpush1.msra.mxu0 0.0
        %770 = vmatprep.mubr.f32.mxu0 0.0
        %771 = vmatmul.mubr.f32.gmra.mrb[0].mxu0 %v704
        %v772 = vpop.f32.mrb[0].mxu0
        %v773 = vadd.f32 0.0, %v772
        %v774 = vpop.f32.mrb[0].mxu0
        %775 = vdwg.mxu0
        %v776 = vadd.f32 %v539, %v695
        %v777 = vadd.f32 %v617, %v773
        %v778 = vsub.f32 %v539, %v695
        %v779 = vand.u32 2147483647, %v778
        %v780 = vsub.f32 %v617, %v773
        %v781 = vand.u32 2147483647, %v780
        %v782 = vld [vmem:[%s5] sm:$0xff]
        %v783 = vld [vmem:[%s5 + $0x8] sm:$0xff]
        %v784 = vld [vmem:[%s5 + $0x10] sm:$0xff]
        %v785 = vld [vmem:[%s5 + $0x18] sm:$0xff]
        %v786 = vld [vmem:[%s5 + $0x20] sm:$0xff]
        %v787 = vld [vmem:[%s5 + $0x28] sm:$0xff]
        %v788 = vld [vmem:[%s5 + $0x30] sm:$0xff]
        %v789 = vld [vmem:[%s5 + $0x38] sm:$0xff]
        %vm790 = vcmask 261120
        %v792 = vsel %vm790, %v776, 0
        %794 = vmatprep.subr.mxu0 0.0
        %795 = vmatpush1.msra.mxu0 %v786
        %796 = vmatprep.subr.mxu0 0.0
        %797 = vmatpush1.msra.mxu0 %v787
        %798 = vmatprep.subr.mxu0 0.0
        %799 = vmatpush1.msra.mxu0 %v788
        %800 = vmatprep.subr.mxu0 0.0
        %801 = vmatpush1.msra.mxu0 %v789
        %802 = vmatprep.subr.mxu0 0.0
        %803 = vmatpush1.msra.mxu0 0.0
        %804 = vmatprep.subr.mxu0 0.0
        %805 = vmatpush1.msra.mxu0 0.0
        %806 = vmatprep.subr.mxu0 0.0
        %807 = vmatpush1.msra.mxu0 0.0
        %808 = vmatprep.subr.mxu0 0.0
        %809 = vmatpush1.msra.mxu0 0.0
        %810 = vmatprep.subr.mxu0 0.0
        %811 = vmatpush1.msra.mxu0 0.0
        %812 = vmatprep.subr.mxu0 0.0
        %813 = vmatpush1.msra.mxu0 0.0
        %814 = vmatprep.subr.mxu0 0.0
        %815 = vmatpush1.msra.mxu0 0.0
        %816 = vmatprep.subr.mxu0 0.0
        %817 = vmatpush1.msra.mxu0 0.0
        %818 = vmatprep.subr.mxu0 0.0
        %819 = vmatpush1.msra.mxu0 0.0
        %820 = vmatprep.subr.mxu0 0.0
        %821 = vmatpush1.msra.mxu0 0.0
        %822 = vmatprep.subr.mxu0 0.0
        %823 = vmatpush1.msra.mxu0 0.0
        %824 = vmatprep.subr.mxu0 0.0
        %825 = vmatpush1.msra.mxu0 0.0
        %826 = vmatprep.subr.mxu0 0.0
        %827 = vmatpush1.msra.mxu0 0.0
        %828 = vmatprep.subr.mxu0 0.0
        %829 = vmatpush1.msra.mxu0 0.0
        %830 = vmatprep.subr.mxu0 0.0
        %831 = vmatpush1.msra.mxu0 0.0
        %832 = vmatprep.subr.mxu0 0.0
        %833 = vmatpush1.msra.mxu0 0.0
        %834 = vmatprep.subr.mxu0 0.0
        %835 = vmatpush1.msra.mxu0 0.0
        %836 = vmatprep.subr.mxu0 0.0
        %837 = vmatpush1.msra.mxu0 0.0
        %838 = vmatprep.subr.mxu0 0.0
        %839 = vmatpush1.msra.mxu0 0.0
        %840 = vmatprep.subr.mxu0 0.0
        %841 = vmatpush1.msra.mxu0 0.0
        %842 = vmatprep.subr.mxu0 0.0
        %843 = vmatpush1.msra.mxu0 0.0
        %844 = vmatprep.subr.mxu0 0.0
        %845 = vmatpush1.msra.mxu0 0.0
        %846 = vmatprep.subr.mxu0 0.0
        %847 = vmatpush1.msra.mxu0 0.0
        %848 = vmatprep.subr.mxu0 0.0
        %849 = vmatpush1.msra.mxu0 0.0
        %850 = vmatprep.subr.mxu0 0.0
        %851 = vmatpush1.msra.mxu0 0.0
        %852 = vmatprep.subr.mxu0 0.0
        %853 = vmatpush1.msra.mxu0 0.0
        %854 = vmatprep.subr.mxu0 0.0
        %855 = vmatpush1.msra.mxu0 0.0
        %856 = vmatprep.subr.mxu0 0.0
        %857 = vmatpush1.msra.mxu0 0.0
        %858 = vmatprep.mubr.f32.mxu0 0.0
        %859 = vmatmul.mubr.f32.gmra.mrb[0].mxu0 %v792
        %v860 = vpop.f32.mrb[0].mxu0
        %v861 = vadd.f32 0.0, %v860
        %v862 = vpop.f32.mrb[0].mxu0
        %863 = vdwg.mxu0
        %v865 = vsel %vm790, %v459, 0
        %867 = vmatprep.subr.mxu0 0.0
        %868 = vmatpush1.msra.mxu0 %v782
        %869 = vmatprep.subr.mxu0 0.0
        %870 = vmatpush1.msra.mxu0 %v783
        %871 = vmatprep.subr.mxu0 0.0
        %872 = vmatpush1.msra.mxu0 %v784
        %873 = vmatprep.subr.mxu0 0.0
        %874 = vmatpush1.msra.mxu0 %v785
        %875 = vmatprep.subr.mxu0 0.0
        %876 = vmatpush1.msra.mxu0 0.0
        %877 = vmatprep.subr.mxu0 0.0
        %878 = vmatpush1.msra.mxu0 0.0
        %879 = vmatprep.subr.mxu0 0.0
        %880 = vmatpush1.msra.mxu0 0.0
        %881 = vmatprep.subr.mxu0 0.0
        %882 = vmatpush1.msra.mxu0 0.0
        %883 = vmatprep.subr.mxu0 0.0
        %884 = vmatpush1.msra.mxu0 0.0
        %885 = vmatprep.subr.mxu0 0.0
        %886 = vmatpush1.msra.mxu0 0.0
        %887 = vmatprep.subr.mxu0 0.0
        %888 = vmatpush1.msra.mxu0 0.0
        %889 = vmatprep.subr.mxu0 0.0
        %890 = vmatpush1.msra.mxu0 0.0
        %891 = vmatprep.subr.mxu0 0.0
        %892 = vmatpush1.msra.mxu0 0.0
        %893 = vmatprep.subr.mxu0 0.0
        %894 = vmatpush1.msra.mxu0 0.0
        %895 = vmatprep.subr.mxu0 0.0
        %896 = vmatpush1.msra.mxu0 0.0
        %897 = vmatprep.subr.mxu0 0.0
        %898 = vmatpush1.msra.mxu0 0.0
        %899 = vmatprep.subr.mxu0 0.0
        %900 = vmatpush1.msra.mxu0 0.0
        %901 = vmatprep.subr.mxu0 0.0
        %902 = vmatpush1.msra.mxu0 0.0
        %903 = vmatprep.subr.mxu0 0.0
        %904 = vmatpush1.msra.mxu0 0.0
        %905 = vmatprep.subr.mxu0 0.0
        %906 = vmatpush1.msra.mxu0 0.0
        %907 = vmatprep.subr.mxu0 0.0
        %908 = vmatpush1.msra.mxu0 0.0
        %909 = vmatprep.subr.mxu0 0.0
        %910 = vmatpush1.msra.mxu0 0.0
        %911 = vmatprep.subr.mxu0 0.0
        %912 = vmatpush1.msra.mxu0 0.0
        %913 = vmatprep.subr.mxu0 0.0
        %914 = vmatpush1.msra.mxu0 0.0
        %915 = vmatprep.subr.mxu0 0.0
        %916 = vmatpush1.msra.mxu0 0.0
        %917 = vmatprep.subr.mxu0 0.0
        %918 = vmatpush1.msra.mxu0 0.0
        %919 = vmatprep.subr.mxu0 0.0
        %920 = vmatpush1.msra.mxu0 0.0
        %921 = vmatprep.subr.mxu0 0.0
        %922 = vmatpush1.msra.mxu0 0.0
        %923 = vmatprep.subr.mxu0 0.0
        %924 = vmatpush1.msra.mxu0 0.0
        %925 = vmatprep.subr.mxu0 0.0
        %926 = vmatpush1.msra.mxu0 0.0
        %927 = vmatprep.subr.mxu0 0.0
        %928 = vmatpush1.msra.mxu0 0.0
        %929 = vmatprep.subr.mxu0 0.0
        %930 = vmatpush1.msra.mxu0 0.0
        %931 = vmatprep.mubr.f32.mxu0 0.0
        %932 = vmatmul.mubr.f32.gmra.mrb[0].mxu0 %v865
        %v933 = vpop.f32.mrb[0].mxu0
        %v934 = vadd.f32 %v861, %v933
        %v935 = vpop.f32.mrb[0].mxu0
        %936 = vdwg.mxu0
        %v937 = vld [vmem:[%s5 + $0x40] sm:$0xff]
        %v938 = vld [vmem:[%s5 + $0x48] sm:$0xff]
        %v939 = vld [vmem:[%s5 + $0x50] sm:$0xff]
        %v940 = vld [vmem:[%s5 + $0x58] sm:$0xff]
        %v942 = vsel %vm790, %v777, 0
        %944 = vmatprep.subr.mxu0 0.0
        %945 = vmatpush1.msra.mxu0 %v937
        %946 = vmatprep.subr.mxu0 0.0
        %947 = vmatpush1.msra.mxu0 %v938
        %948 = vmatprep.subr.mxu0 0.0
        %949 = vmatpush1.msra.mxu0 %v939
        %950 = vmatprep.subr.mxu0 0.0
        %951 = vmatpush1.msra.mxu0 %v940
        %952 = vmatprep.subr.mxu0 0.0
        %953 = vmatpush1.msra.mxu0 0.0
        %954 = vmatprep.subr.mxu0 0.0
        %955 = vmatpush1.msra.mxu0 0.0
        %956 = vmatprep.subr.mxu0 0.0
        %957 = vmatpush1.msra.mxu0 0.0
        %958 = vmatprep.subr.mxu0 0.0
        %959 = vmatpush1.msra.mxu0 0.0
        %960 = vmatprep.subr.mxu0 0.0
        %961 = vmatpush1.msra.mxu0 0.0
        %962 = vmatprep.subr.mxu0 0.0
        %963 = vmatpush1.msra.mxu0 0.0
        %964 = vmatprep.subr.mxu0 0.0
        %965 = vmatpush1.msra.mxu0 0.0
        %966 = vmatprep.subr.mxu0 0.0
        %967 = vmatpush1.msra.mxu0 0.0
        %968 = vmatprep.subr.mxu0 0.0
        %969 = vmatpush1.msra.mxu0 0.0
        %970 = vmatprep.subr.mxu0 0.0
        %971 = vmatpush1.msra.mxu0 0.0
        %972 = vmatprep.subr.mxu0 0.0
        %973 = vmatpush1.msra.mxu0 0.0
        %974 = vmatprep.subr.mxu0 0.0
        %975 = vmatpush1.msra.mxu0 0.0
        %976 = vmatprep.subr.mxu0 0.0
        %977 = vmatpush1.msra.mxu0 0.0
        %978 = vmatprep.subr.mxu0 0.0
        %979 = vmatpush1.msra.mxu0 0.0
        %980 = vmatprep.subr.mxu0 0.0
        %981 = vmatpush1.msra.mxu0 0.0
        %982 = vmatprep.subr.mxu0 0.0
        %983 = vmatpush1.msra.mxu0 0.0
        %984 = vmatprep.subr.mxu0 0.0
        %985 = vmatpush1.msra.mxu0 0.0
        %986 = vmatprep.subr.mxu0 0.0
        %987 = vmatpush1.msra.mxu0 0.0
        %988 = vmatprep.subr.mxu0 0.0
        %989 = vmatpush1.msra.mxu0 0.0
        %990 = vmatprep.subr.mxu0 0.0
        %991 = vmatpush1.msra.mxu0 0.0
        %992 = vmatprep.subr.mxu0 0.0
        %993 = vmatpush1.msra.mxu0 0.0
        %994 = vmatprep.subr.mxu0 0.0
        %995 = vmatpush1.msra.mxu0 0.0
        %996 = vmatprep.subr.mxu0 0.0
        %997 = vmatpush1.msra.mxu0 0.0
        %998 = vmatprep.subr.mxu0 0.0
        %999 = vmatpush1.msra.mxu0 0.0
        %1000 = vmatprep.subr.mxu0 0.0
        %1001 = vmatpush1.msra.mxu0 0.0
        %1002 = vmatprep.subr.mxu0 0.0
        %1003 = vmatpush1.msra.mxu0 0.0
        %1004 = vmatprep.subr.mxu0 0.0
        %1005 = vmatpush1.msra.mxu0 0.0
        %1006 = vmatprep.subr.mxu0 0.0
        %1007 = vmatpush1.msra.mxu0 0.0
        %1008 = vmatprep.mubr.f32.mxu0 0.0
        %1009 = vmatmul.mubr.f32.gmra.mrb[0].mxu0 %v942
        %v1010 = vpop.f32.mrb[0].mxu0
        %v1011 = vadd.f32 0.0, %v1010
        %v1012 = vpop.f32.mrb[0].mxu0
        %1013 = vdwg.mxu0
        %v1014 = vadd.f32 %v934, %v1011
        %v1015 = vld [vmem:[%s5 + $0x60] sm:$0xff]
        %v1016 = vld [vmem:[%s5 + $0x68] sm:$0xff]
        %v1017 = vld [vmem:[%s5 + $0x70] sm:$0xff]
        %v1018 = vld [vmem:[%s5 + $0x78] sm:$0xff]
        %v1020 = vsel %vm790, %v779, 0
        %1022 = vmatprep.subr.mxu0 0.0
        %1023 = vmatpush1.msra.mxu0 %v1015
        %1024 = vmatprep.subr.mxu0 0.0
        %1025 = vmatpush1.msra.mxu0 %v1016
        %1026 = vmatprep.subr.mxu0 0.0
        %1027 = vmatpush1.msra.mxu0 %v1017
        %1028 = vmatprep.subr.mxu0 0.0
        %1029 = vmatpush1.msra.mxu0 %v1018
        %1030 = vmatprep.subr.mxu0 0.0
        %1031 = vmatpush1.msra.mxu0 0.0
        %1032 = vmatprep.subr.mxu0 0.0
        %1033 = vmatpush1.msra.mxu0 0.0
        %1034 = vmatprep.subr.mxu0 0.0
        %1035 = vmatpush1.msra.mxu0 0.0
        %1036 = vmatprep.subr.mxu0 0.0
        %1037 = vmatpush1.msra.mxu0 0.0
        %1038 = vmatprep.subr.mxu0 0.0
        %1039 = vmatpush1.msra.mxu0 0.0
        %1040 = vmatprep.subr.mxu0 0.0
        %1041 = vmatpush1.msra.mxu0 0.0
        %1042 = vmatprep.subr.mxu0 0.0
        %1043 = vmatpush1.msra.mxu0 0.0
        %1044 = vmatprep.subr.mxu0 0.0
        %1045 = vmatpush1.msra.mxu0 0.0
        %1046 = vmatprep.subr.mxu0 0.0
        %1047 = vmatpush1.msra.mxu0 0.0
        %1048 = vmatprep.subr.mxu0 0.0
        %1049 = vmatpush1.msra.mxu0 0.0
        %1050 = vmatprep.subr.mxu0 0.0
        %1051 = vmatpush1.msra.mxu0 0.0
        %1052 = vmatprep.subr.mxu0 0.0
        %1053 = vmatpush1.msra.mxu0 0.0
        %1054 = vmatprep.subr.mxu0 0.0
        %1055 = vmatpush1.msra.mxu0 0.0
        %1056 = vmatprep.subr.mxu0 0.0
        %1057 = vmatpush1.msra.mxu0 0.0
        %1058 = vmatprep.subr.mxu0 0.0
        %1059 = vmatpush1.msra.mxu0 0.0
        %1060 = vmatprep.subr.mxu0 0.0
        %1061 = vmatpush1.msra.mxu0 0.0
        %1062 = vmatprep.subr.mxu0 0.0
        %1063 = vmatpush1.msra.mxu0 0.0
        %1064 = vmatprep.subr.mxu0 0.0
        %1065 = vmatpush1.msra.mxu0 0.0
        %1066 = vmatprep.subr.mxu0 0.0
        %1067 = vmatpush1.msra.mxu0 0.0
        %1068 = vmatprep.subr.mxu0 0.0
        %1069 = vmatpush1.msra.mxu0 0.0
        %1070 = vmatprep.subr.mxu0 0.0
        %1071 = vmatpush1.msra.mxu0 0.0
        %1072 = vmatprep.subr.mxu0 0.0
        %1073 = vmatpush1.msra.mxu0 0.0
        %1074 = vmatprep.subr.mxu0 0.0
        %1075 = vmatpush1.msra.mxu0 0.0
        %1076 = vmatprep.subr.mxu0 0.0
        %1077 = vmatpush1.msra.mxu0 0.0
        %1078 = vmatprep.subr.mxu0 0.0
        %1079 = vmatpush1.msra.mxu0 0.0
        %1080 = vmatprep.subr.mxu0 0.0
        %1081 = vmatpush1.msra.mxu0 0.0
        %1082 = vmatprep.subr.mxu0 0.0
        %1083 = vmatpush1.msra.mxu0 0.0
        %1084 = vmatprep.subr.mxu0 0.0
        %1085 = vmatpush1.msra.mxu0 0.0
        %1086 = vmatprep.mubr.f32.mxu0 0.0
        %1087 = vmatmul.mubr.f32.gmra.mrb[0].mxu0 %v1020
        %v1088 = vpop.f32.mrb[0].mxu0
        %v1089 = vadd.f32 0.0, %v1088
        %v1090 = vpop.f32.mrb[0].mxu0
        %1091 = vdwg.mxu0
        %v1092 = vadd.f32 %v1014, %v1089
        %v1093 = vld [vmem:[%s5 + $0x80] sm:$0xff]
        %v1094 = vld [vmem:[%s5 + $0x88] sm:$0xff]
        %v1095 = vld [vmem:[%s5 + $0x90] sm:$0xff]
        %v1096 = vld [vmem:[%s5 + $0x98] sm:$0xff]
        %v1098 = vsel %vm790, %v781, 0
        %1100 = vmatprep.subr.mxu0 0.0
        %1101 = vmatpush1.msra.mxu0 %v1093
        %1102 = vmatprep.subr.mxu0 0.0
        %1103 = vmatpush1.msra.mxu0 %v1094
        %1104 = vmatprep.subr.mxu0 0.0
        %1105 = vmatpush1.msra.mxu0 %v1095
        %1106 = vmatprep.subr.mxu0 0.0
        %1107 = vmatpush1.msra.mxu0 %v1096
        %1108 = vmatprep.subr.mxu0 0.0
        %1109 = vmatpush1.msra.mxu0 0.0
        %1110 = vmatprep.subr.mxu0 0.0
        %1111 = vmatpush1.msra.mxu0 0.0
        %1112 = vmatprep.subr.mxu0 0.0
        %1113 = vmatpush1.msra.mxu0 0.0
        %1114 = vmatprep.subr.mxu0 0.0
        %1115 = vmatpush1.msra.mxu0 0.0
        %1116 = vmatprep.subr.mxu0 0.0
        %1117 = vmatpush1.msra.mxu0 0.0
        %1118 = vmatprep.subr.mxu0 0.0
        %1119 = vmatpush1.msra.mxu0 0.0
        %1120 = vmatprep.subr.mxu0 0.0
        %1121 = vmatpush1.msra.mxu0 0.0
        %1122 = vmatprep.subr.mxu0 0.0
        %1123 = vmatpush1.msra.mxu0 0.0
        %1124 = vmatprep.subr.mxu0 0.0
        %1125 = vmatpush1.msra.mxu0 0.0
        %1126 = vmatprep.subr.mxu0 0.0
        %1127 = vmatpush1.msra.mxu0 0.0
        %1128 = vmatprep.subr.mxu0 0.0
        %1129 = vmatpush1.msra.mxu0 0.0
        %1130 = vmatprep.subr.mxu0 0.0
        %1131 = vmatpush1.msra.mxu0 0.0
        %1132 = vmatprep.subr.mxu0 0.0
        %1133 = vmatpush1.msra.mxu0 0.0
        %1134 = vmatprep.subr.mxu0 0.0
        %1135 = vmatpush1.msra.mxu0 0.0
        %1136 = vmatprep.subr.mxu0 0.0
        %1137 = vmatpush1.msra.mxu0 0.0
        %1138 = vmatprep.subr.mxu0 0.0
        %1139 = vmatpush1.msra.mxu0 0.0
        %1140 = vmatprep.subr.mxu0 0.0
        %1141 = vmatpush1.msra.mxu0 0.0
        %1142 = vmatprep.subr.mxu0 0.0
        %1143 = vmatpush1.msra.mxu0 0.0
        %1144 = vmatprep.subr.mxu0 0.0
        %1145 = vmatpush1.msra.mxu0 0.0
        %1146 = vmatprep.subr.mxu0 0.0
        %1147 = vmatpush1.msra.mxu0 0.0
        %1148 = vmatprep.subr.mxu0 0.0
        %1149 = vmatpush1.msra.mxu0 0.0
        %1150 = vmatprep.subr.mxu0 0.0
        %1151 = vmatpush1.msra.mxu0 0.0
        %1152 = vmatprep.subr.mxu0 0.0
        %1153 = vmatpush1.msra.mxu0 0.0
        %1154 = vmatprep.subr.mxu0 0.0
        %1155 = vmatpush1.msra.mxu0 0.0
        %1156 = vmatprep.subr.mxu0 0.0
        %1157 = vmatpush1.msra.mxu0 0.0
        %1158 = vmatprep.subr.mxu0 0.0
        %1159 = vmatpush1.msra.mxu0 0.0
        %1160 = vmatprep.subr.mxu0 0.0
        %1161 = vmatpush1.msra.mxu0 0.0
        %1162 = vmatprep.subr.mxu0 0.0
        %1163 = vmatpush1.msra.mxu0 0.0
        %1164 = vmatprep.mubr.f32.mxu0 0.0
        %1165 = vmatmul.mubr.f32.gmra.mrb[0].mxu0 %v1098
        %v1166 = vpop.f32.mrb[0].mxu0
        %v1167 = vadd.f32 0.0, %v1166
        %v1168 = vpop.f32.mrb[0].mxu0
        %1169 = vdwg.mxu0
        %v1170 = vadd.f32 %v1092, %v1167
        %v1171 = vld [vmem:[%s6] sm:$0x1]
        %v1173 = vlaneseq
        %v1174 = vshrl.u32 %v1173, 7
        %v1175 = vsub.s32 0, %v1174
        %v1176 = vrot.slane %v1171, %v1175
        %v1178 = vadd.f32 %v1170, %v1176
        %v1179 = vld [vmem:[%s453] sm:$0xff]
        %v1180 = vld [vmem:[%s453 + $0x8] sm:$0xff]
        %1181 = vset.pattern.permute.xlu0 0
        %1182 = vperm.xlu0 %1181, %v1179
        %v1183 = vpop.permute.xlu0 %1182
        %1184 = vset.pattern.permute.xlu0 0
        %1185 = vperm.xlu0 %1184, %v1180
        %v1186 = vpop.permute.xlu0 %1185
        %vm1187 = vcmp.eq.s32.totalorder %v1183, %v462
        %vm1188 = vcmp.eq.s32.totalorder %v1186, %v462
        %v1189 = vsel %vm1187, 1.0, 0.0
        %v1190 = vsel %vm1188, 1.0, 0.0
        %v1191 = vld [vmem:[%s458] sm:$0xff]
        %v1192 = vld [vmem:[%s458 + $0x8] sm:$0xff]
        %v1194 = vsel %vm468, %v1189, 0
        %v1197 = vsel %vm468, %v1190, 0
        %1199 = vmatprep.subr.mxu0 0.0
        %1200 = vmatpush1.msra.mxu0 %v1178
        %1201 = vmatprep.subr.mxu0 0.0
        %1202 = vmatpush1.msra.mxu0 0.0
        %1203 = vmatprep.subr.mxu0 0.0
        %1204 = vmatpush1.msra.mxu0 0.0
        %1205 = vmatprep.subr.mxu0 0.0
        %1206 = vmatpush1.msra.mxu0 0.0
        %1207 = vmatprep.subr.mxu0 0.0
        %1208 = vmatpush1.msra.mxu0 0.0
        %1209 = vmatprep.subr.mxu0 0.0
        %1210 = vmatpush1.msra.mxu0 0.0
        %1211 = vmatprep.subr.mxu0 0.0
        %1212 = vmatpush1.msra.mxu0 0.0
        %1213 = vmatprep.subr.mxu0 0.0
        %1214 = vmatpush1.msra.mxu0 0.0
        %1215 = vmatprep.subr.mxu0 0.0
        %1216 = vmatpush1.msra.mxu0 0.0
        %1217 = vmatprep.subr.mxu0 0.0
        %1218 = vmatpush1.msra.mxu0 0.0
        %1219 = vmatprep.subr.mxu0 0.0
        %1220 = vmatpush1.msra.mxu0 0.0
        %1221 = vmatprep.subr.mxu0 0.0
        %1222 = vmatpush1.msra.mxu0 0.0
        %1223 = vmatprep.subr.mxu0 0.0
        %1224 = vmatpush1.msra.mxu0 0.0
        %1225 = vmatprep.subr.mxu0 0.0
        %1226 = vmatpush1.msra.mxu0 0.0
        %1227 = vmatprep.subr.mxu0 0.0
        %1228 = vmatpush1.msra.mxu0 0.0
        %1229 = vmatprep.subr.mxu0 0.0
        %1230 = vmatpush1.msra.mxu0 0.0
        %1231 = vmatprep.subr.mxu0 0.0
        %1232 = vmatpush1.msra.mxu0 0.0
        %1233 = vmatprep.subr.mxu0 0.0
        %1234 = vmatpush1.msra.mxu0 0.0
        %1235 = vmatprep.subr.mxu0 0.0
        %1236 = vmatpush1.msra.mxu0 0.0
        %1237 = vmatprep.subr.mxu0 0.0
        %1238 = vmatpush1.msra.mxu0 0.0
        %1239 = vmatprep.subr.mxu0 0.0
        %1240 = vmatpush1.msra.mxu0 0.0
        %1241 = vmatprep.subr.mxu0 0.0
        %1242 = vmatpush1.msra.mxu0 0.0
        %1243 = vmatprep.subr.mxu0 0.0
        %1244 = vmatpush1.msra.mxu0 0.0
        %1245 = vmatprep.subr.mxu0 0.0
        %1246 = vmatpush1.msra.mxu0 0.0
        %1247 = vmatprep.subr.mxu0 0.0
        %1248 = vmatpush1.msra.mxu0 0.0
        %1249 = vmatprep.subr.mxu0 0.0
        %1250 = vmatpush1.msra.mxu0 0.0
        %1251 = vmatprep.subr.mxu0 0.0
        %1252 = vmatpush1.msra.mxu0 0.0
        %1253 = vmatprep.subr.mxu0 0.0
        %1254 = vmatpush1.msra.mxu0 0.0
        %1255 = vmatprep.subr.mxu0 0.0
        %1256 = vmatpush1.msra.mxu0 0.0
        %1257 = vmatprep.subr.mxu0 0.0
        %1258 = vmatpush1.msra.mxu0 0.0
        %1259 = vmatprep.subr.mxu0 0.0
        %1260 = vmatpush1.msra.mxu0 0.0
        %1261 = vmatprep.subr.mxu0 0.0
        %1262 = vmatpush1.msra.mxu0 0.0
        %1263 = vmatprep.mubr.f32.mxu0 0.0
        %1264 = vmatmul.mubr.f32.gmra.mrb[0].mxu0 %v1194
        %v1265 = vpop.f32.mrb[0].mxu0
        %v1266 = vadd.f32 %v1191, %v1265
        %v1267 = vpop.f32.mrb[0].mxu0
        %1268 = vmatprep.mubr.f32.mxu0 0.0
        %1269 = vmatmul.mubr.f32.gmra.mrb[0].mxu0 %v1197
        %v1270 = vpop.f32.mrb[0].mxu0
        %v1271 = vadd.f32 %v1192, %v1270
        %v1272 = vpop.f32.mrb[0].mxu0
        %1273 = vdwg.mxu0
        %v1274 = vld [vmem:[%s448] sm:$0xff]
        %v1275 = vld [vmem:[%s448 + $0x8] sm:$0xff]
        %1276 = vset.pattern.permute.xlu0 0
        %1277 = vperm.xlu0 %1276, %v1274
        %v1278 = vpop.permute.xlu0 %1277
        %1279 = vset.pattern.permute.xlu0 0
        %1280 = vperm.xlu0 %1279, %v1275
        %v1281 = vpop.permute.xlu0 %1280
        %vm1282 = vcmp.eq.s32.totalorder %v1278, %v462
        %vm1283 = vcmp.eq.s32.totalorder %v1281, %v462
        %v1284 = vsel %vm1282, 1.0, 0.0
        %v1285 = vsel %vm1283, 1.0, 0.0
        %vm1286 = vcmask 130048
        %v1288 = vsel %vm1286, %v1284, 0
        %v1291 = vsel %vm1286, %v1285, 0
        %1293 = vmatprep.subr.mxu0 0.0
        %1294 = vmatpush1.msra.mxu0 %v1266
        %1295 = vmatprep.subr.mxu0 0.0
        %1296 = vmatpush1.msra.mxu0 %v1271
        %1297 = vmatprep.subr.mxu0 0.0
        %1298 = vmatpush1.msra.mxu0 0.0
        %1299 = vmatprep.subr.mxu0 0.0
        %1300 = vmatpush1.msra.mxu0 0.0
        %1301 = vmatprep.subr.mxu0 0.0
        %1302 = vmatpush1.msra.mxu0 0.0
        %1303 = vmatprep.subr.mxu0 0.0
        %1304 = vmatpush1.msra.mxu0 0.0
        %1305 = vmatprep.subr.mxu0 0.0
        %1306 = vmatpush1.msra.mxu0 0.0
        %1307 = vmatprep.subr.mxu0 0.0
        %1308 = vmatpush1.msra.mxu0 0.0
        %1309 = vmatprep.subr.mxu0 0.0
        %1310 = vmatpush1.msra.mxu0 0.0
        %1311 = vmatprep.subr.mxu0 0.0
        %1312 = vmatpush1.msra.mxu0 0.0
        %1313 = vmatprep.subr.mxu0 0.0
        %1314 = vmatpush1.msra.mxu0 0.0
        %1315 = vmatprep.subr.mxu0 0.0
        %1316 = vmatpush1.msra.mxu0 0.0
        %1317 = vmatprep.subr.mxu0 0.0
        %1318 = vmatpush1.msra.mxu0 0.0
        %1319 = vmatprep.subr.mxu0 0.0
        %1320 = vmatpush1.msra.mxu0 0.0
        %1321 = vmatprep.subr.mxu0 0.0
        %1322 = vmatpush1.msra.mxu0 0.0
        %1323 = vmatprep.subr.mxu0 0.0
        %1324 = vmatpush1.msra.mxu0 0.0
        %1325 = vmatprep.subr.mxu0 0.0
        %1326 = vmatpush1.msra.mxu0 0.0
        %1327 = vmatprep.subr.mxu0 0.0
        %1328 = vmatpush1.msra.mxu0 0.0
        %1329 = vmatprep.subr.mxu0 0.0
        %1330 = vmatpush1.msra.mxu0 0.0
        %1331 = vmatprep.subr.mxu0 0.0
        %1332 = vmatpush1.msra.mxu0 0.0
        %1333 = vmatprep.subr.mxu0 0.0
        %1334 = vmatpush1.msra.mxu0 0.0
        %1335 = vmatprep.subr.mxu0 0.0
        %1336 = vmatpush1.msra.mxu0 0.0
        %1337 = vmatprep.subr.mxu0 0.0
        %1338 = vmatpush1.msra.mxu0 0.0
        %1339 = vmatprep.subr.mxu0 0.0
        %1340 = vmatpush1.msra.mxu0 0.0
        %1341 = vmatprep.subr.mxu0 0.0
        %1342 = vmatpush1.msra.mxu0 0.0
        %1343 = vmatprep.subr.mxu0 0.0
        %1344 = vmatpush1.msra.mxu0 0.0
        %1345 = vmatprep.subr.mxu0 0.0
        %1346 = vmatpush1.msra.mxu0 0.0
        %1347 = vmatprep.subr.mxu0 0.0
        %1348 = vmatpush1.msra.mxu0 0.0
        %1349 = vmatprep.subr.mxu0 0.0
        %1350 = vmatpush1.msra.mxu0 0.0
        %1351 = vmatprep.subr.mxu0 0.0
        %1352 = vmatpush1.msra.mxu0 0.0
        %1353 = vmatprep.subr.mxu0 0.0
        %1354 = vmatpush1.msra.mxu0 0.0
        %1355 = vmatprep.subr.mxu0 0.0
        %1356 = vmatpush1.msra.mxu0 0.0
        %1357 = vmatprep.mubr.f32.mxu0 0.0
        %1358 = vmatmul.mubr.f32.gmra.mrb[0].mxu0 %v1288
        %v1359 = vpop.f32.mrb[0].mxu0
        %v1360 = vadd.f32 0.0, %v1359
        %v1361 = vpop.f32.mrb[0].mxu0
        %1362 = vmatprep.mubr.f32.mxu0 0.0
        %1363 = vmatmul.mubr.f32.gmra.mrb[0].mxu0 %v1291
        %v1364 = vpop.f32.mrb[0].mxu0
        %v1365 = vadd.f32 0.0, %v1364
        %v1366 = vpop.f32.mrb[0].mxu0
        %1367 = vdwg.mxu0
        %1368 = vset.pattern.permute.xlu0 1
        %1369 = vperm.xlu0 %1368, %v1274
        %v1370 = vpop.permute.xlu0 %1369
        %1371 = vset.pattern.permute.xlu0 1
        %1372 = vperm.xlu0 %1371, %v1275
        %v1373 = vpop.permute.xlu0 %1372
        %vm1374 = vcmp.eq.s32.totalorder %v1370, %v462
        %vm1375 = vcmp.eq.s32.totalorder %v1373, %v462
        %v1376 = vsel %vm1374, 1.0, 0.0
        %v1377 = vsel %vm1375, 1.0, 0.0
        %v1379 = vsel %vm1286, %v1376, 0
        %v1382 = vsel %vm1286, %v1377, 0
        %1384 = vmatprep.subr.mxu0 0.0
        %1385 = vmatpush1.msra.mxu0 %v1266
        %1386 = vmatprep.subr.mxu0 0.0
        %1387 = vmatpush1.msra.mxu0 %v1271
        %1388 = vmatprep.subr.mxu0 0.0
        %1389 = vmatpush1.msra.mxu0 0.0
        %1390 = vmatprep.subr.mxu0 0.0
        %1391 = vmatpush1.msra.mxu0 0.0
        %1392 = vmatprep.subr.mxu0 0.0
        %1393 = vmatpush1.msra.mxu0 0.0
        %1394 = vmatprep.subr.mxu0 0.0
        %1395 = vmatpush1.msra.mxu0 0.0
        %1396 = vmatprep.subr.mxu0 0.0
        %1397 = vmatpush1.msra.mxu0 0.0
        %1398 = vmatprep.subr.mxu0 0.0
        %1399 = vmatpush1.msra.mxu0 0.0
        %1400 = vmatprep.subr.mxu0 0.0
        %1401 = vmatpush1.msra.mxu0 0.0
        %1402 = vmatprep.subr.mxu0 0.0
        %1403 = vmatpush1.msra.mxu0 0.0
        %1404 = vmatprep.subr.mxu0 0.0
        %1405 = vmatpush1.msra.mxu0 0.0
        %1406 = vmatprep.subr.mxu0 0.0
        %1407 = vmatpush1.msra.mxu0 0.0
        %1408 = vmatprep.subr.mxu0 0.0
        %1409 = vmatpush1.msra.mxu0 0.0
        %1410 = vmatprep.subr.mxu0 0.0
        %1411 = vmatpush1.msra.mxu0 0.0
        %1412 = vmatprep.subr.mxu0 0.0
        %1413 = vmatpush1.msra.mxu0 0.0
        %1414 = vmatprep.subr.mxu0 0.0
        %1415 = vmatpush1.msra.mxu0 0.0
        %1416 = vmatprep.subr.mxu0 0.0
        %1417 = vmatpush1.msra.mxu0 0.0
        %1418 = vmatprep.subr.mxu0 0.0
        %1419 = vmatpush1.msra.mxu0 0.0
        %1420 = vmatprep.subr.mxu0 0.0
        %1421 = vmatpush1.msra.mxu0 0.0
        %1422 = vmatprep.subr.mxu0 0.0
        %1423 = vmatpush1.msra.mxu0 0.0
        %1424 = vmatprep.subr.mxu0 0.0
        %1425 = vmatpush1.msra.mxu0 0.0
        %1426 = vmatprep.subr.mxu0 0.0
        %1427 = vmatpush1.msra.mxu0 0.0
        %1428 = vmatprep.subr.mxu0 0.0
        %1429 = vmatpush1.msra.mxu0 0.0
        %1430 = vmatprep.subr.mxu0 0.0
        %1431 = vmatpush1.msra.mxu0 0.0
        %1432 = vmatprep.subr.mxu0 0.0
        %1433 = vmatpush1.msra.mxu0 0.0
        %1434 = vmatprep.subr.mxu0 0.0
        %1435 = vmatpush1.msra.mxu0 0.0
        %1436 = vmatprep.subr.mxu0 0.0
        %1437 = vmatpush1.msra.mxu0 0.0
        %1438 = vmatprep.subr.mxu0 0.0
        %1439 = vmatpush1.msra.mxu0 0.0
        %1440 = vmatprep.subr.mxu0 0.0
        %1441 = vmatpush1.msra.mxu0 0.0
        %1442 = vmatprep.subr.mxu0 0.0
        %1443 = vmatpush1.msra.mxu0 0.0
        %1444 = vmatprep.subr.mxu0 0.0
        %1445 = vmatpush1.msra.mxu0 0.0
        %1446 = vmatprep.subr.mxu0 0.0
        %1447 = vmatpush1.msra.mxu0 0.0
        %1448 = vmatprep.mubr.f32.mxu0 0.0
        %1449 = vmatmul.mubr.f32.gmra.mrb[0].mxu0 %v1379
        %v1450 = vpop.f32.mrb[0].mxu0
        %v1451 = vadd.f32 0.0, %v1450
        %v1452 = vpop.f32.mrb[0].mxu0
        %1453 = vmatprep.mubr.f32.mxu0 0.0
        %1454 = vmatmul.mubr.f32.gmra.mrb[0].mxu0 %v1382
        %v1455 = vpop.f32.mrb[0].mxu0
        %v1456 = vadd.f32 0.0, %v1455
        %v1457 = vpop.f32.mrb[0].mxu0
        %1458 = vdwg.mxu0
        %1459 = vset.pattern.permute.xlu0 2
        %1460 = vperm.xlu0 %1459, %v1274
        %v1461 = vpop.permute.xlu0 %1460
        %1462 = vset.pattern.permute.xlu0 2
        %1463 = vperm.xlu0 %1462, %v1275
        %v1464 = vpop.permute.xlu0 %1463
        %vm1465 = vcmp.eq.s32.totalorder %v1461, %v462
        %vm1466 = vcmp.eq.s32.totalorder %v1464, %v462
        %v1467 = vsel %vm1465, 1.0, 0.0
        %v1468 = vsel %vm1466, 1.0, 0.0
        %v1470 = vsel %vm1286, %v1467, 0
        %v1473 = vsel %vm1286, %v1468, 0
        %1475 = vmatprep.subr.mxu0 0.0
        %1476 = vmatpush1.msra.mxu0 %v1266
        %1477 = vmatprep.subr.mxu0 0.0
        %1478 = vmatpush1.msra.mxu0 %v1271
        %1479 = vmatprep.subr.mxu0 0.0
        %1480 = vmatpush1.msra.mxu0 0.0
        %1481 = vmatprep.subr.mxu0 0.0
        %1482 = vmatpush1.msra.mxu0 0.0
        %1483 = vmatprep.subr.mxu0 0.0
        %1484 = vmatpush1.msra.mxu0 0.0
        %1485 = vmatprep.subr.mxu0 0.0
        %1486 = vmatpush1.msra.mxu0 0.0
        %1487 = vmatprep.subr.mxu0 0.0
        %1488 = vmatpush1.msra.mxu0 0.0
        %1489 = vmatprep.subr.mxu0 0.0
        %1490 = vmatpush1.msra.mxu0 0.0
        %1491 = vmatprep.subr.mxu0 0.0
        %1492 = vmatpush1.msra.mxu0 0.0
        %1493 = vmatprep.subr.mxu0 0.0
        %1494 = vmatpush1.msra.mxu0 0.0
        %1495 = vmatprep.subr.mxu0 0.0
        %1496 = vmatpush1.msra.mxu0 0.0
        %1497 = vmatprep.subr.mxu0 0.0
        %1498 = vmatpush1.msra.mxu0 0.0
        %1499 = vmatprep.subr.mxu0 0.0
        %1500 = vmatpush1.msra.mxu0 0.0
        %1501 = vmatprep.subr.mxu0 0.0
        %1502 = vmatpush1.msra.mxu0 0.0
        %1503 = vmatprep.subr.mxu0 0.0
        %1504 = vmatpush1.msra.mxu0 0.0
        %1505 = vmatprep.subr.mxu0 0.0
        %1506 = vmatpush1.msra.mxu0 0.0
        %1507 = vmatprep.subr.mxu0 0.0
        %1508 = vmatpush1.msra.mxu0 0.0
        %1509 = vmatprep.subr.mxu0 0.0
        %1510 = vmatpush1.msra.mxu0 0.0
        %1511 = vmatprep.subr.mxu0 0.0
        %1512 = vmatpush1.msra.mxu0 0.0
        %1513 = vmatprep.subr.mxu0 0.0
        %1514 = vmatpush1.msra.mxu0 0.0
        %1515 = vmatprep.subr.mxu0 0.0
        %1516 = vmatpush1.msra.mxu0 0.0
        %1517 = vmatprep.subr.mxu0 0.0
        %1518 = vmatpush1.msra.mxu0 0.0
        %1519 = vmatprep.subr.mxu0 0.0
        %1520 = vmatpush1.msra.mxu0 0.0
        %1521 = vmatprep.subr.mxu0 0.0
        %1522 = vmatpush1.msra.mxu0 0.0
        %1523 = vmatprep.subr.mxu0 0.0
        %1524 = vmatpush1.msra.mxu0 0.0
        %1525 = vmatprep.subr.mxu0 0.0
        %1526 = vmatpush1.msra.mxu0 0.0
        %1527 = vmatprep.subr.mxu0 0.0
        %1528 = vmatpush1.msra.mxu0 0.0
        %1529 = vmatprep.subr.mxu0 0.0
        %1530 = vmatpush1.msra.mxu0 0.0
        %1531 = vmatprep.subr.mxu0 0.0
        %1532 = vmatpush1.msra.mxu0 0.0
        %1533 = vmatprep.subr.mxu0 0.0
        %1534 = vmatpush1.msra.mxu0 0.0
        %1535 = vmatprep.subr.mxu0 0.0
        %1536 = vmatpush1.msra.mxu0 0.0
        %1537 = vmatprep.subr.mxu0 0.0
        %1538 = vmatpush1.msra.mxu0 0.0
        %1539 = vmatprep.mubr.f32.mxu0 0.0
        %1540 = vmatmul.mubr.f32.gmra.mrb[0].mxu0 %v1470
        %v1541 = vpop.f32.mrb[0].mxu0
        %v1542 = vadd.f32 0.0, %v1541
        %v1543 = vpop.f32.mrb[0].mxu0
        %1544 = vmatprep.mubr.f32.mxu0 0.0
        %1545 = vmatmul.mubr.f32.gmra.mrb[0].mxu0 %v1473
        %v1546 = vpop.f32.mrb[0].mxu0
        %v1547 = vadd.f32 0.0, %v1546
        %v1548 = vpop.f32.mrb[0].mxu0
        %1549 = vdwg.mxu0
        %1550 = vset.pattern.permute.xlu0 3
        %1551 = vperm.xlu0 %1550, %v1274
        %v1552 = vpop.permute.xlu0 %1551
        %1553 = vset.pattern.permute.xlu0 3
        %1554 = vperm.xlu0 %1553, %v1275
        %v1555 = vpop.permute.xlu0 %1554
        %vm1556 = vcmp.eq.s32.totalorder %v1552, %v462
        %vm1557 = vcmp.eq.s32.totalorder %v1555, %v462
        %v1558 = vsel %vm1556, 1.0, 0.0
        %v1559 = vsel %vm1557, 1.0, 0.0
        %v1561 = vsel %vm1286, %v1558, 0
        %v1564 = vsel %vm1286, %v1559, 0
        %1566 = vmatprep.subr.mxu0 0.0
        %1567 = vmatpush1.msra.mxu0 %v1266
        %1568 = vmatprep.subr.mxu0 0.0
        %1569 = vmatpush1.msra.mxu0 %v1271
        %1570 = vmatprep.subr.mxu0 0.0
        %1571 = vmatpush1.msra.mxu0 0.0
        %1572 = vmatprep.subr.mxu0 0.0
        %1573 = vmatpush1.msra.mxu0 0.0
        %1574 = vmatprep.subr.mxu0 0.0
        %1575 = vmatpush1.msra.mxu0 0.0
        %1576 = vmatprep.subr.mxu0 0.0
        %1577 = vmatpush1.msra.mxu0 0.0
        %1578 = vmatprep.subr.mxu0 0.0
        %1579 = vmatpush1.msra.mxu0 0.0
        %1580 = vmatprep.subr.mxu0 0.0
        %1581 = vmatpush1.msra.mxu0 0.0
        %1582 = vmatprep.subr.mxu0 0.0
        %1583 = vmatpush1.msra.mxu0 0.0
        %1584 = vmatprep.subr.mxu0 0.0
        %1585 = vmatpush1.msra.mxu0 0.0
        %1586 = vmatprep.subr.mxu0 0.0
        %1587 = vmatpush1.msra.mxu0 0.0
        %1588 = vmatprep.subr.mxu0 0.0
        %1589 = vmatpush1.msra.mxu0 0.0
        %1590 = vmatprep.subr.mxu0 0.0
        %1591 = vmatpush1.msra.mxu0 0.0
        %1592 = vmatprep.subr.mxu0 0.0
        %1593 = vmatpush1.msra.mxu0 0.0
        %1594 = vmatprep.subr.mxu0 0.0
        %1595 = vmatpush1.msra.mxu0 0.0
        %1596 = vmatprep.subr.mxu0 0.0
        %1597 = vmatpush1.msra.mxu0 0.0
        %1598 = vmatprep.subr.mxu0 0.0
        %1599 = vmatpush1.msra.mxu0 0.0
        %1600 = vmatprep.subr.mxu0 0.0
        %1601 = vmatpush1.msra.mxu0 0.0
        %1602 = vmatprep.subr.mxu0 0.0
        %1603 = vmatpush1.msra.mxu0 0.0
        %1604 = vmatprep.subr.mxu0 0.0
        %1605 = vmatpush1.msra.mxu0 0.0
        %1606 = vmatprep.subr.mxu0 0.0
        %1607 = vmatpush1.msra.mxu0 0.0
        %1608 = vmatprep.subr.mxu0 0.0
        %1609 = vmatpush1.msra.mxu0 0.0
        %1610 = vmatprep.subr.mxu0 0.0
        %1611 = vmatpush1.msra.mxu0 0.0
        %1612 = vmatprep.subr.mxu0 0.0
        %1613 = vmatpush1.msra.mxu0 0.0
        %1614 = vmatprep.subr.mxu0 0.0
        %1615 = vmatpush1.msra.mxu0 0.0
        %1616 = vmatprep.subr.mxu0 0.0
        %1617 = vmatpush1.msra.mxu0 0.0
        %1618 = vmatprep.subr.mxu0 0.0
        %1619 = vmatpush1.msra.mxu0 0.0
        %1620 = vmatprep.subr.mxu0 0.0
        %1621 = vmatpush1.msra.mxu0 0.0
        %1622 = vmatprep.subr.mxu0 0.0
        %1623 = vmatpush1.msra.mxu0 0.0
        %1624 = vmatprep.subr.mxu0 0.0
        %1625 = vmatpush1.msra.mxu0 0.0
        %1626 = vmatprep.subr.mxu0 0.0
        %1627 = vmatpush1.msra.mxu0 0.0
        %1628 = vmatprep.subr.mxu0 0.0
        %1629 = vmatpush1.msra.mxu0 0.0
        %1630 = vmatprep.mubr.f32.mxu0 0.0
        %1631 = vmatmul.mubr.f32.gmra.mrb[0].mxu0 %v1561
        %v1632 = vpop.f32.mrb[0].mxu0
        %v1633 = vadd.f32 0.0, %v1632
        %v1634 = vpop.f32.mrb[0].mxu0
        %1635 = vmatprep.mubr.f32.mxu0 0.0
        %1636 = vmatmul.mubr.f32.gmra.mrb[0].mxu0 %v1564
        %v1637 = vpop.f32.mrb[0].mxu0
        %v1638 = vadd.f32 0.0, %v1637
        %v1639 = vpop.f32.mrb[0].mxu0
        %1640 = vdwg.mxu0
        %v1641 = vadd.f32 %v1360, %v1542
        %v1642 = vadd.f32 %v1365, %v1547
        %v1643 = vadd.f32 %v1451, %v1633
        %v1644 = vadd.f32 %v1456, %v1638
        %v1645 = vsub.f32 %v1360, %v1542
        %v1646 = vsub.f32 %v1365, %v1547
        %v1647 = vand.u32 2147483647, %v1645
        %v1648 = vand.u32 2147483647, %v1646
        %v1649 = vsub.f32 %v1451, %v1633
        %v1650 = vsub.f32 %v1456, %v1638
        %v1651 = vand.u32 2147483647, %v1649
        %v1652 = vand.u32 2147483647, %v1650
        %v1653 = vld [vmem:[%s7] sm:$0xff]
        %v1654 = vld [vmem:[%s7 + $0x8] sm:$0xff]
        %v1655 = vld [vmem:[%s7 + $0x10] sm:$0xff]
        %v1656 = vld [vmem:[%s7 + $0x18] sm:$0xff]
        %v1658 = vsel %vm1286, %v1641, 0
        %v1661 = vsel %vm1286, %v1642, 0
        %1663 = vmatprep.subr.mxu0 0.0
        %1664 = vmatpush1.msra.mxu0 %v1655
        %1665 = vmatprep.subr.mxu0 0.0
        %1666 = vmatpush1.msra.mxu0 %v1656
        %1667 = vmatprep.subr.mxu0 0.0
        %1668 = vmatpush1.msra.mxu0 0.0
        %1669 = vmatprep.subr.mxu0 0.0
        %1670 = vmatpush1.msra.mxu0 0.0
        %1671 = vmatprep.subr.mxu0 0.0
        %1672 = vmatpush1.msra.mxu0 0.0
        %1673 = vmatprep.subr.mxu0 0.0
        %1674 = vmatpush1.msra.mxu0 0.0
        %1675 = vmatprep.subr.mxu0 0.0
        %1676 = vmatpush1.msra.mxu0 0.0
        %1677 = vmatprep.subr.mxu0 0.0
        %1678 = vmatpush1.msra.mxu0 0.0
        %1679 = vmatprep.subr.mxu0 0.0
        %1680 = vmatpush1.msra.mxu0 0.0
        %1681 = vmatprep.subr.mxu0 0.0
        %1682 = vmatpush1.msra.mxu0 0.0
        %1683 = vmatprep.subr.mxu0 0.0
        %1684 = vmatpush1.msra.mxu0 0.0
        %1685 = vmatprep.subr.mxu0 0.0
        %1686 = vmatpush1.msra.mxu0 0.0
        %1687 = vmatprep.subr.mxu0 0.0
        %1688 = vmatpush1.msra.mxu0 0.0
        %1689 = vmatprep.subr.mxu0 0.0
        %1690 = vmatpush1.msra.mxu0 0.0
        %1691 = vmatprep.subr.mxu0 0.0
        %1692 = vmatpush1.msra.mxu0 0.0
        %1693 = vmatprep.subr.mxu0 0.0
        %1694 = vmatpush1.msra.mxu0 0.0
        %1695 = vmatprep.subr.mxu0 0.0
        %1696 = vmatpush1.msra.mxu0 0.0
        %1697 = vmatprep.subr.mxu0 0.0
        %1698 = vmatpush1.msra.mxu0 0.0
        %1699 = vmatprep.subr.mxu0 0.0
        %1700 = vmatpush1.msra.mxu0 0.0
        %1701 = vmatprep.subr.mxu0 0.0
        %1702 = vmatpush1.msra.mxu0 0.0
        %1703 = vmatprep.subr.mxu0 0.0
        %1704 = vmatpush1.msra.mxu0 0.0
        %1705 = vmatprep.subr.mxu0 0.0
        %1706 = vmatpush1.msra.mxu0 0.0
        %1707 = vmatprep.subr.mxu0 0.0
        %1708 = vmatpush1.msra.mxu0 0.0
        %1709 = vmatprep.subr.mxu0 0.0
        %1710 = vmatpush1.msra.mxu0 0.0
        %1711 = vmatprep.subr.mxu0 0.0
        %1712 = vmatpush1.msra.mxu0 0.0
        %1713 = vmatprep.subr.mxu0 0.0
        %1714 = vmatpush1.msra.mxu0 0.0
        %1715 = vmatprep.subr.mxu0 0.0
        %1716 = vmatpush1.msra.mxu0 0.0
        %1717 = vmatprep.subr.mxu0 0.0
        %1718 = vmatpush1.msra.mxu0 0.0
        %1719 = vmatprep.subr.mxu0 0.0
        %1720 = vmatpush1.msra.mxu0 0.0
        %1721 = vmatprep.subr.mxu0 0.0
        %1722 = vmatpush1.msra.mxu0 0.0
        %1723 = vmatprep.subr.mxu0 0.0
        %1724 = vmatpush1.msra.mxu0 0.0
        %1725 = vmatprep.subr.mxu0 0.0
        %1726 = vmatpush1.msra.mxu0 0.0
        %1727 = vmatprep.mubr.f32.mxu0 0.0
        %1728 = vmatmul.mubr.f32.gmra.mrb[0].mxu0 %v1658
        %v1729 = vpop.f32.mrb[0].mxu0
        %v1730 = vadd.f32 0.0, %v1729
        %v1731 = vpop.f32.mrb[0].mxu0
        %1732 = vmatprep.mubr.f32.mxu0 0.0
        %1733 = vmatmul.mubr.f32.gmra.mrb[0].mxu0 %v1661
        %v1734 = vpop.f32.mrb[0].mxu0
        %v1735 = vadd.f32 0.0, %v1734
        %v1736 = vpop.f32.mrb[0].mxu0
        %1737 = vdwg.mxu0
        %v1739 = vsel %vm1286, %v1266, 0
        %v1742 = vsel %vm1286, %v1271, 0
        %1744 = vmatprep.subr.mxu0 0.0
        %1745 = vmatpush1.msra.mxu0 %v1653
        %1746 = vmatprep.subr.mxu0 0.0
        %1747 = vmatpush1.msra.mxu0 %v1654
        %1748 = vmatprep.subr.mxu0 0.0
        %1749 = vmatpush1.msra.mxu0 0.0
        %1750 = vmatprep.subr.mxu0 0.0
        %1751 = vmatpush1.msra.mxu0 0.0
        %1752 = vmatprep.subr.mxu0 0.0
        %1753 = vmatpush1.msra.mxu0 0.0
        %1754 = vmatprep.subr.mxu0 0.0
        %1755 = vmatpush1.msra.mxu0 0.0
        %1756 = vmatprep.subr.mxu0 0.0
        %1757 = vmatpush1.msra.mxu0 0.0
        %1758 = vmatprep.subr.mxu0 0.0
        %1759 = vmatpush1.msra.mxu0 0.0
        %1760 = vmatprep.subr.mxu0 0.0
        %1761 = vmatpush1.msra.mxu0 0.0
        %1762 = vmatprep.subr.mxu0 0.0
        %1763 = vmatpush1.msra.mxu0 0.0
        %1764 = vmatprep.subr.mxu0 0.0
        %1765 = vmatpush1.msra.mxu0 0.0
        %1766 = vmatprep.subr.mxu0 0.0
        %1767 = vmatpush1.msra.mxu0 0.0
        %1768 = vmatprep.subr.mxu0 0.0
        %1769 = vmatpush1.msra.mxu0 0.0
        %1770 = vmatprep.subr.mxu0 0.0
        %1771 = vmatpush1.msra.mxu0 0.0
        %1772 = vmatprep.subr.mxu0 0.0
        %1773 = vmatpush1.msra.mxu0 0.0
        %1774 = vmatprep.subr.mxu0 0.0
        %1775 = vmatpush1.msra.mxu0 0.0
        %1776 = vmatprep.subr.mxu0 0.0
        %1777 = vmatpush1.msra.mxu0 0.0
        %1778 = vmatprep.subr.mxu0 0.0
        %1779 = vmatpush1.msra.mxu0 0.0
        %1780 = vmatprep.subr.mxu0 0.0
        %1781 = vmatpush1.msra.mxu0 0.0
        %1782 = vmatprep.subr.mxu0 0.0
        %1783 = vmatpush1.msra.mxu0 0.0
        %1784 = vmatprep.subr.mxu0 0.0
        %1785 = vmatpush1.msra.mxu0 0.0
        %1786 = vmatprep.subr.mxu0 0.0
        %1787 = vmatpush1.msra.mxu0 0.0
        %1788 = vmatprep.subr.mxu0 0.0
        %1789 = vmatpush1.msra.mxu0 0.0
        %1790 = vmatprep.subr.mxu0 0.0
        %1791 = vmatpush1.msra.mxu0 0.0
        %1792 = vmatprep.subr.mxu0 0.0
        %1793 = vmatpush1.msra.mxu0 0.0
        %1794 = vmatprep.subr.mxu0 0.0
        %1795 = vmatpush1.msra.mxu0 0.0
        %1796 = vmatprep.subr.mxu0 0.0
        %1797 = vmatpush1.msra.mxu0 0.0
        %1798 = vmatprep.subr.mxu0 0.0
        %1799 = vmatpush1.msra.mxu0 0.0
        %1800 = vmatprep.subr.mxu0 0.0
        %1801 = vmatpush1.msra.mxu0 0.0
        %1802 = vmatprep.subr.mxu0 0.0
        %1803 = vmatpush1.msra.mxu0 0.0
        %1804 = vmatprep.subr.mxu0 0.0
        %1805 = vmatpush1.msra.mxu0 0.0
        %1806 = vmatprep.subr.mxu0 0.0
        %1807 = vmatpush1.msra.mxu0 0.0
        %1808 = vmatprep.mubr.f32.mxu0 0.0
        %1809 = vmatmul.mubr.f32.gmra.mrb[0].mxu0 %v1739
        %v1810 = vpop.f32.mrb[0].mxu0
        %v1811 = vadd.f32 %v1730, %v1810
        %v1812 = vpop.f32.mrb[0].mxu0
        %1813 = vmatprep.mubr.f32.mxu0 0.0
        %1814 = vmatmul.mubr.f32.gmra.mrb[0].mxu0 %v1742
        %v1815 = vpop.f32.mrb[0].mxu0
        %v1816 = vadd.f32 %v1735, %v1815
        %v1817 = vpop.f32.mrb[0].mxu0
        %1818 = vdwg.mxu0
        %v1819 = vld [vmem:[%s7 + $0x20] sm:$0xff]
        %v1820 = vld [vmem:[%s7 + $0x28] sm:$0xff]
        %v1822 = vsel %vm1286, %v1643, 0
        %v1825 = vsel %vm1286, %v1644, 0
        %1827 = vmatprep.subr.mxu0 0.0
        %1828 = vmatpush1.msra.mxu0 %v1819
        %1829 = vmatprep.subr.mxu0 0.0
        %1830 = vmatpush1.msra.mxu0 %v1820
        %1831 = vmatprep.subr.mxu0 0.0
        %1832 = vmatpush1.msra.mxu0 0.0
        %1833 = vmatprep.subr.mxu0 0.0
        %1834 = vmatpush1.msra.mxu0 0.0
        %1835 = vmatprep.subr.mxu0 0.0
        %1836 = vmatpush1.msra.mxu0 0.0
        %1837 = vmatprep.subr.mxu0 0.0
        %1838 = vmatpush1.msra.mxu0 0.0
        %1839 = vmatprep.subr.mxu0 0.0
        %1840 = vmatpush1.msra.mxu0 0.0
        %1841 = vmatprep.subr.mxu0 0.0
        %1842 = vmatpush1.msra.mxu0 0.0
        %1843 = vmatprep.subr.mxu0 0.0
        %1844 = vmatpush1.msra.mxu0 0.0
        %1845 = vmatprep.subr.mxu0 0.0
        %1846 = vmatpush1.msra.mxu0 0.0
        %1847 = vmatprep.subr.mxu0 0.0
        %1848 = vmatpush1.msra.mxu0 0.0
        %1849 = vmatprep.subr.mxu0 0.0
        %1850 = vmatpush1.msra.mxu0 0.0
        %1851 = vmatprep.subr.mxu0 0.0
        %1852 = vmatpush1.msra.mxu0 0.0
        %1853 = vmatprep.subr.mxu0 0.0
        %1854 = vmatpush1.msra.mxu0 0.0
        %1855 = vmatprep.subr.mxu0 0.0
        %1856 = vmatpush1.msra.mxu0 0.0
        %1857 = vmatprep.subr.mxu0 0.0
        %1858 = vmatpush1.msra.mxu0 0.0
        %1859 = vmatprep.subr.mxu0 0.0
        %1860 = vmatpush1.msra.mxu0 0.0
        %1861 = vmatprep.subr.mxu0 0.0
        %1862 = vmatpush1.msra.mxu0 0.0
        %1863 = vmatprep.subr.mxu0 0.0
        %1864 = vmatpush1.msra.mxu0 0.0
        %1865 = vmatprep.subr.mxu0 0.0
        %1866 = vmatpush1.msra.mxu0 0.0
        %1867 = vmatprep.subr.mxu0 0.0
        %1868 = vmatpush1.msra.mxu0 0.0
        %1869 = vmatprep.subr.mxu0 0.0
        %1870 = vmatpush1.msra.mxu0 0.0
        %1871 = vmatprep.subr.mxu0 0.0
        %1872 = vmatpush1.msra.mxu0 0.0
        %1873 = vmatprep.subr.mxu0 0.0
        %1874 = vmatpush1.msra.mxu0 0.0
        %1875 = vmatprep.subr.mxu0 0.0
        %1876 = vmatpush1.msra.mxu0 0.0
        %1877 = vmatprep.subr.mxu0 0.0
        %1878 = vmatpush1.msra.mxu0 0.0
        %1879 = vmatprep.subr.mxu0 0.0
        %1880 = vmatpush1.msra.mxu0 0.0
        %1881 = vmatprep.subr.mxu0 0.0
        %1882 = vmatpush1.msra.mxu0 0.0
        %1883 = vmatprep.subr.mxu0 0.0
        %1884 = vmatpush1.msra.mxu0 0.0
        %1885 = vmatprep.subr.mxu0 0.0
        %1886 = vmatpush1.msra.mxu0 0.0
        %1887 = vmatprep.subr.mxu0 0.0
        %1888 = vmatpush1.msra.mxu0 0.0
        %1889 = vmatprep.subr.mxu0 0.0
        %1890 = vmatpush1.msra.mxu0 0.0
        %1891 = vmatprep.mubr.f32.mxu0 0.0
        %1892 = vmatmul.mubr.f32.gmra.mrb[0].mxu0 %v1822
        %v1893 = vpop.f32.mrb[0].mxu0
        %v1894 = vadd.f32 0.0, %v1893
        %v1895 = vpop.f32.mrb[0].mxu0
        %1896 = vmatprep.mubr.f32.mxu0 0.0
        %1897 = vmatmul.mubr.f32.gmra.mrb[0].mxu0 %v1825
        %v1898 = vpop.f32.mrb[0].mxu0
        %v1899 = vadd.f32 0.0, %v1898
        %v1900 = vpop.f32.mrb[0].mxu0
        %1901 = vdwg.mxu0
        %v1902 = vadd.f32 %v1811, %v1894
        %v1903 = vadd.f32 %v1816, %v1899
        %v1904 = vld [vmem:[%s7 + $0x30] sm:$0xff]
        %v1905 = vld [vmem:[%s7 + $0x38] sm:$0xff]
        %v1907 = vsel %vm1286, %v1647, 0
        %v1910 = vsel %vm1286, %v1648, 0
        %1912 = vmatprep.subr.mxu0 0.0
        %1913 = vmatpush1.msra.mxu0 %v1904
        %1914 = vmatprep.subr.mxu0 0.0
        %1915 = vmatpush1.msra.mxu0 %v1905
        %1916 = vmatprep.subr.mxu0 0.0
        %1917 = vmatpush1.msra.mxu0 0.0
        %1918 = vmatprep.subr.mxu0 0.0
        %1919 = vmatpush1.msra.mxu0 0.0
        %1920 = vmatprep.subr.mxu0 0.0
        %1921 = vmatpush1.msra.mxu0 0.0
        %1922 = vmatprep.subr.mxu0 0.0
        %1923 = vmatpush1.msra.mxu0 0.0
        %1924 = vmatprep.subr.mxu0 0.0
        %1925 = vmatpush1.msra.mxu0 0.0
        %1926 = vmatprep.subr.mxu0 0.0
        %1927 = vmatpush1.msra.mxu0 0.0
        %1928 = vmatprep.subr.mxu0 0.0
        %1929 = vmatpush1.msra.mxu0 0.0
        %1930 = vmatprep.subr.mxu0 0.0
        %1931 = vmatpush1.msra.mxu0 0.0
        %1932 = vmatprep.subr.mxu0 0.0
        %1933 = vmatpush1.msra.mxu0 0.0
        %1934 = vmatprep.subr.mxu0 0.0
        %1935 = vmatpush1.msra.mxu0 0.0
        %1936 = vmatprep.subr.mxu0 0.0
        %1937 = vmatpush1.msra.mxu0 0.0
        %1938 = vmatprep.subr.mxu0 0.0
        %1939 = vmatpush1.msra.mxu0 0.0
        %1940 = vmatprep.subr.mxu0 0.0
        %1941 = vmatpush1.msra.mxu0 0.0
        %1942 = vmatprep.subr.mxu0 0.0
        %1943 = vmatpush1.msra.mxu0 0.0
        %1944 = vmatprep.subr.mxu0 0.0
        %1945 = vmatpush1.msra.mxu0 0.0
        %1946 = vmatprep.subr.mxu0 0.0
        %1947 = vmatpush1.msra.mxu0 0.0
        %1948 = vmatprep.subr.mxu0 0.0
        %1949 = vmatpush1.msra.mxu0 0.0
        %1950 = vmatprep.subr.mxu0 0.0
        %1951 = vmatpush1.msra.mxu0 0.0
        %1952 = vmatprep.subr.mxu0 0.0
        %1953 = vmatpush1.msra.mxu0 0.0
        %1954 = vmatprep.subr.mxu0 0.0
        %1955 = vmatpush1.msra.mxu0 0.0
        %1956 = vmatprep.subr.mxu0 0.0
        %1957 = vmatpush1.msra.mxu0 0.0
        %1958 = vmatprep.subr.mxu0 0.0
        %1959 = vmatpush1.msra.mxu0 0.0
        %1960 = vmatprep.subr.mxu0 0.0
        %1961 = vmatpush1.msra.mxu0 0.0
        %1962 = vmatprep.subr.mxu0 0.0
        %1963 = vmatpush1.msra.mxu0 0.0
        %1964 = vmatprep.subr.mxu0 0.0
        %1965 = vmatpush1.msra.mxu0 0.0
        %1966 = vmatprep.subr.mxu0 0.0
        %1967 = vmatpush1.msra.mxu0 0.0
        %1968 = vmatprep.subr.mxu0 0.0
        %1969 = vmatpush1.msra.mxu0 0.0
        %1970 = vmatprep.subr.mxu0 0.0
        %1971 = vmatpush1.msra.mxu0 0.0
        %1972 = vmatprep.subr.mxu0 0.0
        %1973 = vmatpush1.msra.mxu0 0.0
        %1974 = vmatprep.subr.mxu0 0.0
        %1975 = vmatpush1.msra.mxu0 0.0
        %1976 = vmatprep.mubr.f32.mxu0 0.0
        %1977 = vmatmul.mubr.f32.gmra.mrb[0].mxu0 %v1907
        %v1978 = vpop.f32.mrb[0].mxu0
        %v1979 = vadd.f32 0.0, %v1978
        %v1980 = vpop.f32.mrb[0].mxu0
        %1981 = vmatprep.mubr.f32.mxu0 0.0
        %1982 = vmatmul.mubr.f32.gmra.mrb[0].mxu0 %v1910
        %v1983 = vpop.f32.mrb[0].mxu0
        %v1984 = vadd.f32 0.0, %v1983
        %v1985 = vpop.f32.mrb[0].mxu0
        %1986 = vdwg.mxu0
        %v1987 = vadd.f32 %v1902, %v1979
        %v1988 = vadd.f32 %v1903, %v1984
        %v1989 = vld [vmem:[%s7 + $0x40] sm:$0xff]
        %v1990 = vld [vmem:[%s7 + $0x48] sm:$0xff]
        %v1992 = vsel %vm1286, %v1651, 0
        %v1995 = vsel %vm1286, %v1652, 0
        %1997 = vmatprep.subr.mxu0 0.0
        %1998 = vmatpush1.msra.mxu0 %v1989
        %1999 = vmatprep.subr.mxu0 0.0
        %2000 = vmatpush1.msra.mxu0 %v1990
        %2001 = vmatprep.subr.mxu0 0.0
        %2002 = vmatpush1.msra.mxu0 0.0
        %2003 = vmatprep.subr.mxu0 0.0
        %2004 = vmatpush1.msra.mxu0 0.0
        %2005 = vmatprep.subr.mxu0 0.0
        %2006 = vmatpush1.msra.mxu0 0.0
        %2007 = vmatprep.subr.mxu0 0.0
        %2008 = vmatpush1.msra.mxu0 0.0
        %2009 = vmatprep.subr.mxu0 0.0
        %2010 = vmatpush1.msra.mxu0 0.0
        %2011 = vmatprep.subr.mxu0 0.0
        %2012 = vmatpush1.msra.mxu0 0.0
        %2013 = vmatprep.subr.mxu0 0.0
        %2014 = vmatpush1.msra.mxu0 0.0
        %2015 = vmatprep.subr.mxu0 0.0
        %2016 = vmatpush1.msra.mxu0 0.0
        %2017 = vmatprep.subr.mxu0 0.0
        %2018 = vmatpush1.msra.mxu0 0.0
        %2019 = vmatprep.subr.mxu0 0.0
        %2020 = vmatpush1.msra.mxu0 0.0
        %2021 = vmatprep.subr.mxu0 0.0
        %2022 = vmatpush1.msra.mxu0 0.0
        %2023 = vmatprep.subr.mxu0 0.0
        %2024 = vmatpush1.msra.mxu0 0.0
        %2025 = vmatprep.subr.mxu0 0.0
        %2026 = vmatpush1.msra.mxu0 0.0
        %2027 = vmatprep.subr.mxu0 0.0
        %2028 = vmatpush1.msra.mxu0 0.0
        %2029 = vmatprep.subr.mxu0 0.0
        %2030 = vmatpush1.msra.mxu0 0.0
        %2031 = vmatprep.subr.mxu0 0.0
        %2032 = vmatpush1.msra.mxu0 0.0
        %2033 = vmatprep.subr.mxu0 0.0
        %2034 = vmatpush1.msra.mxu0 0.0
        %2035 = vmatprep.subr.mxu0 0.0
        %2036 = vmatpush1.msra.mxu0 0.0
        %2037 = vmatprep.subr.mxu0 0.0
        %2038 = vmatpush1.msra.mxu0 0.0
        %2039 = vmatprep.subr.mxu0 0.0
        %2040 = vmatpush1.msra.mxu0 0.0
        %2041 = vmatprep.subr.mxu0 0.0
        %2042 = vmatpush1.msra.mxu0 0.0
        %2043 = vmatprep.subr.mxu0 0.0
        %2044 = vmatpush1.msra.mxu0 0.0
        %2045 = vmatprep.subr.mxu0 0.0
        %2046 = vmatpush1.msra.mxu0 0.0
        %2047 = vmatprep.subr.mxu0 0.0
        %2048 = vmatpush1.msra.mxu0 0.0
        %2049 = vmatprep.subr.mxu0 0.0
        %2050 = vmatpush1.msra.mxu0 0.0
        %2051 = vmatprep.subr.mxu0 0.0
        %2052 = vmatpush1.msra.mxu0 0.0
        %2053 = vmatprep.subr.mxu0 0.0
        %2054 = vmatpush1.msra.mxu0 0.0
        %2055 = vmatprep.subr.mxu0 0.0
        %2056 = vmatpush1.msra.mxu0 0.0
        %2057 = vmatprep.subr.mxu0 0.0
        %2058 = vmatpush1.msra.mxu0 0.0
        %2059 = vmatprep.subr.mxu0 0.0
        %2060 = vmatpush1.msra.mxu0 0.0
        %2061 = vmatprep.mubr.f32.mxu0 0.0
        %2062 = vmatmul.mubr.f32.gmra.mrb[0].mxu0 %v1992
        %v2063 = vpop.f32.mrb[0].mxu0
        %v2064 = vadd.f32 0.0, %v2063
        %v2065 = vpop.f32.mrb[0].mxu0
        %2066 = vmatprep.mubr.f32.mxu0 0.0
        %2067 = vmatmul.mubr.f32.gmra.mrb[0].mxu0 %v1995
        %v2068 = vpop.f32.mrb[0].mxu0
        %v2069 = vadd.f32 0.0, %v2068
        %v2070 = vpop.f32.mrb[0].mxu0
        %2071 = vdwg.mxu0
        %v2072 = vadd.f32 %v1987, %v2064
        %v2073 = vadd.f32 %v1988, %v2069
        %v2074 = vld [vmem:[%s8] sm:$0x1]
        %v2076 = vlaneseq
        %v2077 = vshrl.u32 %v2076, 7
        %v2078 = vsub.s32 0, %v2077
        %v2079 = vrot.slane %v2074, %v2078
        %v2081 = vadd.f32 %v2072, %v2079
        %v2082 = vadd.f32 %v2073, %v2079
        %v2083 = vsel %vm1286, %v2081, 0.0
        %v2084 = vsel %vm1286, %v2082, 0.0
        %v2085 = vadd.f32 %v2083, %v2084
        %v2086 = vrot.slane %v2085, 4
        %v2087 = vadd.f32 %v2085, %v2086
        %v2088 = vrot.slane %v2087, 2
        %v2089 = vadd.f32 %v2087, %v2088
        %v2090 = vrot.slane %v2089, 1
        %v2091 = vadd.f32 %v2089, %v2090
        %v2092 = vrcp.pop 16.0
        %v2093 = vmul.f32 %v2091, %v2092
        %v2094 = vsub.f32 %v2081, %v2093
        %v2095 = vsub.f32 %v2082, %v2093
        %v2096 = vmul.f32 %v2094, %v2094
        %v2097 = vmul.f32 %v2095, %v2095
        %v2098 = vsel %vm1286, %v2096, 0.0
        %v2099 = vsel %vm1286, %v2097, 0.0
        %v2100 = vadd.f32 %v2098, %v2099
        %v2101 = vrot.slane %v2100, 4
        %v2102 = vadd.f32 %v2100, %v2101
        %v2103 = vrot.slane %v2102, 2
        %v2104 = vadd.f32 %v2102, %v2103
        %v2105 = vrot.slane %v2104, 1
        %v2106 = vadd.f32 %v2104, %v2105
        %v2107 = vmul.f32 %v2106, %v2092
        %v2108 = vadd.f32 %v2107, 1e-05
        %v2109 = vrsqrt.pop %v2108
        %v2110 = vmul.f32 %v2094, %v2109
        %v2111 = vmul.f32 %v2095, %v2109
        %v2112 = vmax.f32 %v2110, 0.0
        %v2113 = vmax.f32 %v2111, 0.0
        %2114 = vmatprep.subr.mxu0 0.0
        %2115 = vmatpush1.msra.mxu0 %v2112
        %2116 = vmatprep.subr.mxu0 0.0
        %2117 = vmatpush1.msra.mxu0 %v2113
        %2118 = vmatprep.subr.mxu0 0.0
        %2119 = vmatpush1.msra.mxu0 0.0
        %2120 = vmatprep.subr.mxu0 0.0
        %2121 = vmatpush1.msra.mxu0 0.0
        %2122 = vmatprep.subr.mxu0 0.0
        %2123 = vmatpush1.msra.mxu0 0.0
        %2124 = vmatprep.subr.mxu0 0.0
        %2125 = vmatpush1.msra.mxu0 0.0
        %2126 = vmatprep.subr.mxu0 0.0
        %2127 = vmatpush1.msra.mxu0 0.0
        %2128 = vmatprep.subr.mxu0 0.0
        %2129 = vmatpush1.msra.mxu0 0.0
        %2130 = vmatprep.subr.mxu0 0.0
        %2131 = vmatpush1.msra.mxu0 0.0
        %2132 = vmatprep.subr.mxu0 0.0
        %2133 = vmatpush1.msra.mxu0 0.0
        %2134 = vmatprep.subr.mxu0 0.0
        %2135 = vmatpush1.msra.mxu0 0.0
        %2136 = vmatprep.subr.mxu0 0.0
        %2137 = vmatpush1.msra.mxu0 0.0
        %2138 = vmatprep.subr.mxu0 0.0
        %2139 = vmatpush1.msra.mxu0 0.0
        %2140 = vmatprep.subr.mxu0 0.0
        %2141 = vmatpush1.msra.mxu0 0.0
        %2142 = vmatprep.subr.mxu0 0.0
        %2143 = vmatpush1.msra.mxu0 0.0
        %2144 = vmatprep.subr.mxu0 0.0
        %2145 = vmatpush1.msra.mxu0 0.0
        %2146 = vmatprep.subr.mxu0 0.0
        %2147 = vmatpush1.msra.mxu0 0.0
        %2148 = vmatprep.subr.mxu0 0.0
        %2149 = vmatpush1.msra.mxu0 0.0
        %2150 = vmatprep.subr.mxu0 0.0
        %2151 = vmatpush1.msra.mxu0 0.0
        %2152 = vmatprep.subr.mxu0 0.0
        %2153 = vmatpush1.msra.mxu0 0.0
        %2154 = vmatprep.subr.mxu0 0.0
        %2155 = vmatpush1.msra.mxu0 0.0
        %2156 = vmatprep.subr.mxu0 0.0
        %2157 = vmatpush1.msra.mxu0 0.0
        %2158 = vmatprep.subr.mxu0 0.0
        %2159 = vmatpush1.msra.mxu0 0.0
        %2160 = vmatprep.subr.mxu0 0.0
        %2161 = vmatpush1.msra.mxu0 0.0
        %2162 = vmatprep.subr.mxu0 0.0
        %2163 = vmatpush1.msra.mxu0 0.0
        %2164 = vmatprep.subr.mxu0 0.0
        %2165 = vmatpush1.msra.mxu0 0.0
        %2166 = vmatprep.subr.mxu0 0.0
        %2167 = vmatpush1.msra.mxu0 0.0
        %2168 = vmatprep.subr.mxu0 0.0
        %2169 = vmatpush1.msra.mxu0 0.0
        %2170 = vmatprep.subr.mxu0 0.0
        %2171 = vmatpush1.msra.mxu0 0.0
        %2172 = vmatprep.subr.mxu0 0.0
        %2173 = vmatpush1.msra.mxu0 0.0
        %2174 = vmatprep.subr.mxu0 0.0
        %2175 = vmatpush1.msra.mxu0 0.0
        %2176 = vmatprep.subr.mxu0 0.0
        %2177 = vmatpush1.msra.mxu0 0.0
        %2178 = vmatprep.mubr.f32.mxu0 0.0
        %2179 = vmatmul.mubr.f32.gmra.mrb[0].mxu0 %v1288
        %v2180 = vpop.f32.mrb[0].mxu0
        %v2181 = vadd.f32 0.0, %v2180
        %v2182 = vpop.f32.mrb[0].mxu0
        %2183 = vmatprep.mubr.f32.mxu0 0.0
        %2184 = vmatmul.mubr.f32.gmra.mrb[0].mxu0 %v1291
        %v2185 = vpop.f32.mrb[0].mxu0
        %v2186 = vadd.f32 0.0, %v2185
        %v2187 = vpop.f32.mrb[0].mxu0
        %2188 = vdwg.mxu0
        %2189 = vmatprep.subr.mxu0 0.0
        %2190 = vmatpush1.msra.mxu0 %v2112
        %2191 = vmatprep.subr.mxu0 0.0
        %2192 = vmatpush1.msra.mxu0 %v2113
        %2193 = vmatprep.subr.mxu0 0.0
        %2194 = vmatpush1.msra.mxu0 0.0
        %2195 = vmatprep.subr.mxu0 0.0
        %2196 = vmatpush1.msra.mxu0 0.0
        %2197 = vmatprep.subr.mxu0 0.0
        %2198 = vmatpush1.msra.mxu0 0.0
        %2199 = vmatprep.subr.mxu0 0.0
        %2200 = vmatpush1.msra.mxu0 0.0
        %2201 = vmatprep.subr.mxu0 0.0
        %2202 = vmatpush1.msra.mxu0 0.0
        %2203 = vmatprep.subr.mxu0 0.0
        %2204 = vmatpush1.msra.mxu0 0.0
        %2205 = vmatprep.subr.mxu0 0.0
        %2206 = vmatpush1.msra.mxu0 0.0
        %2207 = vmatprep.subr.mxu0 0.0
        %2208 = vmatpush1.msra.mxu0 0.0
        %2209 = vmatprep.subr.mxu0 0.0
        %2210 = vmatpush1.msra.mxu0 0.0
        %2211 = vmatprep.subr.mxu0 0.0
        %2212 = vmatpush1.msra.mxu0 0.0
        %2213 = vmatprep.subr.mxu0 0.0
        %2214 = vmatpush1.msra.mxu0 0.0
        %2215 = vmatprep.subr.mxu0 0.0
        %2216 = vmatpush1.msra.mxu0 0.0
        %2217 = vmatprep.subr.mxu0 0.0
        %2218 = vmatpush1.msra.mxu0 0.0
        %2219 = vmatprep.subr.mxu0 0.0
        %2220 = vmatpush1.msra.mxu0 0.0
        %2221 = vmatprep.subr.mxu0 0.0
        %2222 = vmatpush1.msra.mxu0 0.0
        %2223 = vmatprep.subr.mxu0 0.0
        %2224 = vmatpush1.msra.mxu0 0.0
        %2225 = vmatprep.subr.mxu0 0.0
        %2226 = vmatpush1.msra.mxu0 0.0
        %2227 = vmatprep.subr.mxu0 0.0
        %2228 = vmatpush1.msra.mxu0 0.0
        %2229 = vmatprep.subr.mxu0 0.0
        %2230 = vmatpush1.msra.mxu0 0.0
        %2231 = vmatprep.subr.mxu0 0.0
        %2232 = vmatpush1.msra.mxu0 0.0
        %2233 = vmatprep.subr.mxu0 0.0
        %2234 = vmatpush1.msra.mxu0 0.0
        %2235 = vmatprep.subr.mxu0 0.0
        %2236 = vmatpush1.msra.mxu0 0.0
        %2237 = vmatprep.subr.mxu0 0.0
        %2238 = vmatpush1.msra.mxu0 0.0
        %2239 = vmatprep.subr.mxu0 0.0
        %2240 = vmatpush1.msra.mxu0 0.0
        %2241 = vmatprep.subr.mxu0 0.0
        %2242 = vmatpush1.msra.mxu0 0.0
        %2243 = vmatprep.subr.mxu0 0.0
        %2244 = vmatpush1.msra.mxu0 0.0
        %2245 = vmatprep.subr.mxu0 0.0
        %2246 = vmatpush1.msra.mxu0 0.0
        %2247 = vmatprep.subr.mxu0 0.0
        %2248 = vmatpush1.msra.mxu0 0.0
        %2249 = vmatprep.subr.mxu0 0.0
        %2250 = vmatpush1.msra.mxu0 0.0
        %2251 = vmatprep.subr.mxu0 0.0
        %2252 = vmatpush1.msra.mxu0 0.0
        %2253 = vmatprep.mubr.f32.mxu0 0.0
        %2254 = vmatmul.mubr.f32.gmra.mrb[0].mxu0 %v1379
        %v2255 = vpop.f32.mrb[0].mxu0
        %v2256 = vadd.f32 0.0, %v2255
        %v2257 = vpop.f32.mrb[0].mxu0
        %2258 = vmatprep.mubr.f32.mxu0 0.0
        %2259 = vmatmul.mubr.f32.gmra.mrb[0].mxu0 %v1382
        %v2260 = vpop.f32.mrb[0].mxu0
        %v2261 = vadd.f32 0.0, %v2260
        %v2262 = vpop.f32.mrb[0].mxu0
        %2263 = vdwg.mxu0
        %2264 = vmatprep.subr.mxu0 0.0
        %2265 = vmatpush1.msra.mxu0 %v2112
        %2266 = vmatprep.subr.mxu0 0.0
        %2267 = vmatpush1.msra.mxu0 %v2113
        %2268 = vmatprep.subr.mxu0 0.0
        %2269 = vmatpush1.msra.mxu0 0.0
        %2270 = vmatprep.subr.mxu0 0.0
        %2271 = vmatpush1.msra.mxu0 0.0
        %2272 = vmatprep.subr.mxu0 0.0
        %2273 = vmatpush1.msra.mxu0 0.0
        %2274 = vmatprep.subr.mxu0 0.0
        %2275 = vmatpush1.msra.mxu0 0.0
        %2276 = vmatprep.subr.mxu0 0.0
        %2277 = vmatpush1.msra.mxu0 0.0
        %2278 = vmatprep.subr.mxu0 0.0
        %2279 = vmatpush1.msra.mxu0 0.0
        %2280 = vmatprep.subr.mxu0 0.0
        %2281 = vmatpush1.msra.mxu0 0.0
        %2282 = vmatprep.subr.mxu0 0.0
        %2283 = vmatpush1.msra.mxu0 0.0
        %2284 = vmatprep.subr.mxu0 0.0
        %2285 = vmatpush1.msra.mxu0 0.0
        %2286 = vmatprep.subr.mxu0 0.0
        %2287 = vmatpush1.msra.mxu0 0.0
        %2288 = vmatprep.subr.mxu0 0.0
        %2289 = vmatpush1.msra.mxu0 0.0
        %2290 = vmatprep.subr.mxu0 0.0
        %2291 = vmatpush1.msra.mxu0 0.0
        %2292 = vmatprep.subr.mxu0 0.0
        %2293 = vmatpush1.msra.mxu0 0.0
        %2294 = vmatprep.subr.mxu0 0.0
        %2295 = vmatpush1.msra.mxu0 0.0
        %2296 = vmatprep.subr.mxu0 0.0
        %2297 = vmatpush1.msra.mxu0 0.0
        %2298 = vmatprep.subr.mxu0 0.0
        %2299 = vmatpush1.msra.mxu0 0.0
        %2300 = vmatprep.subr.mxu0 0.0
        %2301 = vmatpush1.msra.mxu0 0.0
        %2302 = vmatprep.subr.mxu0 0.0
        %2303 = vmatpush1.msra.mxu0 0.0
        %2304 = vmatprep.subr.mxu0 0.0
        %2305 = vmatpush1.msra.mxu0 0.0
        %2306 = vmatprep.subr.mxu0 0.0
        %2307 = vmatpush1.msra.mxu0 0.0
        %2308 = vmatprep.subr.mxu0 0.0
        %2309 = vmatpush1.msra.mxu0 0.0
        %2310 = vmatprep.subr.mxu0 0.0
        %2311 = vmatpush1.msra.mxu0 0.0
        %2312 = vmatprep.subr.mxu0 0.0
        %2313 = vmatpush1.msra.mxu0 0.0
        %2314 = vmatprep.subr.mxu0 0.0
        %2315 = vmatpush1.msra.mxu0 0.0
        %2316 = vmatprep.subr.mxu0 0.0
        %2317 = vmatpush1.msra.mxu0 0.0
        %2318 = vmatprep.subr.mxu0 0.0
        %2319 = vmatpush1.msra.mxu0 0.0
        %2320 = vmatprep.subr.mxu0 0.0
        %2321 = vmatpush1.msra.mxu0 0.0
        %2322 = vmatprep.subr.mxu0 0.0
        %2323 = vmatpush1.msra.mxu0 0.0
        %2324 = vmatprep.subr.mxu0 0.0
        %2325 = vmatpush1.msra.mxu0 0.0
        %2326 = vmatprep.subr.mxu0 0.0
        %2327 = vmatpush1.msra.mxu0 0.0
        %2328 = vmatprep.mubr.f32.mxu0 0.0
        %2329 = vmatmul.mubr.f32.gmra.mrb[0].mxu0 %v1470
        %v2330 = vpop.f32.mrb[0].mxu0
        %v2331 = vadd.f32 0.0, %v2330
        %v2332 = vpop.f32.mrb[0].mxu0
        %2333 = vmatprep.mubr.f32.mxu0 0.0
        %2334 = vmatmul.mubr.f32.gmra.mrb[0].mxu0 %v1473
        %v2335 = vpop.f32.mrb[0].mxu0
        %v2336 = vadd.f32 0.0, %v2335
        %v2337 = vpop.f32.mrb[0].mxu0
        %2338 = vdwg.mxu0
        %2339 = vmatprep.subr.mxu0 0.0
        %2340 = vmatpush1.msra.mxu0 %v2112
        %2341 = vmatprep.subr.mxu0 0.0
        %2342 = vmatpush1.msra.mxu0 %v2113
        %2343 = vmatprep.subr.mxu0 0.0
        %2344 = vmatpush1.msra.mxu0 0.0
        %2345 = vmatprep.subr.mxu0 0.0
        %2346 = vmatpush1.msra.mxu0 0.0
        %2347 = vmatprep.subr.mxu0 0.0
        %2348 = vmatpush1.msra.mxu0 0.0
        %2349 = vmatprep.subr.mxu0 0.0
        %2350 = vmatpush1.msra.mxu0 0.0
        %2351 = vmatprep.subr.mxu0 0.0
        %2352 = vmatpush1.msra.mxu0 0.0
        %2353 = vmatprep.subr.mxu0 0.0
        %2354 = vmatpush1.msra.mxu0 0.0
        %2355 = vmatprep.subr.mxu0 0.0
        %2356 = vmatpush1.msra.mxu0 0.0
        %2357 = vmatprep.subr.mxu0 0.0
        %2358 = vmatpush1.msra.mxu0 0.0
        %2359 = vmatprep.subr.mxu0 0.0
        %2360 = vmatpush1.msra.mxu0 0.0
        %2361 = vmatprep.subr.mxu0 0.0
        %2362 = vmatpush1.msra.mxu0 0.0
        %2363 = vmatprep.subr.mxu0 0.0
        %2364 = vmatpush1.msra.mxu0 0.0
        %2365 = vmatprep.subr.mxu0 0.0
        %2366 = vmatpush1.msra.mxu0 0.0
        %2367 = vmatprep.subr.mxu0 0.0
        %2368 = vmatpush1.msra.mxu0 0.0
        %2369 = vmatprep.subr.mxu0 0.0
        %2370 = vmatpush1.msra.mxu0 0.0
        %2371 = vmatprep.subr.mxu0 0.0
        %2372 = vmatpush1.msra.mxu0 0.0
        %2373 = vmatprep.subr.mxu0 0.0
        %2374 = vmatpush1.msra.mxu0 0.0
        %2375 = vmatprep.subr.mxu0 0.0
        %2376 = vmatpush1.msra.mxu0 0.0
        %2377 = vmatprep.subr.mxu0 0.0
        %2378 = vmatpush1.msra.mxu0 0.0
        %2379 = vmatprep.subr.mxu0 0.0
        %2380 = vmatpush1.msra.mxu0 0.0
        %2381 = vmatprep.subr.mxu0 0.0
        %2382 = vmatpush1.msra.mxu0 0.0
        %2383 = vmatprep.subr.mxu0 0.0
        %2384 = vmatpush1.msra.mxu0 0.0
        %2385 = vmatprep.subr.mxu0 0.0
        %2386 = vmatpush1.msra.mxu0 0.0
        %2387 = vmatprep.subr.mxu0 0.0
        %2388 = vmatpush1.msra.mxu0 0.0
        %2389 = vmatprep.subr.mxu0 0.0
        %2390 = vmatpush1.msra.mxu0 0.0
        %2391 = vmatprep.subr.mxu0 0.0
        %2392 = vmatpush1.msra.mxu0 0.0
        %2393 = vmatprep.subr.mxu0 0.0
        %2394 = vmatpush1.msra.mxu0 0.0
        %2395 = vmatprep.subr.mxu0 0.0
        %2396 = vmatpush1.msra.mxu0 0.0
        %2397 = vmatprep.subr.mxu0 0.0
        %2398 = vmatpush1.msra.mxu0 0.0
        %2399 = vmatprep.subr.mxu0 0.0
        %2400 = vmatpush1.msra.mxu0 0.0
        %2401 = vmatprep.subr.mxu0 0.0
        %2402 = vmatpush1.msra.mxu0 0.0
        %2403 = vmatprep.mubr.f32.mxu0 0.0
        %2404 = vmatmul.mubr.f32.gmra.mrb[0].mxu0 %v1561
        %v2405 = vpop.f32.mrb[0].mxu0
        %v2406 = vadd.f32 0.0, %v2405
        %v2407 = vpop.f32.mrb[0].mxu0
        %2408 = vmatprep.mubr.f32.mxu0 0.0
        %2409 = vmatmul.mubr.f32.gmra.mrb[0].mxu0 %v1564
        %v2410 = vpop.f32.mrb[0].mxu0
        %v2411 = vadd.f32 0.0, %v2410
        %v2412 = vpop.f32.mrb[0].mxu0
        %2413 = vdwg.mxu0
        %v2414 = vadd.f32 %v2181, %v2331
        %v2415 = vadd.f32 %v2186, %v2336
        %v2416 = vadd.f32 %v2256, %v2406
        %v2417 = vadd.f32 %v2261, %v2411
        %v2418 = vsub.f32 %v2181, %v2331
        %v2419 = vsub.f32 %v2186, %v2336
        %v2420 = vand.u32 2147483647, %v2418
        %v2421 = vand.u32 2147483647, %v2419
        %v2422 = vsub.f32 %v2256, %v2406
        %v2423 = vsub.f32 %v2261, %v2411
        %v2424 = vand.u32 2147483647, %v2422
        %v2425 = vand.u32 2147483647, %v2423
        %v2426 = vld [vmem:[%s9] sm:$0xff]
        %v2427 = vld [vmem:[%s9 + $0x8] sm:$0xff]
        %v2428 = vld [vmem:[%s9 + $0x10] sm:$0xff]
        %v2429 = vld [vmem:[%s9 + $0x18] sm:$0xff]
        %v2431 = vsel %vm1286, %v2414, 0
        %v2434 = vsel %vm1286, %v2415, 0
        %2436 = vmatprep.subr.mxu0 0.0
        %2437 = vmatpush1.msra.mxu0 %v2428
        %2438 = vmatprep.subr.mxu0 0.0
        %2439 = vmatpush1.msra.mxu0 %v2429
        %2440 = vmatprep.subr.mxu0 0.0
        %2441 = vmatpush1.msra.mxu0 0.0
        %2442 = vmatprep.subr.mxu0 0.0
        %2443 = vmatpush1.msra.mxu0 0.0
        %2444 = vmatprep.subr.mxu0 0.0
        %2445 = vmatpush1.msra.mxu0 0.0
        %2446 = vmatprep.subr.mxu0 0.0
        %2447 = vmatpush1.msra.mxu0 0.0
        %2448 = vmatprep.subr.mxu0 0.0
        %2449 = vmatpush1.msra.mxu0 0.0
        %2450 = vmatprep.subr.mxu0 0.0
        %2451 = vmatpush1.msra.mxu0 0.0
        %2452 = vmatprep.subr.mxu0 0.0
        %2453 = vmatpush1.msra.mxu0 0.0
        %2454 = vmatprep.subr.mxu0 0.0
        %2455 = vmatpush1.msra.mxu0 0.0
        %2456 = vmatprep.subr.mxu0 0.0
        %2457 = vmatpush1.msra.mxu0 0.0
        %2458 = vmatprep.subr.mxu0 0.0
        %2459 = vmatpush1.msra.mxu0 0.0
        %2460 = vmatprep.subr.mxu0 0.0
        %2461 = vmatpush1.msra.mxu0 0.0
        %2462 = vmatprep.subr.mxu0 0.0
        %2463 = vmatpush1.msra.mxu0 0.0
        %2464 = vmatprep.subr.mxu0 0.0
        %2465 = vmatpush1.msra.mxu0 0.0
        %2466 = vmatprep.subr.mxu0 0.0
        %2467 = vmatpush1.msra.mxu0 0.0
        %2468 = vmatprep.subr.mxu0 0.0
        %2469 = vmatpush1.msra.mxu0 0.0
        %2470 = vmatprep.subr.mxu0 0.0
        %2471 = vmatpush1.msra.mxu0 0.0
        %2472 = vmatprep.subr.mxu0 0.0
        %2473 = vmatpush1.msra.mxu0 0.0
        %2474 = vmatprep.subr.mxu0 0.0
        %2475 = vmatpush1.msra.mxu0 0.0
        %2476 = vmatprep.subr.mxu0 0.0
        %2477 = vmatpush1.msra.mxu0 0.0
        %2478 = vmatprep.subr.mxu0 0.0
        %2479 = vmatpush1.msra.mxu0 0.0
        %2480 = vmatprep.subr.mxu0 0.0
        %2481 = vmatpush1.msra.mxu0 0.0
        %2482 = vmatprep.subr.mxu0 0.0
        %2483 = vmatpush1.msra.mxu0 0.0
        %2484 = vmatprep.subr.mxu0 0.0
        %2485 = vmatpush1.msra.mxu0 0.0
        %2486 = vmatprep.subr.mxu0 0.0
        %2487 = vmatpush1.msra.mxu0 0.0
        %2488 = vmatprep.subr.mxu0 0.0
        %2489 = vmatpush1.msra.mxu0 0.0
        %2490 = vmatprep.subr.mxu0 0.0
        %2491 = vmatpush1.msra.mxu0 0.0
        %2492 = vmatprep.subr.mxu0 0.0
        %2493 = vmatpush1.msra.mxu0 0.0
        %2494 = vmatprep.subr.mxu0 0.0
        %2495 = vmatpush1.msra.mxu0 0.0
        %2496 = vmatprep.subr.mxu0 0.0
        %2497 = vmatpush1.msra.mxu0 0.0
        %2498 = vmatprep.subr.mxu0 0.0
        %2499 = vmatpush1.msra.mxu0 0.0
        %2500 = vmatprep.mubr.f32.mxu0 0.0
        %2501 = vmatmul.mubr.f32.gmra.mrb[0].mxu0 %v2431
        %v2502 = vpop.f32.mrb[0].mxu0
        %v2503 = vadd.f32 0.0, %v2502
        %v2504 = vpop.f32.mrb[0].mxu0
        %2505 = vmatprep.mubr.f32.mxu0 0.0
        %2506 = vmatmul.mubr.f32.gmra.mrb[0].mxu0 %v2434
        %v2507 = vpop.f32.mrb[0].mxu0
        %v2508 = vadd.f32 0.0, %v2507
        %v2509 = vpop.f32.mrb[0].mxu0
        %2510 = vdwg.mxu0
        %v2512 = vsel %vm1286, %v2112, 0
        %v2515 = vsel %vm1286, %v2113, 0
        %2517 = vmatprep.subr.mxu0 0.0
        %2518 = vmatpush1.msra.mxu0 %v2426
        %2519 = vmatprep.subr.mxu0 0.0
        %2520 = vmatpush1.msra.mxu0 %v2427
        %2521 = vmatprep.subr.mxu0 0.0
        %2522 = vmatpush1.msra.mxu0 0.0
        %2523 = vmatprep.subr.mxu0 0.0
        %2524 = vmatpush1.msra.mxu0 0.0
        %2525 = vmatprep.subr.mxu0 0.0
        %2526 = vmatpush1.msra.mxu0 0.0
        %2527 = vmatprep.subr.mxu0 0.0
        %2528 = vmatpush1.msra.mxu0 0.0
        %2529 = vmatprep.subr.mxu0 0.0
        %2530 = vmatpush1.msra.mxu0 0.0
        %2531 = vmatprep.subr.mxu0 0.0
        %2532 = vmatpush1.msra.mxu0 0.0
        %2533 = vmatprep.subr.mxu0 0.0
        %2534 = vmatpush1.msra.mxu0 0.0
        %2535 = vmatprep.subr.mxu0 0.0
        %2536 = vmatpush1.msra.mxu0 0.0
        %2537 = vmatprep.subr.mxu0 0.0
        %2538 = vmatpush1.msra.mxu0 0.0
        %2539 = vmatprep.subr.mxu0 0.0
        %2540 = vmatpush1.msra.mxu0 0.0
        %2541 = vmatprep.subr.mxu0 0.0
        %2542 = vmatpush1.msra.mxu0 0.0
        %2543 = vmatprep.subr.mxu0 0.0
        %2544 = vmatpush1.msra.mxu0 0.0
        %2545 = vmatprep.subr.mxu0 0.0
        %2546 = vmatpush1.msra.mxu0 0.0
        %2547 = vmatprep.subr.mxu0 0.0
        %2548 = vmatpush1.msra.mxu0 0.0
        %2549 = vmatprep.subr.mxu0 0.0
        %2550 = vmatpush1.msra.mxu0 0.0
        %2551 = vmatprep.subr.mxu0 0.0
        %2552 = vmatpush1.msra.mxu0 0.0
        %2553 = vmatprep.subr.mxu0 0.0
        %2554 = vmatpush1.msra.mxu0 0.0
        %2555 = vmatprep.subr.mxu0 0.0
        %2556 = vmatpush1.msra.mxu0 0.0
        %2557 = vmatprep.subr.mxu0 0.0
        %2558 = vmatpush1.msra.mxu0 0.0
        %2559 = vmatprep.subr.mxu0 0.0
        %2560 = vmatpush1.msra.mxu0 0.0
        %2561 = vmatprep.subr.mxu0 0.0
        %2562 = vmatpush1.msra.mxu0 0.0
        %2563 = vmatprep.subr.mxu0 0.0
        %2564 = vmatpush1.msra.mxu0 0.0
        %2565 = vmatprep.subr.mxu0 0.0
        %2566 = vmatpush1.msra.mxu0 0.0
        %2567 = vmatprep.subr.mxu0 0.0
        %2568 = vmatpush1.msra.mxu0 0.0
        %2569 = vmatprep.subr.mxu0 0.0
        %2570 = vmatpush1.msra.mxu0 0.0
        %2571 = vmatprep.subr.mxu0 0.0
        %2572 = vmatpush1.msra.mxu0 0.0
        %2573 = vmatprep.subr.mxu0 0.0
        %2574 = vmatpush1.msra.mxu0 0.0
        %2575 = vmatprep.subr.mxu0 0.0
        %2576 = vmatpush1.msra.mxu0 0.0
        %2577 = vmatprep.subr.mxu0 0.0
        %2578 = vmatpush1.msra.mxu0 0.0
        %2579 = vmatprep.subr.mxu0 0.0
        %2580 = vmatpush1.msra.mxu0 0.0
        %2581 = vmatprep.mubr.f32.mxu0 0.0
        %2582 = vmatmul.mubr.f32.gmra.mrb[0].mxu0 %v2512
        %v2583 = vpop.f32.mrb[0].mxu0
        %v2584 = vadd.f32 %v2503, %v2583
        %v2585 = vpop.f32.mrb[0].mxu0
        %2586 = vmatprep.mubr.f32.mxu0 0.0
        %2587 = vmatmul.mubr.f32.gmra.mrb[0].mxu0 %v2515
        %v2588 = vpop.f32.mrb[0].mxu0
        %v2589 = vadd.f32 %v2508, %v2588
        %v2590 = vpop.f32.mrb[0].mxu0
        %2591 = vdwg.mxu0
        %v2592 = vld [vmem:[%s9 + $0x20] sm:$0xff]
        %v2593 = vld [vmem:[%s9 + $0x28] sm:$0xff]
        %v2595 = vsel %vm1286, %v2416, 0
        %v2598 = vsel %vm1286, %v2417, 0
        %2600 = vmatprep.subr.mxu0 0.0
        %2601 = vmatpush1.msra.mxu0 %v2592
        %2602 = vmatprep.subr.mxu0 0.0
        %2603 = vmatpush1.msra.mxu0 %v2593
        %2604 = vmatprep.subr.mxu0 0.0
        %2605 = vmatpush1.msra.mxu0 0.0
        %2606 = vmatprep.subr.mxu0 0.0
        %2607 = vmatpush1.msra.mxu0 0.0
        %2608 = vmatprep.subr.mxu0 0.0
        %2609 = vmatpush1.msra.mxu0 0.0
        %2610 = vmatprep.subr.mxu0 0.0
        %2611 = vmatpush1.msra.mxu0 0.0
        %2612 = vmatprep.subr.mxu0 0.0
        %2613 = vmatpush1.msra.mxu0 0.0
        %2614 = vmatprep.subr.mxu0 0.0
        %2615 = vmatpush1.msra.mxu0 0.0
        %2616 = vmatprep.subr.mxu0 0.0
        %2617 = vmatpush1.msra.mxu0 0.0
        %2618 = vmatprep.subr.mxu0 0.0
        %2619 = vmatpush1.msra.mxu0 0.0
        %2620 = vmatprep.subr.mxu0 0.0
        %2621 = vmatpush1.msra.mxu0 0.0
        %2622 = vmatprep.subr.mxu0 0.0
        %2623 = vmatpush1.msra.mxu0 0.0
        %2624 = vmatprep.subr.mxu0 0.0
        %2625 = vmatpush1.msra.mxu0 0.0
        %2626 = vmatprep.subr.mxu0 0.0
        %2627 = vmatpush1.msra.mxu0 0.0
        %2628 = vmatprep.subr.mxu0 0.0
        %2629 = vmatpush1.msra.mxu0 0.0
        %2630 = vmatprep.subr.mxu0 0.0
        %2631 = vmatpush1.msra.mxu0 0.0
        %2632 = vmatprep.subr.mxu0 0.0
        %2633 = vmatpush1.msra.mxu0 0.0
        %2634 = vmatprep.subr.mxu0 0.0
        %2635 = vmatpush1.msra.mxu0 0.0
        %2636 = vmatprep.subr.mxu0 0.0
        %2637 = vmatpush1.msra.mxu0 0.0
        %2638 = vmatprep.subr.mxu0 0.0
        %2639 = vmatpush1.msra.mxu0 0.0
        %2640 = vmatprep.subr.mxu0 0.0
        %2641 = vmatpush1.msra.mxu0 0.0
        %2642 = vmatprep.subr.mxu0 0.0
        %2643 = vmatpush1.msra.mxu0 0.0
        %2644 = vmatprep.subr.mxu0 0.0
        %2645 = vmatpush1.msra.mxu0 0.0
        %2646 = vmatprep.subr.mxu0 0.0
        %2647 = vmatpush1.msra.mxu0 0.0
        %2648 = vmatprep.subr.mxu0 0.0
        %2649 = vmatpush1.msra.mxu0 0.0
        %2650 = vmatprep.subr.mxu0 0.0
        %2651 = vmatpush1.msra.mxu0 0.0
        %2652 = vmatprep.subr.mxu0 0.0
        %2653 = vmatpush1.msra.mxu0 0.0
        %2654 = vmatprep.subr.mxu0 0.0
        %2655 = vmatpush1.msra.mxu0 0.0
        %2656 = vmatprep.subr.mxu0 0.0
        %2657 = vmatpush1.msra.mxu0 0.0
        %2658 = vmatprep.subr.mxu0 0.0
        %2659 = vmatpush1.msra.mxu0 0.0
        %2660 = vmatprep.subr.mxu0 0.0
        %2661 = vmatpush1.msra.mxu0 0.0
        %2662 = vmatprep.subr.mxu0 0.0
        %2663 = vmatpush1.msra.mxu0 0.0
        %2664 = vmatprep.mubr.f32.mxu0 0.0
        %2665 = vmatmul.mubr.f32.gmra.mrb[0].mxu0 %v2595
        %v2666 = vpop.f32.mrb[0].mxu0
        %v2667 = vadd.f32 0.0, %v2666
        %v2668 = vpop.f32.mrb[0].mxu0
        %2669 = vmatprep.mubr.f32.mxu0 0.0
        %2670 = vmatmul.mubr.f32.gmra.mrb[0].mxu0 %v2598
        %v2671 = vpop.f32.mrb[0].mxu0
        %v2672 = vadd.f32 0.0, %v2671
        %v2673 = vpop.f32.mrb[0].mxu0
        %2674 = vdwg.mxu0
        %v2675 = vadd.f32 %v2584, %v2667
        %v2676 = vadd.f32 %v2589, %v2672
        %v2677 = vld [vmem:[%s9 + $0x30] sm:$0xff]
        %v2678 = vld [vmem:[%s9 + $0x38] sm:$0xff]
        %v2680 = vsel %vm1286, %v2420, 0
        %v2683 = vsel %vm1286, %v2421, 0
        %2685 = vmatprep.subr.mxu0 0.0
        %2686 = vmatpush1.msra.mxu0 %v2677
        %2687 = vmatprep.subr.mxu0 0.0
        %2688 = vmatpush1.msra.mxu0 %v2678
        %2689 = vmatprep.subr.mxu0 0.0
        %2690 = vmatpush1.msra.mxu0 0.0
        %2691 = vmatprep.subr.mxu0 0.0
        %2692 = vmatpush1.msra.mxu0 0.0
        %2693 = vmatprep.subr.mxu0 0.0
        %2694 = vmatpush1.msra.mxu0 0.0
        %2695 = vmatprep.subr.mxu0 0.0
        %2696 = vmatpush1.msra.mxu0 0.0
        %2697 = vmatprep.subr.mxu0 0.0
        %2698 = vmatpush1.msra.mxu0 0.0
        %2699 = vmatprep.subr.mxu0 0.0
        %2700 = vmatpush1.msra.mxu0 0.0
        %2701 = vmatprep.subr.mxu0 0.0
        %2702 = vmatpush1.msra.mxu0 0.0
        %2703 = vmatprep.subr.mxu0 0.0
        %2704 = vmatpush1.msra.mxu0 0.0
        %2705 = vmatprep.subr.mxu0 0.0
        %2706 = vmatpush1.msra.mxu0 0.0
        %2707 = vmatprep.subr.mxu0 0.0
        %2708 = vmatpush1.msra.mxu0 0.0
        %2709 = vmatprep.subr.mxu0 0.0
        %2710 = vmatpush1.msra.mxu0 0.0
        %2711 = vmatprep.subr.mxu0 0.0
        %2712 = vmatpush1.msra.mxu0 0.0
        %2713 = vmatprep.subr.mxu0 0.0
        %2714 = vmatpush1.msra.mxu0 0.0
        %2715 = vmatprep.subr.mxu0 0.0
        %2716 = vmatpush1.msra.mxu0 0.0
        %2717 = vmatprep.subr.mxu0 0.0
        %2718 = vmatpush1.msra.mxu0 0.0
        %2719 = vmatprep.subr.mxu0 0.0
        %2720 = vmatpush1.msra.mxu0 0.0
        %2721 = vmatprep.subr.mxu0 0.0
        %2722 = vmatpush1.msra.mxu0 0.0
        %2723 = vmatprep.subr.mxu0 0.0
        %2724 = vmatpush1.msra.mxu0 0.0
        %2725 = vmatprep.subr.mxu0 0.0
        %2726 = vmatpush1.msra.mxu0 0.0
        %2727 = vmatprep.subr.mxu0 0.0
        %2728 = vmatpush1.msra.mxu0 0.0
        %2729 = vmatprep.subr.mxu0 0.0
        %2730 = vmatpush1.msra.mxu0 0.0
        %2731 = vmatprep.subr.mxu0 0.0
        %2732 = vmatpush1.msra.mxu0 0.0
        %2733 = vmatprep.subr.mxu0 0.0
        %2734 = vmatpush1.msra.mxu0 0.0
        %2735 = vmatprep.subr.mxu0 0.0
        %2736 = vmatpush1.msra.mxu0 0.0
        %2737 = vmatprep.subr.mxu0 0.0
        %2738 = vmatpush1.msra.mxu0 0.0
        %2739 = vmatprep.subr.mxu0 0.0
        %2740 = vmatpush1.msra.mxu0 0.0
        %2741 = vmatprep.subr.mxu0 0.0
        %2742 = vmatpush1.msra.mxu0 0.0
        %2743 = vmatprep.subr.mxu0 0.0
        %2744 = vmatpush1.msra.mxu0 0.0
        %2745 = vmatprep.subr.mxu0 0.0
        %2746 = vmatpush1.msra.mxu0 0.0
        %2747 = vmatprep.subr.mxu0 0.0
        %2748 = vmatpush1.msra.mxu0 0.0
        %2749 = vmatprep.mubr.f32.mxu0 0.0
        %2750 = vmatmul.mubr.f32.gmra.mrb[0].mxu0 %v2680
        %v2751 = vpop.f32.mrb[0].mxu0
        %v2752 = vadd.f32 0.0, %v2751
        %v2753 = vpop.f32.mrb[0].mxu0
        %2754 = vmatprep.mubr.f32.mxu0 0.0
        %2755 = vmatmul.mubr.f32.gmra.mrb[0].mxu0 %v2683
        %v2756 = vpop.f32.mrb[0].mxu0
        %v2757 = vadd.f32 0.0, %v2756
        %v2758 = vpop.f32.mrb[0].mxu0
        %2759 = vdwg.mxu0
        %v2760 = vadd.f32 %v2675, %v2752
        %v2761 = vadd.f32 %v2676, %v2757
        %v2762 = vld [vmem:[%s9 + $0x40] sm:$0xff]
        %v2763 = vld [vmem:[%s9 + $0x48] sm:$0xff]
        %v2765 = vsel %vm1286, %v2424, 0
        %v2768 = vsel %vm1286, %v2425, 0
        %2770 = vmatprep.subr.mxu0 0.0
        %2771 = vmatpush1.msra.mxu0 %v2762
        %2772 = vmatprep.subr.mxu0 0.0
        %2773 = vmatpush1.msra.mxu0 %v2763
        %2774 = vmatprep.subr.mxu0 0.0
        %2775 = vmatpush1.msra.mxu0 0.0
        %2776 = vmatprep.subr.mxu0 0.0
        %2777 = vmatpush1.msra.mxu0 0.0
        %2778 = vmatprep.subr.mxu0 0.0
        %2779 = vmatpush1.msra.mxu0 0.0
        %2780 = vmatprep.subr.mxu0 0.0
        %2781 = vmatpush1.msra.mxu0 0.0
        %2782 = vmatprep.subr.mxu0 0.0
        %2783 = vmatpush1.msra.mxu0 0.0
        %2784 = vmatprep.subr.mxu0 0.0
        %2785 = vmatpush1.msra.mxu0 0.0
        %2786 = vmatprep.subr.mxu0 0.0
        %2787 = vmatpush1.msra.mxu0 0.0
        %2788 = vmatprep.subr.mxu0 0.0
        %2789 = vmatpush1.msra.mxu0 0.0
        %2790 = vmatprep.subr.mxu0 0.0
        %2791 = vmatpush1.msra.mxu0 0.0
        %2792 = vmatprep.subr.mxu0 0.0
        %2793 = vmatpush1.msra.mxu0 0.0
        %2794 = vmatprep.subr.mxu0 0.0
        %2795 = vmatpush1.msra.mxu0 0.0
        %2796 = vmatprep.subr.mxu0 0.0
        %2797 = vmatpush1.msra.mxu0 0.0
        %2798 = vmatprep.subr.mxu0 0.0
        %2799 = vmatpush1.msra.mxu0 0.0
        %2800 = vmatprep.subr.mxu0 0.0
        %2801 = vmatpush1.msra.mxu0 0.0
        %2802 = vmatprep.subr.mxu0 0.0
        %2803 = vmatpush1.msra.mxu0 0.0
        %2804 = vmatprep.subr.mxu0 0.0
        %2805 = vmatpush1.msra.mxu0 0.0
        %2806 = vmatprep.subr.mxu0 0.0
        %2807 = vmatpush1.msra.mxu0 0.0
        %2808 = vmatprep.subr.mxu0 0.0
        %2809 = vmatpush1.msra.mxu0 0.0
        %2810 = vmatprep.subr.mxu0 0.0
        %2811 = vmatpush1.msra.mxu0 0.0
        %2812 = vmatprep.subr.mxu0 0.0
        %2813 = vmatpush1.msra.mxu0 0.0
        %2814 = vmatprep.subr.mxu0 0.0
        %2815 = vmatpush1.msra.mxu0 0.0
        %2816 = vmatprep.subr.mxu0 0.0
        %2817 = vmatpush1.msra.mxu0 0.0
        %2818 = vmatprep.subr.mxu0 0.0
        %2819 = vmatpush1.msra.mxu0 0.0
        %2820 = vmatprep.subr.mxu0 0.0
        %2821 = vmatpush1.msra.mxu0 0.0
        %2822 = vmatprep.subr.mxu0 0.0
        %2823 = vmatpush1.msra.mxu0 0.0
        %2824 = vmatprep.subr.mxu0 0.0
        %2825 = vmatpush1.msra.mxu0 0.0
        %2826 = vmatprep.subr.mxu0 0.0
        %2827 = vmatpush1.msra.mxu0 0.0
        %2828 = vmatprep.subr.mxu0 0.0
        %2829 = vmatpush1.msra.mxu0 0.0
        %2830 = vmatprep.subr.mxu0 0.0
        %2831 = vmatpush1.msra.mxu0 0.0
        %2832 = vmatprep.subr.mxu0 0.0
        %2833 = vmatpush1.msra.mxu0 0.0
        %2834 = vmatprep.mubr.f32.mxu0 0.0
        %2835 = vmatmul.mubr.f32.gmra.mrb[0].mxu0 %v2765
        %v2836 = vpop.f32.mrb[0].mxu0
        %v2837 = vadd.f32 0.0, %v2836
        %v2838 = vpop.f32.mrb[0].mxu0
        %2839 = vmatprep.mubr.f32.mxu0 0.0
        %2840 = vmatmul.mubr.f32.gmra.mrb[0].mxu0 %v2768
        %v2841 = vpop.f32.mrb[0].mxu0
        %v2842 = vadd.f32 0.0, %v2841
        %v2843 = vpop.f32.mrb[0].mxu0
        %2844 = vdwg.mxu0
        %v2845 = vadd.f32 %v2760, %v2837
        %v2846 = vadd.f32 %v2761, %v2842
        %v2847 = vld [vmem:[%s10] sm:$0x1]
        %v2849 = vlaneseq
        %v2850 = vshrl.u32 %v2849, 7
        %v2851 = vsub.s32 0, %v2850
        %v2852 = vrot.slane %v2847, %v2851
        %v2854 = vadd.f32 %v2845, %v2852
        %v2855 = vadd.f32 %v2846, %v2852
        %v2856 = vsel %vm1286, %v2854, 0.0
        %v2857 = vsel %vm1286, %v2855, 0.0
        %v2858 = vadd.f32 %v2856, %v2857
        %v2859 = vrot.slane %v2858, 4
        %v2860 = vadd.f32 %v2858, %v2859
        %v2861 = vrot.slane %v2860, 2
        %v2862 = vadd.f32 %v2860, %v2861
        %v2863 = vrot.slane %v2862, 1
        %v2864 = vadd.f32 %v2862, %v2863
        %v2865 = vmul.f32 %v2864, %v2092
        %v2866 = vsub.f32 %v2854, %v2865
        %v2867 = vsub.f32 %v2855, %v2865
        %v2868 = vmul.f32 %v2866, %v2866
        %v2869 = vmul.f32 %v2867, %v2867
        %v2870 = vsel %vm1286, %v2868, 0.0
        %v2871 = vsel %vm1286, %v2869, 0.0
        %v2872 = vadd.f32 %v2870, %v2871
        %v2873 = vrot.slane %v2872, 4
        %v2874 = vadd.f32 %v2872, %v2873
        %v2875 = vrot.slane %v2874, 2
        %v2876 = vadd.f32 %v2874, %v2875
        %v2877 = vrot.slane %v2876, 1
        %v2878 = vadd.f32 %v2876, %v2877
        %v2879 = vmul.f32 %v2878, %v2092
        %v2880 = vadd.f32 %v2879, 1e-05
        %v2881 = vrsqrt.pop %v2880
        %v2882 = vmul.f32 %v2866, %v2881
        %v2883 = vmul.f32 %v2867, %v2881
        %v2884 = vadd.f32 %v2882, %v2112
        %v2885 = vadd.f32 %v2883, %v2113
        %v2886 = vmax.f32 %v2884, 0.0
        %v2887 = vmax.f32 %v2885, 0.0
        %2888 = vst.msk [vmem:[%s435] sm:$0xff] %vm1286, %v2886
        %2889 = vst.msk [vmem:[%s435 + $0x8] sm:$0xff] %vm1286, %v2887
        %s2890 = sand.u32 %s289, 1
        %s2891 = scalar_lea.sflag [#allocation3], %s2890
        %s2892 = sand.u32 %s289, 1
        %s2893 = smul.addr %s2892, 16
        %s2894 = scalar_lea.vmem [#allocation2], %s2893
        // Predicated region
        $region65: #{tpu_custom_call.1} parent=63 // pred_check
          %p2895 = pneg %p299
        $region66: #{tpu_custom_call.1} parent=63 // pred_check_branch
          %2897 = sbr.rel (%p2895) target = $region68
        $region67: #{tpu_custom_call.1} parent=63 // pred_region
          %s2899 = ssub.s32 256, 256
          %2900 = vsyncadd %s2891, %s2899
          %s2901 = smul.addr %s25, 2
          %s2902 = smul.addr %s2901, 128
          %s2903 = scalar_lea.hbm %s11, %s2902
          %s2904 = sshll.u32 %s2894, 4
          %s2905 = int_to_ptr.vmem [resolvable:$true] %s2904
          %2910 = dma.vmem_to_hbm [thread:$0]  %s2905, 256, %s2903, %s2891, 128, 128, 8
        $region68: #{tpu_custom_call.1} parent=63 // pred_fallthru
          _
      $region64: #{tpu_custom_call.1} parent=5 // pred_fallthru
        _
      %p2911 = scmp.le.s32.totalorder 2, %s20
      // Predicated region
      $region69: #{tpu_custom_call.1} parent=5 // pred_check
        %p2912 = pneg %p2911
      $region70: #{tpu_custom_call.1} parent=5 // pred_check_branch
        %2914 = sbr.rel (%p2912) target = $region72
      $region71: #{tpu_custom_call.1} parent=5 // pred_region
        %s2915 = ssub.s32 %s20, 2
        // Predicated region
        $region73: #{tpu_custom_call.1} parent=71 // pred_check
          %p2916 = pneg %p305
        $region74: #{tpu_custom_call.1} parent=71 // pred_check_branch
          %2918 = sbr.rel (%p2916) target = $region76
        $region75: #{tpu_custom_call.1} parent=71 // pred_region
          %s2919 = sand.u32 %s290, 1
          %s2920 = scalar_lea.sflag [#allocation3], %s2919
          %s2921 = sand.u32 %s290, 1
          %s2922 = smul.addr %s2921, 16
          %s2923 = scalar_lea.vmem [#allocation2], %s2922
          %2924 = dma.done %s2920, 256
        $region76: #{tpu_custom_call.1} parent=71 // pred_fallthru
          _
      $region72: #{tpu_custom_call.1} parent=5 // pred_fallthru
        _
    $region6: #{tpu_custom_call.1} parent=1 // loop_footer
      %s24 = sadd.s32 1, %s20
    $region7: #{tpu_custom_call.1} parent=1 // loop_footer_branch
      %19 = sbr.rel target = $region3
    $region8: #{tpu_custom_call.1} parent=1 // loop_exit
      _
    %2925 = vsyncpa [#allocation3], 1
    %s2926 = scalar_lea.sflag [#allocation3], 1
    %2927 = vsyncpa %s2926, 1

</llo_original>
